<compile_context>
chip_gen: v6e
topology: v6e:2x2x1
jax: 0.10.0
libtpu: 0.0.40
codegen_flags: <defaults>
</compile_context>

<pallas_src>
import functools

import jax
import jax.numpy as jnp
from jax.experimental import pallas as pl
from jax.experimental.pallas import tpu as pltpu


# ----------------------------------------------------------------------------
# Fused attention kernel: one (batch,) grid step = one full sequence.
# ----------------------------------------------------------------------------
def _attention_kernel(x_ref, w_qv_ref, w_kt_ref, w_out_ref, b_ref, o_ref, *,
                      heads, dim_head, scale):
    inner = heads * dim_head
    x = x_ref[...]                                   # (seq, dim)
    dt = x.dtype

    # --- fused Q/V projection: one wide GEMM (K = dim, N = 2*inner) ----------
    qv = jnp.dot(x, w_qv_ref[...], preferred_element_type=jnp.float32)
    # Fold the softmax scale into q: a (seq, inner) multiply instead of scaling
    # every (seq, seq) score tile.
    q = (qv[:, :inner] * scale).astype(dt)           # (seq, inner)
    v = qv[:, inner:].astype(dt)                     # (seq, inner)

    # --- K projection, produced directly as K^T = W_k^T @ x^T ----------------
    # The contraction transposes the small (seq, dim) x operand once per grid
    # step; every per-head QK^T below is then a plain NN MXU matmul.
    kt = jax.lax.dot_general(
        w_kt_ref[...], x, (((1,), (1,)), ((), ())),
        preferred_element_type=jnp.float32).astype(dt)          # (inner, seq)

    # --- per-head attention (static unroll; heads is small & static) ---------
    ctx_parts = []
    for h in range(heads):
        lo = h * dim_head
        hi = lo + dim_head
        # scores (scale already folded into q), f32 accumulation on the MXU
        s = jnp.dot(q[:, lo:hi], kt[lo:hi, :],
                    preferred_element_type=jnp.float32)         # (seq, seq)
        # softmax with deferred normalization: keep only the row-sum l
        m = jnp.max(s, axis=-1, keepdims=True)
        p = jnp.exp(s - m)
        l = jnp.sum(p, axis=-1, keepdims=True)
        # TODO(synk): attention dropout is identity here (p=0.0); a training
        # version would mask p using pltpu.prng_seed / pltpu.prng_random_bits.
        ctx = jnp.dot(p.astype(dt), v[:, lo:hi],
                      preferred_element_type=jnp.float32)       # (seq, dim_head)
        # Normalize the (seq, dim_head) context, not the (seq, seq) scores.
        # (pl.reciprocal(..., approx=True) is an even cheaper EUP path if looser
        #  numerics are acceptable.)
        ctx_parts.append(ctx * pl.reciprocal(l, approx=False))

    # --- head merge (stays in vregs) + single full-K output projection -------
    ctx_all = jnp.concatenate(ctx_parts, axis=-1).astype(dt)    # (seq, inner)
    out = jnp.dot(ctx_all, w_out_ref[...],
                  preferred_element_type=jnp.float32)           # (seq, dim)
    out = out + b_ref[...].astype(jnp.float32)
    o_ref[...] = out.astype(o_ref.dtype)                        # lane-dense store


# ----------------------------------------------------------------------------
# Full Attention forward
# ----------------------------------------------------------------------------
def attention_forward(x, w_qkv, w_out, b_out, *, heads, dim_head):
    # x: (B, N, dim); w_qkv: (dim, 3*inner); w_out: (inner, dim); b_out: (dim,)
    b, n, d = x.shape
    inner = heads * dim_head
    assert w_qkv.shape == (d, 3 * inner)
    assert w_out.shape == (inner, d)
    scale = dim_head ** (-0.5)

    # One-time weight relayout (tiny, wrapper-side):
    #   W_qv = [W_q | W_v]  (dim, 2*inner)   -> one wide fused projection GEMM
    #   W_kT = W_k^T        (inner, dim)     -> K produced directly as (dh, seq)
    w_q = w_qkv[:, :inner]
    w_k = w_qkv[:, inner:2 * inner]
    w_v = w_qkv[:, 2 * inner:]
    w_qv = jnp.concatenate([w_q, w_v], axis=1)        # (dim, 2*inner)
    w_kt = jnp.transpose(w_k)                         # (inner, dim)

    kernel = functools.partial(_attention_kernel, heads=heads,
                               dim_head=dim_head, scale=scale)

    # TODO(synk): project_out=False (heads==1 and dim_head==dim -> nn.Identity)
    # is not exercised; this implements the default projecting path.
    return pl.pallas_call(
        kernel,
        out_shape=jax.ShapeDtypeStruct((b, n, d), x.dtype),
        grid_spec=pltpu.PrefetchScalarGridSpec(
            num_scalar_prefetch=0,
            grid=(b,),
            in_specs=[
                pl.BlockSpec((None, n, d), lambda i: (i, 0, 0)),    # x[b]
                pl.BlockSpec((d, 2 * inner), lambda i: (0, 0)),     # W_qv (resident)
                pl.BlockSpec((inner, d), lambda i: (0, 0)),         # W_k^T (resident)
                pl.BlockSpec((inner, d), lambda i: (0, 0)),         # W_out (resident)
                pl.BlockSpec((1, d), lambda i: (0, 0)),             # b_out
            ],
            out_specs=pl.BlockSpec((None, n, d), lambda i: (i, 0, 0)),
        ),
        compiler_params=pltpu.CompilerParams(
            dimension_semantics=("parallel",)),
    )(x, w_qv, w_kt, w_out, b_out.reshape(1, d))


# Pure-JAX reference for the correctness check.
def attention_ref(x, w_qkv, w_out, b_out, heads, dim_head):
    b, n, d = x.shape
    scale = dim_head ** (-0.5)
    qkv = x @ w_qkv
    q, k, v = jnp.split(qkv, 3, axis=-1)

    def split_heads(t):
        return t.reshape(b, n, heads, dim_head).transpose(0, 2, 1, 3)

    q, k, v = map(split_heads, (q, k, v))
    dots = jnp.einsum("bhid,bhjd->bhij", q, k) * scale
    attn = jax.nn.softmax(dots, axis=-1)
    out = jnp.einsum("bhij,bhjd->bhid", attn, v)
    out = out.transpose(0, 2, 1, 3).reshape(b, n, heads * dim_head)
    return out @ w_out + b_out


if __name__ == "__main__":
    key = jax.random.PRNGKey(0)
    B, N, DIM = 2, 64, 128
    HEADS, DIM_HEAD = 8, 64            # module defaults: heads=8, dim_head=64
    INNER = HEADS * DIM_HEAD

    kx, kq, ko, kb = jax.random.split(key, 4)
    x = jax.random.normal(kx, (B, N, DIM), dtype=jnp.float32)
    w_qkv = jax.random.normal(kq, (DIM, 3 * INNER), dtype=jnp.float32) / jnp.sqrt(DIM)
    w_out = jax.random.normal(ko, (INNER, DIM), dtype=jnp.float32) / jnp.sqrt(INNER)
    b_out = jax.random.normal(kb, (DIM,), dtype=jnp.float32) * 0.1

    out = attention_forward(x, w_qkv, w_out, b_out, heads=HEADS, dim_head=DIM_HEAD)
    out = jax.block_until_ready(out)

    ref = attention_ref(x, w_qkv, w_out, b_out, HEADS, DIM_HEAD)
    assert out.shape == (B, N, DIM), out.shape
    max_err = float(jnp.max(jnp.abs(out - ref)))
    assert jnp.allclose(out, ref, atol=1e-3, rtol=1e-3), max_err

    print("KERNEL_OK")
</pallas_src>

<mosaic_0001>
module attributes {stable_mosaic.version = 11 : i64} {
  func.func @_attention_kernel(%arg0: i32, %arg1: memref<1x64x128xf32, #tpu.memory_space<vmem>>, %arg2: memref<128x1024xf32, #tpu.memory_space<vmem>>, %arg3: memref<512x128xf32, #tpu.memory_space<vmem>>, %arg4: memref<512x128xf32, #tpu.memory_space<vmem>>, %arg5: memref<1x128xf32, #tpu.memory_space<vmem>>, %arg6: memref<1x64x128xf32, #tpu.memory_space<vmem>>) attributes {dimension_semantics = [#tpu.dimension_semantics<parallel>], iteration_bounds = array<i64: 2>, scalar_prefetch = 0 : i64, scratch_operands = 0 : i64, tpu.core_type = #tpu.core_type<tc>, window_params = [{transform_indices = @transform_0, window_bounds = array<i64: 1, 64, 128>}, {pipeline_mode = #tpu.pipeline_mode<synchronous>, transform_indices = @transform_1, window_bounds = array<i64: 128, 1024>}, {pipeline_mode = #tpu.pipeline_mode<synchronous>, transform_indices = @transform_2, window_bounds = array<i64: 512, 128>}, {pipeline_mode = #tpu.pipeline_mode<synchronous>, transform_indices = @transform_3, window_bounds = array<i64: 512, 128>}, {pipeline_mode = #tpu.pipeline_mode<synchronous>, transform_indices = @transform_4, window_bounds = array<i64: 1, 128>}, {transform_indices = @transform_5, window_bounds = array<i64: 1, 64, 128>}]} {
    %c0 = arith.constant 0 : index
    %c0_0 = arith.constant 0 : index
    %c0_1 = arith.constant 0 : index
    %0 = vector.load %arg1[%c0, %c0_0, %c0_1] : memref<1x64x128xf32, #tpu.memory_space<vmem>>, vector<1x64x128xf32>
    %1 = vector.shape_cast %0 : vector<1x64x128xf32> to vector<64x128xf32>
    %c0_2 = arith.constant 0 : index
    %c0_3 = arith.constant 0 : index
    %2 = vector.load %arg2[%c0_2, %c0_3] : memref<128x1024xf32, #tpu.memory_space<vmem>>, vector<128x1024xf32>
    %cst = arith.constant dense<0.000000e+00> : vector<64x1024xf32>
    %3 = tpu.matmul %1, %2, %cst {dimension_numbers = #tpu.dot_dimension_numbers<[1], [0], [0], [1], [0, 0, 1, 1], [], []>} : vector<64x128xf32>, vector<128x1024xf32>, vector<64x1024xf32> -> vector<64x1024xf32>
    %4 = vector.extract_strided_slice %3 {offsets = [0, 0], sizes = [64, 512], strides = [1, 1]} : vector<64x1024xf32> to vector<64x512xf32>
    %cst_4 = arith.constant 1.250000e-01 : f32
    %5 = vector.broadcast %cst_4 : f32 to vector<64x512xf32>
    %6 = arith.mulf %4, %5 : vector<64x512xf32>
    %7 = vector.extract_strided_slice %3 {offsets = [0, 512], sizes = [64, 512], strides = [1, 1]} : vector<64x1024xf32> to vector<64x512xf32>
    %c0_5 = arith.constant 0 : index
    %c0_6 = arith.constant 0 : index
    %8 = vector.load %arg3[%c0_5, %c0_6] : memref<512x128xf32, #tpu.memory_space<vmem>>, vector<512x128xf32>
    %cst_7 = arith.constant dense<0.000000e+00> : vector<512x64xf32>
    %9 = tpu.matmul %8, %1, %cst_7 {dimension_numbers = #tpu.dot_dimension_numbers<[1], [1], [0], [0], [0, 0, 1, 0], [], []>} : vector<512x128xf32>, vector<64x128xf32>, vector<512x64xf32> -> vector<512x64xf32>
    %10 = vector.extract_strided_slice %6 {offsets = [0, 0], sizes = [64, 64], strides = [1, 1]} : vector<64x512xf32> to vector<64x64xf32>
    %11 = vector.extract_strided_slice %9 {offsets = [0, 0], sizes = [64, 64], strides = [1, 1]} : vector<512x64xf32> to vector<64x64xf32>
    %cst_8 = arith.constant dense<0.000000e+00> : vector<64x64xf32>
    %12 = tpu.matmul %10, %11, %cst_8 {dimension_numbers = #tpu.dot_dimension_numbers<[1], [0], [0], [1], [0, 0, 1, 1], [], []>} : vector<64x64xf32>, vector<64x64xf32>, vector<64x64xf32> -> vector<64x64xf32>
    %cst_9 = arith.constant dense<0xFF800000> : vector<64xf32>
    %13 = vector.multi_reduction <maximumf>, %12, %cst_9 [1] : vector<64x64xf32> to vector<64xf32>
    %14 = vector.shape_cast %13 : vector<64xf32> to vector<64x1xf32>
    %15 = vector.broadcast %14 : vector<64x1xf32> to vector<64x64xf32>
    %16 = arith.subf %12, %15 : vector<64x64xf32>
    %17 = math.exp %16 : vector<64x64xf32>
    %cst_10 = arith.constant dense<0.000000e+00> : vector<64xf32>
    %18 = vector.multi_reduction <add>, %17, %cst_10 [1] : vector<64x64xf32> to vector<64xf32>
    %19 = vector.shape_cast %18 : vector<64xf32> to vector<64x1xf32>
    %20 = vector.extract_strided_slice %7 {offsets = [0, 0], sizes = [64, 64], strides = [1, 1]} : vector<64x512xf32> to vector<64x64xf32>
    %cst_11 = arith.constant dense<0.000000e+00> : vector<64x64xf32>
    %21 = tpu.matmul %17, %20, %cst_11 {dimension_numbers = #tpu.dot_dimension_numbers<[1], [0], [0], [1], [0, 0, 1, 1], [], []>} : vector<64x64xf32>, vector<64x64xf32>, vector<64x64xf32> -> vector<64x64xf32>
    %22 = tpu.reciprocal %19 : vector<64x1xf32> -> vector<64x1xf32>
    %23 = vector.broadcast %22 : vector<64x1xf32> to vector<64x64xf32>
    %24 = arith.mulf %21, %23 : vector<64x64xf32>
    %25 = vector.extract_strided_slice %6 {offsets = [0, 64], sizes = [64, 64], strides = [1, 1]} : vector<64x512xf32> to vector<64x64xf32>
    %26 = vector.extract_strided_slice %9 {offsets = [64, 0], sizes = [64, 64], strides = [1, 1]} : vector<512x64xf32> to vector<64x64xf32>
    %cst_12 = arith.constant dense<0.000000e+00> : vector<64x64xf32>
    %27 = tpu.matmul %25, %26, %cst_12 {dimension_numbers = #tpu.dot_dimension_numbers<[1], [0], [0], [1], [0, 0, 1, 1], [], []>} : vector<64x64xf32>, vector<64x64xf32>, vector<64x64xf32> -> vector<64x64xf32>
    %cst_13 = arith.constant dense<0xFF800000> : vector<64xf32>
    %28 = vector.multi_reduction <maximumf>, %27, %cst_13 [1] : vector<64x64xf32> to vector<64xf32>
    %29 = vector.shape_cast %28 : vector<64xf32> to vector<64x1xf32>
    %30 = vector.broadcast %29 : vector<64x1xf32> to vector<64x64xf32>
    %31 = arith.subf %27, %30 : vector<64x64xf32>
    %32 = math.exp %31 : vector<64x64xf32>
    %cst_14 = arith.constant dense<0.000000e+00> : vector<64xf32>
    %33 = vector.multi_reduction <add>, %32, %cst_14 [1] : vector<64x64xf32> to vector<64xf32>
    %34 = vector.shape_cast %33 : vector<64xf32> to vector<64x1xf32>
    %35 = vector.extract_strided_slice %7 {offsets = [0, 64], sizes = [64, 64], strides = [1, 1]} : vector<64x512xf32> to vector<64x64xf32>
    %cst_15 = arith.constant dense<0.000000e+00> : vector<64x64xf32>
    %36 = tpu.matmul %32, %35, %cst_15 {dimension_numbers = #tpu.dot_dimension_numbers<[1], [0], [0], [1], [0, 0, 1, 1], [], []>} : vector<64x64xf32>, vector<64x64xf32>, vector<64x64xf32> -> vector<64x64xf32>
    %37 = tpu.reciprocal %34 : vector<64x1xf32> -> vector<64x1xf32>
    %38 = vector.broadcast %37 : vector<64x1xf32> to vector<64x64xf32>
    %39 = arith.mulf %36, %38 : vector<64x64xf32>
    %40 = vector.extract_strided_slice %6 {offsets = [0, 128], sizes = [64, 64], strides = [1, 1]} : vector<64x512xf32> to vector<64x64xf32>
    %41 = vector.extract_strided_slice %9 {offsets = [128, 0], sizes = [64, 64], strides = [1, 1]} : vector<512x64xf32> to vector<64x64xf32>
    %cst_16 = arith.constant dense<0.000000e+00> : vector<64x64xf32>
    %42 = tpu.matmul %40, %41, %cst_16 {dimension_numbers = #tpu.dot_dimension_numbers<[1], [0], [0], [1], [0, 0, 1, 1], [], []>} : vector<64x64xf32>, vector<64x64xf32>, vector<64x64xf32> -> vector<64x64xf32>
    %cst_17 = arith.constant dense<0xFF800000> : vector<64xf32>
    %43 = vector.multi_reduction <maximumf>, %42, %cst_17 [1] : vector<64x64xf32> to vector<64xf32>
    %44 = vector.shape_cast %43 : vector<64xf32> to vector<64x1xf32>
    %45 = vector.broadcast %44 : vector<64x1xf32> to vector<64x64xf32>
    %46 = arith.subf %42, %45 : vector<64x64xf32>
    %47 = math.exp %46 : vector<64x64xf32>
    %cst_18 = arith.constant dense<0.000000e+00> : vector<64xf32>
    %48 = vector.multi_reduction <add>, %47, %cst_18 [1] : vector<64x64xf32> to vector<64xf32>
    %49 = vector.shape_cast %48 : vector<64xf32> to vector<64x1xf32>
    %50 = vector.extract_strided_slice %7 {offsets = [0, 128], sizes = [64, 64], strides = [1, 1]} : vector<64x512xf32> to vector<64x64xf32>
    %cst_19 = arith.constant dense<0.000000e+00> : vector<64x64xf32>
    %51 = tpu.matmul %47, %50, %cst_19 {dimension_numbers = #tpu.dot_dimension_numbers<[1], [0], [0], [1], [0, 0, 1, 1], [], []>} : vector<64x64xf32>, vector<64x64xf32>, vector<64x64xf32> -> vector<64x64xf32>
    %52 = tpu.reciprocal %49 : vector<64x1xf32> -> vector<64x1xf32>
    %53 = vector.broadcast %52 : vector<64x1xf32> to vector<64x64xf32>
    %54 = arith.mulf %51, %53 : vector<64x64xf32>
    %55 = vector.extract_strided_slice %6 {offsets = [0, 192], sizes = [64, 64], strides = [1, 1]} : vector<64x512xf32> to vector<64x64xf32>
    %56 = vector.extract_strided_slice %9 {offsets = [192, 0], sizes = [64, 64], strides = [1, 1]} : vector<512x64xf32> to vector<64x64xf32>
    %cst_20 = arith.constant dense<0.000000e+00> : vector<64x64xf32>
    %57 = tpu.matmul %55, %56, %cst_20 {dimension_numbers = #tpu.dot_dimension_numbers<[1], [0], [0], [1], [0, 0, 1, 1], [], []>} : vector<64x64xf32>, vector<64x64xf32>, vector<64x64xf32> -> vector<64x64xf32>
    %cst_21 = arith.constant dense<0xFF800000> : vector<64xf32>
    %58 = vector.multi_reduction <maximumf>, %57, %cst_21 [1] : vector<64x64xf32> to vector<64xf32>
    %59 = vector.shape_cast %58 : vector<64xf32> to vector<64x1xf32>
    %60 = vector.broadcast %59 : vector<64x1xf32> to vector<64x64xf32>
    %61 = arith.subf %57, %60 : vector<64x64xf32>
    %62 = math.exp %61 : vector<64x64xf32>
    %cst_22 = arith.constant dense<0.000000e+00> : vector<64xf32>
    %63 = vector.multi_reduction <add>, %62, %cst_22 [1] : vector<64x64xf32> to vector<64xf32>
    %64 = vector.shape_cast %63 : vector<64xf32> to vector<64x1xf32>
    %65 = vector.extract_strided_slice %7 {offsets = [0, 192], sizes = [64, 64], strides = [1, 1]} : vector<64x512xf32> to vector<64x64xf32>
    %cst_23 = arith.constant dense<0.000000e+00> : vector<64x64xf32>
    %66 = tpu.matmul %62, %65, %cst_23 {dimension_numbers = #tpu.dot_dimension_numbers<[1], [0], [0], [1], [0, 0, 1, 1], [], []>} : vector<64x64xf32>, vector<64x64xf32>, vector<64x64xf32> -> vector<64x64xf32>
    %67 = tpu.reciprocal %64 : vector<64x1xf32> -> vector<64x1xf32>
    %68 = vector.broadcast %67 : vector<64x1xf32> to vector<64x64xf32>
    %69 = arith.mulf %66, %68 : vector<64x64xf32>
    %70 = vector.extract_strided_slice %6 {offsets = [0, 256], sizes = [64, 64], strides = [1, 1]} : vector<64x512xf32> to vector<64x64xf32>
    %71 = vector.extract_strided_slice %9 {offsets = [256, 0], sizes = [64, 64], strides = [1, 1]} : vector<512x64xf32> to vector<64x64xf32>
    %cst_24 = arith.constant dense<0.000000e+00> : vector<64x64xf32>
    %72 = tpu.matmul %70, %71, %cst_24 {dimension_numbers = #tpu.dot_dimension_numbers<[1], [0], [0], [1], [0, 0, 1, 1], [], []>} : vector<64x64xf32>, vector<64x64xf32>, vector<64x64xf32> -> vector<64x64xf32>
    %cst_25 = arith.constant dense<0xFF800000> : vector<64xf32>
    %73 = vector.multi_reduction <maximumf>, %72, %cst_25 [1] : vector<64x64xf32> to vector<64xf32>
    %74 = vector.shape_cast %73 : vector<64xf32> to vector<64x1xf32>
    %75 = vector.broadcast %74 : vector<64x1xf32> to vector<64x64xf32>
    %76 = arith.subf %72, %75 : vector<64x64xf32>
    %77 = math.exp %76 : vector<64x64xf32>
    %cst_26 = arith.constant dense<0.000000e+00> : vector<64xf32>
    %78 = vector.multi_reduction <add>, %77, %cst_26 [1] : vector<64x64xf32> to vector<64xf32>
    %79 = vector.shape_cast %78 : vector<64xf32> to vector<64x1xf32>
    %80 = vector.extract_strided_slice %7 {offsets = [0, 256], sizes = [64, 64], strides = [1, 1]} : vector<64x512xf32> to vector<64x64xf32>
    %cst_27 = arith.constant dense<0.000000e+00> : vector<64x64xf32>
    %81 = tpu.matmul %77, %80, %cst_27 {dimension_numbers = #tpu.dot_dimension_numbers<[1], [0], [0], [1], [0, 0, 1, 1], [], []>} : vector<64x64xf32>, vector<64x64xf32>, vector<64x64xf32> -> vector<64x64xf32>
    %82 = tpu.reciprocal %79 : vector<64x1xf32> -> vector<64x1xf32>
    %83 = vector.broadcast %82 : vector<64x1xf32> to vector<64x64xf32>
    %84 = arith.mulf %81, %83 : vector<64x64xf32>
    %85 = vector.extract_strided_slice %6 {offsets = [0, 320], sizes = [64, 64], strides = [1, 1]} : vector<64x512xf32> to vector<64x64xf32>
    %86 = vector.extract_strided_slice %9 {offsets = [320, 0], sizes = [64, 64], strides = [1, 1]} : vector<512x64xf32> to vector<64x64xf32>
    %cst_28 = arith.constant dense<0.000000e+00> : vector<64x64xf32>
    %87 = tpu.matmul %85, %86, %cst_28 {dimension_numbers = #tpu.dot_dimension_numbers<[1], [0], [0], [1], [0, 0, 1, 1], [], []>} : vector<64x64xf32>, vector<64x64xf32>, vector<64x64xf32> -> vector<64x64xf32>
    %cst_29 = arith.constant dense<0xFF800000> : vector<64xf32>
    %88 = vector.multi_reduction <maximumf>, %87, %cst_29 [1] : vector<64x64xf32> to vector<64xf32>
    %89 = vector.shape_cast %88 : vector<64xf32> to vector<64x1xf32>
    %90 = vector.broadcast %89 : vector<64x1xf32> to vector<64x64xf32>
    %91 = arith.subf %87, %90 : vector<64x64xf32>
    %92 = math.exp %91 : vector<64x64xf32>
    %cst_30 = arith.constant dense<0.000000e+00> : vector<64xf32>
    %93 = vector.multi_reduction <add>, %92, %cst_30 [1] : vector<64x64xf32> to vector<64xf32>
    %94 = vector.shape_cast %93 : vector<64xf32> to vector<64x1xf32>
    %95 = vector.extract_strided_slice %7 {offsets = [0, 320], sizes = [64, 64], strides = [1, 1]} : vector<64x512xf32> to vector<64x64xf32>
    %cst_31 = arith.constant dense<0.000000e+00> : vector<64x64xf32>
    %96 = tpu.matmul %92, %95, %cst_31 {dimension_numbers = #tpu.dot_dimension_numbers<[1], [0], [0], [1], [0, 0, 1, 1], [], []>} : vector<64x64xf32>, vector<64x64xf32>, vector<64x64xf32> -> vector<64x64xf32>
    %97 = tpu.reciprocal %94 : vector<64x1xf32> -> vector<64x1xf32>
    %98 = vector.broadcast %97 : vector<64x1xf32> to vector<64x64xf32>
    %99 = arith.mulf %96, %98 : vector<64x64xf32>
    %100 = vector.extract_strided_slice %6 {offsets = [0, 384], sizes = [64, 64], strides = [1, 1]} : vector<64x512xf32> to vector<64x64xf32>
    %101 = vector.extract_strided_slice %9 {offsets = [384, 0], sizes = [64, 64], strides = [1, 1]} : vector<512x64xf32> to vector<64x64xf32>
    %cst_32 = arith.constant dense<0.000000e+00> : vector<64x64xf32>
    %102 = tpu.matmul %100, %101, %cst_32 {dimension_numbers = #tpu.dot_dimension_numbers<[1], [0], [0], [1], [0, 0, 1, 1], [], []>} : vector<64x64xf32>, vector<64x64xf32>, vector<64x64xf32> -> vector<64x64xf32>
    %cst_33 = arith.constant dense<0xFF800000> : vector<64xf32>
    %103 = vector.multi_reduction <maximumf>, %102, %cst_33 [1] : vector<64x64xf32> to vector<64xf32>
    %104 = vector.shape_cast %103 : vector<64xf32> to vector<64x1xf32>
    %105 = vector.broadcast %104 : vector<64x1xf32> to vector<64x64xf32>
    %106 = arith.subf %102, %105 : vector<64x64xf32>
    %107 = math.exp %106 : vector<64x64xf32>
    %cst_34 = arith.constant dense<0.000000e+00> : vector<64xf32>
    %108 = vector.multi_reduction <add>, %107, %cst_34 [1] : vector<64x64xf32> to vector<64xf32>
    %109 = vector.shape_cast %108 : vector<64xf32> to vector<64x1xf32>
    %110 = vector.extract_strided_slice %7 {offsets = [0, 384], sizes = [64, 64], strides = [1, 1]} : vector<64x512xf32> to vector<64x64xf32>
    %cst_35 = arith.constant dense<0.000000e+00> : vector<64x64xf32>
    %111 = tpu.matmul %107, %110, %cst_35 {dimension_numbers = #tpu.dot_dimension_numbers<[1], [0], [0], [1], [0, 0, 1, 1], [], []>} : vector<64x64xf32>, vector<64x64xf32>, vector<64x64xf32> -> vector<64x64xf32>
    %112 = tpu.reciprocal %109 : vector<64x1xf32> -> vector<64x1xf32>
    %113 = vector.broadcast %112 : vector<64x1xf32> to vector<64x64xf32>
    %114 = arith.mulf %111, %113 : vector<64x64xf32>
    %115 = vector.extract_strided_slice %6 {offsets = [0, 448], sizes = [64, 64], strides = [1, 1]} : vector<64x512xf32> to vector<64x64xf32>
    %116 = vector.extract_strided_slice %9 {offsets = [448, 0], sizes = [64, 64], strides = [1, 1]} : vector<512x64xf32> to vector<64x64xf32>
    %cst_36 = arith.constant dense<0.000000e+00> : vector<64x64xf32>
    %117 = tpu.matmul %115, %116, %cst_36 {dimension_numbers = #tpu.dot_dimension_numbers<[1], [0], [0], [1], [0, 0, 1, 1], [], []>} : vector<64x64xf32>, vector<64x64xf32>, vector<64x64xf32> -> vector<64x64xf32>
    %cst_37 = arith.constant dense<0xFF800000> : vector<64xf32>
    %118 = vector.multi_reduction <maximumf>, %117, %cst_37 [1] : vector<64x64xf32> to vector<64xf32>
    %119 = vector.shape_cast %118 : vector<64xf32> to vector<64x1xf32>
    %120 = vector.broadcast %119 : vector<64x1xf32> to vector<64x64xf32>
    %121 = arith.subf %117, %120 : vector<64x64xf32>
    %122 = math.exp %121 : vector<64x64xf32>
    %cst_38 = arith.constant dense<0.000000e+00> : vector<64xf32>
    %123 = vector.multi_reduction <add>, %122, %cst_38 [1] : vector<64x64xf32> to vector<64xf32>
    %124 = vector.shape_cast %123 : vector<64xf32> to vector<64x1xf32>
    %125 = vector.extract_strided_slice %7 {offsets = [0, 448], sizes = [64, 64], strides = [1, 1]} : vector<64x512xf32> to vector<64x64xf32>
    %cst_39 = arith.constant dense<0.000000e+00> : vector<64x64xf32>
    %126 = tpu.matmul %122, %125, %cst_39 {dimension_numbers = #tpu.dot_dimension_numbers<[1], [0], [0], [1], [0, 0, 1, 1], [], []>} : vector<64x64xf32>, vector<64x64xf32>, vector<64x64xf32> -> vector<64x64xf32>
    %127 = tpu.reciprocal %124 : vector<64x1xf32> -> vector<64x1xf32>
    %128 = vector.broadcast %127 : vector<64x1xf32> to vector<64x64xf32>
    %129 = arith.mulf %126, %128 : vector<64x64xf32>
    %130 = tpu.concatenate %24, %39, %54, %69, %84, %99, %114, %129 in 1 : vector<64x64xf32>, vector<64x64xf32>, vector<64x64xf32>, vector<64x64xf32>, vector<64x64xf32>, vector<64x64xf32>, vector<64x64xf32>, vector<64x64xf32> -> vector<64x512xf32>
    %c0_40 = arith.constant 0 : index
    %c0_41 = arith.constant 0 : index
    %131 = vector.load %arg4[%c0_40, %c0_41] : memref<512x128xf32, #tpu.memory_space<vmem>>, vector<512x128xf32>
    %cst_42 = arith.constant dense<0.000000e+00> : vector<64x128xf32>
    %132 = tpu.matmul %130, %131, %cst_42 {dimension_numbers = #tpu.dot_dimension_numbers<[1], [0], [0], [1], [0, 0, 1, 1], [], []>} : vector<64x512xf32>, vector<512x128xf32>, vector<64x128xf32> -> vector<64x128xf32>
    %c0_43 = arith.constant 0 : index
    %c0_44 = arith.constant 0 : index
    %133 = vector.load %arg5[%c0_43, %c0_44] : memref<1x128xf32, #tpu.memory_space<vmem>>, vector<1x128xf32>
    %134 = vector.broadcast %133 : vector<1x128xf32> to vector<64x128xf32>
    %135 = arith.addf %132, %134 : vector<64x128xf32>
    %c0_45 = arith.constant 0 : index
    %c0_46 = arith.constant 0 : index
    %c0_47 = arith.constant 0 : index
    %136 = vector.load %arg6[%c0_45, %c0_46, %c0_47] : memref<1x64x128xf32, #tpu.memory_space<vmem>>, vector<1x64x128xf32>
    %137 = vector.shape_cast %136 : vector<1x64x128xf32> to vector<64x128xf32>
    %138 = vector.shape_cast %135 : vector<64x128xf32> to vector<1x64x128xf32>
    tpu.vector_store %arg6[%c0_45, %c0_46, %c0_47], %138 {strides = array<i32>} : memref<1x64x128xf32, #tpu.memory_space<vmem>>, vector<1x64x128xf32>,
    return
  }
  func.func @transform_0(%arg0: i32) -> (i32, i32, i32) {
    %c0_i32 = arith.constant 0 : i32
    %c0_i32_0 = arith.constant 0 : i32
    %c0_i32_1 = arith.constant 0 : i32
    return %arg0, %c0_i32, %c0_i32_0 : i32, i32, i32
  }
  func.func @transform_1(%arg0: i32) -> (i32, i32) {
    %c0_i32 = arith.constant 0 : i32
    %c0_i32_0 = arith.constant 0 : i32
    %c0_i32_1 = arith.constant 0 : i32
    return %c0_i32, %c0_i32_0 : i32, i32
  }
  func.func @transform_2(%arg0: i32) -> (i32, i32) {
    %c0_i32 = arith.constant 0 : i32
    %c0_i32_0 = arith.constant 0 : i32
    %c0_i32_1 = arith.constant 0 : i32
    return %c0_i32, %c0_i32_0 : i32, i32
  }
  func.func @transform_3(%arg0: i32) -> (i32, i32) {
    %c0_i32 = arith.constant 0 : i32
    %c0_i32_0 = arith.constant 0 : i32
    %c0_i32_1 = arith.constant 0 : i32
    return %c0_i32, %c0_i32_0 : i32, i32
  }
  func.func @transform_4(%arg0: i32) -> (i32, i32) {
    %c0_i32 = arith.constant 0 : i32
    %c0_i32_0 = arith.constant 0 : i32
    %c0_i32_1 = arith.constant 0 : i32
    return %c0_i32, %c0_i32_0 : i32, i32
  }
  func.func @transform_5(%arg0: i32) -> (i32, i32, i32) {
    %c0_i32 = arith.constant 0 : i32
    %c0_i32_0 = arith.constant 0 : i32
    %c0_i32_1 = arith.constant 0 : i32
    return %arg0, %c0_i32, %c0_i32_0 : i32, i32, i32
  }
}

</mosaic_0001>

<llo_original>
// kernel: tpu_custom_call.1
$region0: #{tpu_custom_call.1}
  #allocation0 [shape = 'u32[]', space=smem, size = 0x4, offset = 0x4, fixed_abs, tag = 'smem constant byte address 0x4 - core index']
  #allocation1 [shape = 'u32[144,128]{1,0:T(1,128)}', space=vmem, size = 0x12000, scoped, tag = 'internal scratch']
  %s0 = inlined_call_operand.hbm [shape: f32[2,64,128], index: 0, kind: input, shape index: {}]
  %s1 = inlined_call_operand.hbm [shape: f32[128,1024], index: 1, kind: input, shape index: {}]
  %s2 = inlined_call_operand.hbm [shape: f32[512,128], index: 2, kind: input, shape index: {}]
  %s3 = inlined_call_operand.hbm [shape: f32[512,128], index: 3, kind: input, shape index: {}]
  %s4 = inlined_call_operand.vmem [shape: f32[1,128], index: 4, kind: input, shape index: {}]
  %s5 = inlined_call_operand.hbm [shape: f32[2,64,128], index: 5, kind: output, shape index: {}]
  %s6 = sld [smem:[#allocation0]]
  $region69: #{tpu_custom_call.1} parent=0
    _
  %s8 = ssub.s32 1, %s6
  %s9 = scalar_select 0, %s8, %s6
  $region1: #{tpu_custom_call.1} parent=0
    #allocation2 [shape = 'u8[65536]{0}', space=vmem, size = 0x10000, scoped, tag = 'input window, operand 0']
    #allocation3 [shape = 's32[2]{0}', space=sflag, size = 0x8, scoped, tag = 'scoped memory for tpu_custom_call.1']
    #allocation4 [shape = 's32[2]{0}', space=sflag, size = 0x8, scoped, tag = 'scoped memory for tpu_custom_call.1']
    #allocation5 [shape = 'u8[524288]{0}', space=vmem, size = 0x80000, scoped, tag = 'input window, operand 1, single buffered']
    #allocation6 [shape = 's32[1]{0}', space=sflag, size = 0x4, scoped, tag = 'scoped memory for tpu_custom_call.1']
    #allocation7 [shape = 'u8[262144]{0}', space=vmem, size = 0x40000, scoped, tag = 'input window, operand 2, single buffered']
    #allocation8 [shape = 'u8[262144]{0}', space=vmem, size = 0x40000, scoped, tag = 'input window, operand 3, single buffered']
    #allocation9 [shape = 's32[1]{0}', space=sflag, size = 0x4, scoped, tag = 'scoped memory for tpu_custom_call.1']
    #allocation10 [shape = 'u8[65536]{0}', space=vmem, size = 0x10000, scoped, tag = 'output window, operand 0']
    %10 = vsyncpa [#allocation3], 0
    %s11 = scalar_lea.sflag [#allocation3], 1
    %12 = vsyncpa %s11, 0
    %13 = vsyncpa [#allocation6], 0
    %14 = vsyncpa [#allocation9], 0
    %15 = vsyncpa [#allocation4], 0
    %s16 = scalar_lea.sflag [#allocation4], 1
    %17 = vsyncpa %s16, 0
    loop: start=0, step=1, limit=4
    $region2: #{tpu_custom_call.1} parent=1 // loop_pre_header
      _
    $region3: #{tpu_custom_call.1} parent=1 // loop_header
      %s19 = sphi 0, %s23
      %p20 = scmp.ge.s32.totalorder %s19, 4
      %s29 = sphi 0, %s31
      %s32 = sphi 0, %s29
      %s33 = sphi 0, %s32
      %s49 = sphi 0, %s33
      %s53 = sphi 0, %s53
      %s55 = sphi 0, %s53
      %s56 = sphi 0, %s55
      %s70 = sphi 0, %s56
      %s74 = sphi 0, %s74
      %s76 = sphi 0, %s74
      %s77 = sphi 0, %s76
      %s91 = sphi 0, %s77
      %s95 = sphi 0, %s95
      %s97 = sphi 0, %s95
      %s98 = sphi 0, %s97
      %s112 = sphi 0, %s98
      %s116 = sphi 0, %s116
      %s118 = sphi 0, %s116
      %s119 = sphi 0, %s118
      %s133 = sphi 0, %s119
      %s139 = sphi 0, %s141
      %s142 = sphi 0, %s139
      %s143 = sphi 0, %s142
      %s159 = sphi 0, %s143
    $region4: #{tpu_custom_call.1} parent=1 // loop_header_branch
      %22 = sbr.rel (%p20) target = $region8
    $region5: #{tpu_custom_call.1} parent=1 // loop_body
      %s24 = ssub.s32 %s19, 1
      %s25 = ssub.s32 %s19, 2
      %s26 = sadd.s32 %s19, 1
      %s27 = ssub.s32 %s19, %s26
      %p28 = scmp.eq.s32.totalorder %s27, 0
      %s30 = sadd.s32 %s29, 1
      %s31 = scalar_select %p28, %s29, %s30
      %p34 = pneg %p28
      %p35 = scmp.eq.s32.totalorder %s19, 1
      %p36 = por %p34, %p35
      %p37 = scmp.ne.s32.totalorder %s29, %s32
      %p38 = scmp.eq.s32.totalorder %s19, 0
      %p39 = por %p37, %p38
      %p40 = scmp.ne.s32.totalorder %s29, %s32
      %p41 = scmp.eq.s32.totalorder %s24, 1
      %p42 = por %p40, %p41
      %p43 = scmp.ne.s32.totalorder %s32, %s33
      %p44 = scmp.eq.s32.totalorder %s24, 0
      %p45 = por %p43, %p44
      %p46 = scmp.ne.s32.totalorder %s32, %s33
      %p47 = scmp.eq.s32.totalorder %s25, 1
      %p48 = por %p46, %p47
      %p50 = scmp.ne.s32.totalorder %s33, %s49
      %p51 = scmp.eq.s32.totalorder %s25, 0
      %p52 = por %p50, %p51
      %s54 = sadd.s32 %s53, 1
      %p57 = scmp.eq.s32.totalorder %s19, 1
      %p58 = scmp.ne.s32.totalorder %s53, %s55
      %p59 = scmp.eq.s32.totalorder %s19, 0
      %p60 = por %p58, %p59
      %p61 = scmp.ne.s32.totalorder %s53, %s55
      %p62 = scmp.eq.s32.totalorder %s24, 1
      %p63 = por %p61, %p62
      %p64 = scmp.ne.s32.totalorder %s55, %s56
      %p65 = scmp.eq.s32.totalorder %s24, 0
      %p66 = por %p64, %p65
      %p67 = scmp.ne.s32.totalorder %s55, %s56
      %p68 = scmp.eq.s32.totalorder %s25, 1
      %p69 = por %p67, %p68
      %p71 = scmp.ne.s32.totalorder %s56, %s70
      %p72 = scmp.eq.s32.totalorder %s25, 0
      %p73 = por %p71, %p72
      %s75 = sadd.s32 %s74, 1
      %p78 = scmp.eq.s32.totalorder %s19, 1
      %p79 = scmp.ne.s32.totalorder %s74, %s76
      %p80 = scmp.eq.s32.totalorder %s19, 0
      %p81 = por %p79, %p80
      %p82 = scmp.ne.s32.totalorder %s74, %s76
      %p83 = scmp.eq.s32.totalorder %s24, 1
      %p84 = por %p82, %p83
      %p85 = scmp.ne.s32.totalorder %s76, %s77
      %p86 = scmp.eq.s32.totalorder %s24, 0
      %p87 = por %p85, %p86
      %p88 = scmp.ne.s32.totalorder %s76, %s77
      %p89 = scmp.eq.s32.totalorder %s25, 1
      %p90 = por %p88, %p89
      %p92 = scmp.ne.s32.totalorder %s77, %s91
      %p93 = scmp.eq.s32.totalorder %s25, 0
      %p94 = por %p92, %p93
      %s96 = sadd.s32 %s95, 1
      %p99 = scmp.eq.s32.totalorder %s19, 1
      %p100 = scmp.ne.s32.totalorder %s95, %s97
      %p101 = scmp.eq.s32.totalorder %s19, 0
      %p102 = por %p100, %p101
      %p103 = scmp.ne.s32.totalorder %s95, %s97
      %p104 = scmp.eq.s32.totalorder %s24, 1
      %p105 = por %p103, %p104
      %p106 = scmp.ne.s32.totalorder %s97, %s98
      %p107 = scmp.eq.s32.totalorder %s24, 0
      %p108 = por %p106, %p107
      %p109 = scmp.ne.s32.totalorder %s97, %s98
      %p110 = scmp.eq.s32.totalorder %s25, 1
      %p111 = por %p109, %p110
      %p113 = scmp.ne.s32.totalorder %s98, %s112
      %p114 = scmp.eq.s32.totalorder %s25, 0
      %p115 = por %p113, %p114
      %s117 = sadd.s32 %s116, 1
      %p120 = scmp.eq.s32.totalorder %s19, 1
      %p121 = scmp.ne.s32.totalorder %s116, %s118
      %p122 = scmp.eq.s32.totalorder %s19, 0
      %p123 = por %p121, %p122
      %p124 = scmp.ne.s32.totalorder %s116, %s118
      %p125 = scmp.eq.s32.totalorder %s24, 1
      %p126 = por %p124, %p125
      %p127 = scmp.ne.s32.totalorder %s118, %s119
      %p128 = scmp.eq.s32.totalorder %s24, 0
      %p129 = por %p127, %p128
      %p130 = scmp.ne.s32.totalorder %s118, %s119
      %p131 = scmp.eq.s32.totalorder %s25, 1
      %p132 = por %p130, %p131
      %p134 = scmp.ne.s32.totalorder %s119, %s133
      %p135 = scmp.eq.s32.totalorder %s25, 0
      %p136 = por %p134, %p135
      %s137 = ssub.s32 %s19, %s26
      %p138 = scmp.eq.s32.totalorder %s137, 0
      %s140 = sadd.s32 %s139, 1
      %s141 = scalar_select %p138, %s139, %s140
      %p144 = pneg %p138
      %p145 = scmp.eq.s32.totalorder %s19, 1
      %p146 = por %p144, %p145
      %p147 = scmp.ne.s32.totalorder %s139, %s142
      %p148 = scmp.eq.s32.totalorder %s19, 0
      %p149 = por %p147, %p148
      %p150 = scmp.ne.s32.totalorder %s139, %s142
      %p151 = scmp.eq.s32.totalorder %s24, 1
      %p152 = por %p150, %p151
      %p153 = scmp.ne.s32.totalorder %s142, %s143
      %p154 = scmp.eq.s32.totalorder %s24, 0
      %p155 = por %p153, %p154
      %p156 = scmp.ne.s32.totalorder %s142, %s143
      %p157 = scmp.eq.s32.totalorder %s25, 1
      %p158 = por %p156, %p157
      %p160 = scmp.ne.s32.totalorder %s143, %s159
      %p161 = scmp.eq.s32.totalorder %s25, 0
      %p162 = por %p160, %p161
      %p163 = scmp.le.s32.totalorder 1, %s19
      %p164 = scmp.lt.s32.totalorder %s19, 3
      %p165 = pnand %p163, %p164
      %p166 = pneg %p165
      // Predicated region
      $region9: #{tpu_custom_call.1} parent=5 // pred_check
        _
      $region10: #{tpu_custom_call.1} parent=5 // pred_check_branch
        %168 = sbr.rel (%p165) target = $region12
      $region11: #{tpu_custom_call.1} parent=5 // pred_region
        %s169 = ssub.s32 %s19, 1
        // Predicated region
        $region13: #{tpu_custom_call.1} parent=11 // pred_check
          %p170 = pneg %p66
        $region14: #{tpu_custom_call.1} parent=11 // pred_check_branch
          %172 = sbr.rel (%p170) target = $region16
        $region15: #{tpu_custom_call.1} parent=11 // pred_region
          %s174 = ssub.s32 16384, 16384
          %175 = vsyncadd [#allocation6], %s174
          %s176 = sshll.u32 [#allocation5], 4
          %s177 = int_to_ptr.vmem [resolvable:$true] %s176
          %182 = dma.hbm_to_vmem [thread:$0]  %s1, 16384, %s177, [#allocation6], 1024, 1024, 64
        $region16: #{tpu_custom_call.1} parent=11 // pred_fallthru
          _
        // Predicated region
        $region17: #{tpu_custom_call.1} parent=11 // pred_check
          %p183 = pneg %p87
        $region18: #{tpu_custom_call.1} parent=11 // pred_check_branch
          %185 = sbr.rel (%p183) target = $region20
        $region19: #{tpu_custom_call.1} parent=11 // pred_region
          %s187 = ssub.s32 8192, 8192
          %188 = vsyncadd [#allocation6], %s187
          %s189 = sshll.u32 [#allocation7], 4
          %s190 = int_to_ptr.vmem [resolvable:$true] %s189
          %195 = dma.hbm_to_vmem [thread:$0]  %s2, 8192, %s190, [#allocation6], 128, 128, 8
        $region20: #{tpu_custom_call.1} parent=11 // pred_fallthru
          _
        // Predicated region
        $region21: #{tpu_custom_call.1} parent=11 // pred_check
          %p196 = pneg %p108
        $region22: #{tpu_custom_call.1} parent=11 // pred_check_branch
          %198 = sbr.rel (%p196) target = $region24
        $region23: #{tpu_custom_call.1} parent=11 // pred_region
          %s200 = ssub.s32 8192, 8192
          %201 = vsyncadd [#allocation9], %s200
          %s202 = sshll.u32 [#allocation8], 4
          %s203 = int_to_ptr.vmem [resolvable:$true] %s202
          %208 = dma.hbm_to_vmem [thread:$0]  %s3, 8192, %s203, [#allocation9], 128, 128, 8
        $region24: #{tpu_custom_call.1} parent=11 // pred_fallthru
          _
        // Predicated region
        $region25: #{tpu_custom_call.1} parent=11 // pred_check
          %p209 = pneg %p129
        $region26: #{tpu_custom_call.1} parent=11 // pred_check_branch
          %211 = sbr.rel (%p209) target = $region28
        $region27: #{tpu_custom_call.1} parent=11 // pred_region
          _
        $region28: #{tpu_custom_call.1} parent=11 // pred_fallthru
          _
      $region12: #{tpu_custom_call.1} parent=5 // pred_fallthru
        _
      %p212 = scmp.lt.s32.totalorder %s19, 2
      // Predicated region
      $region29: #{tpu_custom_call.1} parent=5 // pred_check
        %p213 = pneg %p212
      $region30: #{tpu_custom_call.1} parent=5 // pred_check_branch
        %215 = sbr.rel (%p213) target = $region32
      $region31: #{tpu_custom_call.1} parent=5 // pred_region
        // Predicated region
        $region33: #{tpu_custom_call.1} parent=31 // pred_check
          %p216 = pneg %p39
        $region34: #{tpu_custom_call.1} parent=31 // pred_check_branch
          %218 = sbr.rel (%p216) target = $region36
        $region35: #{tpu_custom_call.1} parent=31 // pred_region
          %s219 = sand.u32 %s29, 1
          %s220 = scalar_lea.sflag [#allocation3], %s219
          %s221 = sand.u32 %s29, 1
          %s222 = smul.addr %s221, 64
          %s223 = scalar_lea.vmem [#allocation2], %s222
          %s225 = ssub.s32 1024, 1024
          %226 = vsyncadd %s220, %s225
          %s227 = smul.addr %s19, 8
          %s228 = smul.addr %s227, 128
          %s229 = scalar_lea.hbm %s0, %s228
          %s230 = sshll.u32 %s223, 4
          %s231 = int_to_ptr.vmem [resolvable:$true] %s230
          %236 = dma.hbm_to_vmem [thread:$0]  %s229, 1024, %s231, %s220, 128, 128, 8
        $region36: #{tpu_custom_call.1} parent=31 // pred_fallthru
          _
      $region32: #{tpu_custom_call.1} parent=5 // pred_fallthru
        _
      %p237 = scmp.le.s32.totalorder 1, %s19
      %p238 = scmp.lt.s32.totalorder %s19, 3
      %p239 = pnand %p237, %p238
      %p240 = pneg %p239
      // Predicated region
      $region37: #{tpu_custom_call.1} parent=5 // pred_check
        _
      $region38: #{tpu_custom_call.1} parent=5 // pred_check_branch
        %242 = sbr.rel (%p239) target = $region40
      $region39: #{tpu_custom_call.1} parent=5 // pred_region
        %s243 = ssub.s32 %s19, 1
        %s244 = sand.u32 %s32, 1
        %s245 = scalar_lea.sflag [#allocation3], %s244
        %s246 = sand.u32 %s32, 1
        %s247 = smul.addr %s246, 64
        %s248 = scalar_lea.vmem [#allocation2], %s247
        // Predicated region
        $region41: #{tpu_custom_call.1} parent=39 // pred_check
          %p249 = pneg %p45
        $region42: #{tpu_custom_call.1} parent=39 // pred_check_branch
          %251 = sbr.rel (%p249) target = $region44
        $region43: #{tpu_custom_call.1} parent=39 // pred_region
          %252 = dma.done %s245, 1024
        $region44: #{tpu_custom_call.1} parent=39 // pred_fallthru
          _
        // Predicated region
        $region45: #{tpu_custom_call.1} parent=39 // pred_check
          %p253 = pneg %p66
        $region46: #{tpu_custom_call.1} parent=39 // pred_check_branch
          %255 = sbr.rel (%p253) target = $region48
        $region47: #{tpu_custom_call.1} parent=39 // pred_region
          %256 = dma.done [#allocation6], 16384
        $region48: #{tpu_custom_call.1} parent=39 // pred_fallthru
          _
        // Predicated region
        $region49: #{tpu_custom_call.1} parent=39 // pred_check
          %p257 = pneg %p87
        $region50: #{tpu_custom_call.1} parent=39 // pred_check_branch
          %259 = sbr.rel (%p257) target = $region52
        $region51: #{tpu_custom_call.1} parent=39 // pred_region
          %260 = dma.done [#allocation6], 8192
        $region52: #{tpu_custom_call.1} parent=39 // pred_fallthru
          _
        // Predicated region
        $region53: #{tpu_custom_call.1} parent=39 // pred_check
          %p261 = pneg %p108
        $region54: #{tpu_custom_call.1} parent=39 // pred_check_branch
          %263 = sbr.rel (%p261) target = $region56
        $region55: #{tpu_custom_call.1} parent=39 // pred_region
          %264 = dma.done [#allocation9], 8192
        $region56: #{tpu_custom_call.1} parent=39 // pred_fallthru
          _
        %s265 = sand.u32 %s32, 1
        %s266 = scalar_lea.sflag [#allocation3], %s265
        %s267 = sand.u32 %s32, 1
        %s268 = smul.addr %s267, 64
        %s269 = scalar_lea.vmem [#allocation2], %s268
        %p270 = pneg %p45
        %p271 = pneg %p42
        %p272 = pneg %p66
        %p273 = pneg %p63
        %p274 = pneg %p87
        %p275 = pneg %p84
        %p276 = pneg %p108
        %p277 = pneg %p105
        %p278 = pneg %p129
        %p279 = pneg %p126
        %p280 = pneg %p155
        %p281 = pneg %p152
        %s282 = sand.u32 %s142, 1
        %s283 = scalar_lea.sflag [#allocation4], %s282
        %s284 = sand.u32 %s142, 1
        %s285 = smul.addr %s284, 64
        %s286 = scalar_lea.vmem [#allocation10], %s285
        %v287 = vld [vmem:[%s248] sm:$0xff]
        %v288 = vld [vmem:[%s248 + $0x8] sm:$0xff]
        %v289 = vld [vmem:[%s248 + $0x10] sm:$0xff]
        %v290 = vld [vmem:[%s248 + $0x18] sm:$0xff]
        %v291 = vld [vmem:[%s248 + $0x20] sm:$0xff]
        %v292 = vld [vmem:[%s248 + $0x28] sm:$0xff]
        %v293 = vld [vmem:[%s248 + $0x30] sm:$0xff]
        %v294 = vld [vmem:[%s248 + $0x38] sm:$0xff]
        %v295 = vld [vmem:[#allocation5] sm:$0xff]
        %v296 = vld [vmem:[#allocation5 + $0x8] sm:$0xff]
        %v297 = vld [vmem:[#allocation5 + $0x10] sm:$0xff]
        %v298 = vld [vmem:[#allocation5 + $0x18] sm:$0xff]
        %v299 = vld [vmem:[#allocation5 + $0x20] sm:$0xff]
        %v300 = vld [vmem:[#allocation5 + $0x28] sm:$0xff]
        %v301 = vld [vmem:[#allocation5 + $0x30] sm:$0xff]
        %v302 = vld [vmem:[#allocation5 + $0x38] sm:$0xff]
        %v303 = vld [vmem:[#allocation5 + $0x40] sm:$0xff]
        %v304 = vld [vmem:[#allocation5 + $0x48] sm:$0xff]
        %v305 = vld [vmem:[#allocation5 + $0x50] sm:$0xff]
        %v306 = vld [vmem:[#allocation5 + $0x58] sm:$0xff]
        %v307 = vld [vmem:[#allocation5 + $0x60] sm:$0xff]
        %v308 = vld [vmem:[#allocation5 + $0x68] sm:$0xff]
        %v309 = vld [vmem:[#allocation5 + $0x70] sm:$0xff]
        %v310 = vld [vmem:[#allocation5 + $0x78] sm:$0xff]
        %v311 = vld [vmem:[#allocation5 + $0x80] sm:$0xff]
        %v312 = vld [vmem:[#allocation5 + $0x88] sm:$0xff]
        %v313 = vld [vmem:[#allocation5 + $0x90] sm:$0xff]
        %v314 = vld [vmem:[#allocation5 + $0x98] sm:$0xff]
        %v315 = vld [vmem:[#allocation5 + $0xa0] sm:$0xff]
        %v316 = vld [vmem:[#allocation5 + $0xa8] sm:$0xff]
        %v317 = vld [vmem:[#allocation5 + $0xb0] sm:$0xff]
        %v318 = vld [vmem:[#allocation5 + $0xb8] sm:$0xff]
        %v319 = vld [vmem:[#allocation5 + $0xc0] sm:$0xff]
        %v320 = vld [vmem:[#allocation5 + $0xc8] sm:$0xff]
        %v321 = vld [vmem:[#allocation5 + $0xd0] sm:$0xff]
        %v322 = vld [vmem:[#allocation5 + $0xd8] sm:$0xff]
        %v323 = vld [vmem:[#allocation5 + $0xe0] sm:$0xff]
        %v324 = vld [vmem:[#allocation5 + $0xe8] sm:$0xff]
        %v325 = vld [vmem:[#allocation5 + $0xf0] sm:$0xff]
        %v326 = vld [vmem:[#allocation5 + $0xf8] sm:$0xff]
        %v327 = vld [vmem:[#allocation5 + $0x100] sm:$0xff]
        %v328 = vld [vmem:[#allocation5 + $0x108] sm:$0xff]
        %v329 = vld [vmem:[#allocation5 + $0x110] sm:$0xff]
        %v330 = vld [vmem:[#allocation5 + $0x118] sm:$0xff]
        %v331 = vld [vmem:[#allocation5 + $0x120] sm:$0xff]
        %v332 = vld [vmem:[#allocation5 + $0x128] sm:$0xff]
        %v333 = vld [vmem:[#allocation5 + $0x130] sm:$0xff]
        %v334 = vld [vmem:[#allocation5 + $0x138] sm:$0xff]
        %v335 = vld [vmem:[#allocation5 + $0x140] sm:$0xff]
        %v336 = vld [vmem:[#allocation5 + $0x148] sm:$0xff]
        %v337 = vld [vmem:[#allocation5 + $0x150] sm:$0xff]
        %v338 = vld [vmem:[#allocation5 + $0x158] sm:$0xff]
        %v339 = vld [vmem:[#allocation5 + $0x160] sm:$0xff]
        %v340 = vld [vmem:[#allocation5 + $0x168] sm:$0xff]
        %v341 = vld [vmem:[#allocation5 + $0x170] sm:$0xff]
        %v342 = vld [vmem:[#allocation5 + $0x178] sm:$0xff]
        %v343 = vld [vmem:[#allocation5 + $0x180] sm:$0xff]
        %v344 = vld [vmem:[#allocation5 + $0x188] sm:$0xff]
        %v345 = vld [vmem:[#allocation5 + $0x190] sm:$0xff]
        %v346 = vld [vmem:[#allocation5 + $0x198] sm:$0xff]
        %v347 = vld [vmem:[#allocation5 + $0x1a0] sm:$0xff]
        %v348 = vld [vmem:[#allocation5 + $0x1a8] sm:$0xff]
        %v349 = vld [vmem:[#allocation5 + $0x1b0] sm:$0xff]
        %v350 = vld [vmem:[#allocation5 + $0x1b8] sm:$0xff]
        %v351 = vld [vmem:[#allocation5 + $0x1c0] sm:$0xff]
        %v352 = vld [vmem:[#allocation5 + $0x1c8] sm:$0xff]
        %v353 = vld [vmem:[#allocation5 + $0x1d0] sm:$0xff]
        %v354 = vld [vmem:[#allocation5 + $0x1d8] sm:$0xff]
        %v355 = vld [vmem:[#allocation5 + $0x1e0] sm:$0xff]
        %v356 = vld [vmem:[#allocation5 + $0x1e8] sm:$0xff]
        %v357 = vld [vmem:[#allocation5 + $0x1f0] sm:$0xff]
        %v358 = vld [vmem:[#allocation5 + $0x1f8] sm:$0xff]
        %v359 = vld [vmem:[#allocation5 + $0x200] sm:$0xff]
        %v360 = vld [vmem:[#allocation5 + $0x208] sm:$0xff]
        %v361 = vld [vmem:[#allocation5 + $0x210] sm:$0xff]
        %v362 = vld [vmem:[#allocation5 + $0x218] sm:$0xff]
        %v363 = vld [vmem:[#allocation5 + $0x220] sm:$0xff]
        %v364 = vld [vmem:[#allocation5 + $0x228] sm:$0xff]
        %v365 = vld [vmem:[#allocation5 + $0x230] sm:$0xff]
        %v366 = vld [vmem:[#allocation5 + $0x238] sm:$0xff]
        %v367 = vld [vmem:[#allocation5 + $0x240] sm:$0xff]
        %v368 = vld [vmem:[#allocation5 + $0x248] sm:$0xff]
        %v369 = vld [vmem:[#allocation5 + $0x250] sm:$0xff]
        %v370 = vld [vmem:[#allocation5 + $0x258] sm:$0xff]
        %v371 = vld [vmem:[#allocation5 + $0x260] sm:$0xff]
        %v372 = vld [vmem:[#allocation5 + $0x268] sm:$0xff]
        %v373 = vld [vmem:[#allocation5 + $0x270] sm:$0xff]
        %v374 = vld [vmem:[#allocation5 + $0x278] sm:$0xff]
        %v375 = vld [vmem:[#allocation5 + $0x280] sm:$0xff]
        %v376 = vld [vmem:[#allocation5 + $0x288] sm:$0xff]
        %v377 = vld [vmem:[#allocation5 + $0x290] sm:$0xff]
        %v378 = vld [vmem:[#allocation5 + $0x298] sm:$0xff]
        %v379 = vld [vmem:[#allocation5 + $0x2a0] sm:$0xff]
        %v380 = vld [vmem:[#allocation5 + $0x2a8] sm:$0xff]
        %v381 = vld [vmem:[#allocation5 + $0x2b0] sm:$0xff]
        %v382 = vld [vmem:[#allocation5 + $0x2b8] sm:$0xff]
        %v383 = vld [vmem:[#allocation5 + $0x2c0] sm:$0xff]
        %v384 = vld [vmem:[#allocation5 + $0x2c8] sm:$0xff]
        %v385 = vld [vmem:[#allocation5 + $0x2d0] sm:$0xff]
        %v386 = vld [vmem:[#allocation5 + $0x2d8] sm:$0xff]
        %v387 = vld [vmem:[#allocation5 + $0x2e0] sm:$0xff]
        %v388 = vld [vmem:[#allocation5 + $0x2e8] sm:$0xff]
        %v389 = vld [vmem:[#allocation5 + $0x2f0] sm:$0xff]
        %v390 = vld [vmem:[#allocation5 + $0x2f8] sm:$0xff]
        %v391 = vld [vmem:[#allocation5 + $0x300] sm:$0xff]
        %v392 = vld [vmem:[#allocation5 + $0x308] sm:$0xff]
        %v393 = vld [vmem:[#allocation5 + $0x310] sm:$0xff]
        %v394 = vld [vmem:[#allocation5 + $0x318] sm:$0xff]
        %v395 = vld [vmem:[#allocation5 + $0x320] sm:$0xff]
        %v396 = vld [vmem:[#allocation5 + $0x328] sm:$0xff]
        %v397 = vld [vmem:[#allocation5 + $0x330] sm:$0xff]
        %v398 = vld [vmem:[#allocation5 + $0x338] sm:$0xff]
        %v399 = vld [vmem:[#allocation5 + $0x340] sm:$0xff]
        %v400 = vld [vmem:[#allocation5 + $0x348] sm:$0xff]
        %v401 = vld [vmem:[#allocation5 + $0x350] sm:$0xff]
        %v402 = vld [vmem:[#allocation5 + $0x358] sm:$0xff]
        %v403 = vld [vmem:[#allocation5 + $0x360] sm:$0xff]
        %v404 = vld [vmem:[#allocation5 + $0x368] sm:$0xff]
        %v405 = vld [vmem:[#allocation5 + $0x370] sm:$0xff]
        %v406 = vld [vmem:[#allocation5 + $0x378] sm:$0xff]
        %v407 = vld [vmem:[#allocation5 + $0x380] sm:$0xff]
        %v408 = vld [vmem:[#allocation5 + $0x388] sm:$0xff]
        %v409 = vld [vmem:[#allocation5 + $0x390] sm:$0xff]
        %v410 = vld [vmem:[#allocation5 + $0x398] sm:$0xff]
        %v411 = vld [vmem:[#allocation5 + $0x3a0] sm:$0xff]
        %v412 = vld [vmem:[#allocation5 + $0x3a8] sm:$0xff]
        %v413 = vld [vmem:[#allocation5 + $0x3b0] sm:$0xff]
        %v414 = vld [vmem:[#allocation5 + $0x3b8] sm:$0xff]
        %v415 = vld [vmem:[#allocation5 + $0x3c0] sm:$0xff]
        %v416 = vld [vmem:[#allocation5 + $0x3c8] sm:$0xff]
        %v417 = vld [vmem:[#allocation5 + $0x3d0] sm:$0xff]
        %v418 = vld [vmem:[#allocation5 + $0x3d8] sm:$0xff]
        %v419 = vld [vmem:[#allocation5 + $0x3e0] sm:$0xff]
        %v420 = vld [vmem:[#allocation5 + $0x3e8] sm:$0xff]
        %v421 = vld [vmem:[#allocation5 + $0x3f0] sm:$0xff]
        %v422 = vld [vmem:[#allocation5 + $0x3f8] sm:$0xff]
        %423 = vmatprep.subr.mxu0 %v416
        %424 = vmatpush1.msra.mxu0 %v415
        %425 = vmatprep.subr.mxu0 %v408
        %426 = vmatpush1.msra.mxu0 %v407
        %427 = vmatprep.subr.mxu0 %v400
        %428 = vmatpush1.msra.mxu0 %v399
        %429 = vmatprep.subr.mxu0 %v392
        %430 = vmatpush1.msra.mxu0 %v391
        %431 = vmatprep.subr.mxu0 %v384
        %432 = vmatpush1.msra.mxu0 %v383
        %433 = vmatprep.subr.mxu0 %v376
        %434 = vmatpush1.msra.mxu0 %v375
        %435 = vmatprep.subr.mxu0 %v368
        %436 = vmatpush1.msra.mxu0 %v367
        %437 = vmatprep.subr.mxu0 %v360
        %438 = vmatpush1.msra.mxu0 %v359
        %439 = vmatprep.subr.mxu0 %v352
        %440 = vmatpush1.msra.mxu0 %v351
        %441 = vmatprep.subr.mxu0 %v344
        %442 = vmatpush1.msra.mxu0 %v343
        %443 = vmatprep.subr.mxu0 %v336
        %444 = vmatpush1.msra.mxu0 %v335
        %445 = vmatprep.subr.mxu0 %v328
        %446 = vmatpush1.msra.mxu0 %v327
        %447 = vmatprep.subr.mxu0 %v320
        %448 = vmatpush1.msra.mxu0 %v319
        %449 = vmatprep.subr.mxu0 %v312
        %450 = vmatpush1.msra.mxu0 %v311
        %451 = vmatprep.subr.mxu0 %v304
        %452 = vmatpush1.msra.mxu0 %v303
        %453 = vmatprep.subr.mxu0 %v296
        %454 = vmatpush1.msra.mxu0 %v295
        %455 = vmatprep.subr.mxu0 0.0
        %456 = vmatpush2.msra.mxu0 0.0
        %457 = vmatprep.subr.mxu0 0.0
        %458 = vmatpush2.msra.mxu0 0.0
        %459 = vmatprep.subr.mxu0 0.0
        %460 = vmatpush2.msra.mxu0 0.0
        %461 = vmatprep.subr.mxu0 0.0
        %462 = vmatpush2.msra.mxu0 0.0
        %463 = vmatprep.subr.mxu0 0.0
        %464 = vmatpush2.msra.mxu0 0.0
        %465 = vmatprep.subr.mxu0 0.0
        %466 = vmatpush2.msra.mxu0 0.0
        %467 = vmatprep.subr.mxu0 0.0
        %468 = vmatpush2.msra.mxu0 0.0
        %469 = vmatprep.subr.mxu0 0.0
        %470 = vmatpush2.msra.mxu0 0.0
        %471 = vmatprep.subr.mxu0 0.0
        %472 = vmatpush2.msra.mxu0 0.0
        %473 = vmatprep.subr.mxu0 0.0
        %474 = vmatpush2.msra.mxu0 0.0
        %475 = vmatprep.subr.mxu0 0.0
        %476 = vmatpush2.msra.mxu0 0.0
        %477 = vmatprep.subr.mxu0 0.0
        %478 = vmatpush2.msra.mxu0 0.0
        %479 = vmatprep.subr.mxu0 0.0
        %480 = vmatpush2.msra.mxu0 0.0
        %481 = vmatprep.subr.mxu0 0.0
        %482 = vmatpush2.msra.mxu0 0.0
        %483 = vmatprep.subr.mxu0 0.0
        %484 = vmatpush2.msra.mxu0 0.0
        %485 = vmatprep.subr.mxu0 0.0
        %486 = vmatpush2.msra.mxu0 0.0
        %487 = vmatprep.mubr.f32.mxu0 0.0
        %488 = vmatmul.mubr.f32.gmra.mxu0 %v287
        %v489 = vpop.f32.mrf.mxu0
        %v490 = vadd.f32 0.0, %v489
        %v491 = vpop.f32.mrf.mxu0
        %v492 = vadd.f32 0.0, %v491
        %493 = vmatprep.mubr.f32.mxu0 0.0
        %494 = vmatmul.mubr.f32.gmra.mxu0 %v288
        %v495 = vpop.f32.mrf.mxu0
        %v496 = vadd.f32 0.0, %v495
        %v497 = vpop.f32.mrf.mxu0
        %v498 = vadd.f32 0.0, %v497
        %499 = vmatprep.mubr.f32.mxu0 0.0
        %500 = vmatmul.mubr.f32.gmra.mxu0 %v289
        %v501 = vpop.f32.mrf.mxu0
        %v502 = vadd.f32 0.0, %v501
        %v503 = vpop.f32.mrf.mxu0
        %v504 = vadd.f32 0.0, %v503
        %505 = vmatprep.mubr.f32.mxu0 0.0
        %506 = vmatmul.mubr.f32.gmra.mxu0 %v290
        %v507 = vpop.f32.mrf.mxu0
        %v508 = vadd.f32 0.0, %v507
        %v509 = vpop.f32.mrf.mxu0
        %v510 = vadd.f32 0.0, %v509
        %511 = vmatprep.mubr.f32.mxu0 0.0
        %512 = vmatmul.mubr.f32.gmra.mxu0 %v291
        %v513 = vpop.f32.mrf.mxu0
        %v514 = vadd.f32 0.0, %v513
        %v515 = vpop.f32.mrf.mxu0
        %v516 = vadd.f32 0.0, %v515
        %517 = vmatprep.mubr.f32.mxu0 0.0
        %518 = vmatmul.mubr.f32.gmra.mxu0 %v292
        %v519 = vpop.f32.mrf.mxu0
        %v520 = vadd.f32 0.0, %v519
        %v521 = vpop.f32.mrf.mxu0
        %v522 = vadd.f32 0.0, %v521
        %523 = vmatprep.mubr.f32.mxu0 0.0
        %524 = vmatmul.mubr.f32.gmra.mxu0 %v293
        %v525 = vpop.f32.mrf.mxu0
        %v526 = vadd.f32 0.0, %v525
        %v527 = vpop.f32.mrf.mxu0
        %v528 = vadd.f32 0.0, %v527
        %529 = vmatprep.mubr.f32.mxu0 0.0
        %530 = vmatmul.mubr.f32.gmra.mxu0 %v294
        %v531 = vpop.f32.mrf.mxu0
        %v532 = vadd.f32 0.0, %v531
        %v533 = vpop.f32.mrf.mxu0
        %v534 = vadd.f32 0.0, %v533
        %535 = vdwg.mxu0
        %536 = vmatprep.subr.mxu0 %v418
        %537 = vmatpush1.msra.mxu0 %v417
        %538 = vmatprep.subr.mxu0 %v410
        %539 = vmatpush1.msra.mxu0 %v409
        %540 = vmatprep.subr.mxu0 %v402
        %541 = vmatpush1.msra.mxu0 %v401
        %542 = vmatprep.subr.mxu0 %v394
        %543 = vmatpush1.msra.mxu0 %v393
        %544 = vmatprep.subr.mxu0 %v386
        %545 = vmatpush1.msra.mxu0 %v385
        %546 = vmatprep.subr.mxu0 %v378
        %547 = vmatpush1.msra.mxu0 %v377
        %548 = vmatprep.subr.mxu0 %v370
        %549 = vmatpush1.msra.mxu0 %v369
        %550 = vmatprep.subr.mxu0 %v362
        %551 = vmatpush1.msra.mxu0 %v361
        %552 = vmatprep.subr.mxu0 %v354
        %553 = vmatpush1.msra.mxu0 %v353
        %554 = vmatprep.subr.mxu0 %v346
        %555 = vmatpush1.msra.mxu0 %v345
        %556 = vmatprep.subr.mxu0 %v338
        %557 = vmatpush1.msra.mxu0 %v337
        %558 = vmatprep.subr.mxu0 %v330
        %559 = vmatpush1.msra.mxu0 %v329
        %560 = vmatprep.subr.mxu0 %v322
        %561 = vmatpush1.msra.mxu0 %v321
        %562 = vmatprep.subr.mxu0 %v314
        %563 = vmatpush1.msra.mxu0 %v313
        %564 = vmatprep.subr.mxu0 %v306
        %565 = vmatpush1.msra.mxu0 %v305
        %566 = vmatprep.subr.mxu0 %v298
        %567 = vmatpush1.msra.mxu0 %v297
        %568 = vmatprep.subr.mxu0 0.0
        %569 = vmatpush2.msra.mxu0 0.0
        %570 = vmatprep.subr.mxu0 0.0
        %571 = vmatpush2.msra.mxu0 0.0
        %572 = vmatprep.subr.mxu0 0.0
        %573 = vmatpush2.msra.mxu0 0.0
        %574 = vmatprep.subr.mxu0 0.0
        %575 = vmatpush2.msra.mxu0 0.0
        %576 = vmatprep.subr.mxu0 0.0
        %577 = vmatpush2.msra.mxu0 0.0
        %578 = vmatprep.subr.mxu0 0.0
        %579 = vmatpush2.msra.mxu0 0.0
        %580 = vmatprep.subr.mxu0 0.0
        %581 = vmatpush2.msra.mxu0 0.0
        %582 = vmatprep.subr.mxu0 0.0
        %583 = vmatpush2.msra.mxu0 0.0
        %584 = vmatprep.subr.mxu0 0.0
        %585 = vmatpush2.msra.mxu0 0.0
        %586 = vmatprep.subr.mxu0 0.0
        %587 = vmatpush2.msra.mxu0 0.0
        %588 = vmatprep.subr.mxu0 0.0
        %589 = vmatpush2.msra.mxu0 0.0
        %590 = vmatprep.subr.mxu0 0.0
        %591 = vmatpush2.msra.mxu0 0.0
        %592 = vmatprep.subr.mxu0 0.0
        %593 = vmatpush2.msra.mxu0 0.0
        %594 = vmatprep.subr.mxu0 0.0
        %595 = vmatpush2.msra.mxu0 0.0
        %596 = vmatprep.subr.mxu0 0.0
        %597 = vmatpush2.msra.mxu0 0.0
        %598 = vmatprep.subr.mxu0 0.0
        %599 = vmatpush2.msra.mxu0 0.0
        %600 = vmatprep.mubr.f32.mxu0 0.0
        %601 = vmatmul.mubr.f32.gmra.mxu0 %v287
        %v602 = vpop.f32.mrf.mxu0
        %v603 = vadd.f32 0.0, %v602
        %v604 = vpop.f32.mrf.mxu0
        %v605 = vadd.f32 0.0, %v604
        %606 = vmatprep.mubr.f32.mxu0 0.0
        %607 = vmatmul.mubr.f32.gmra.mxu0 %v288
        %v608 = vpop.f32.mrf.mxu0
        %v609 = vadd.f32 0.0, %v608
        %v610 = vpop.f32.mrf.mxu0
        %v611 = vadd.f32 0.0, %v610
        %612 = vmatprep.mubr.f32.mxu0 0.0
        %613 = vmatmul.mubr.f32.gmra.mxu0 %v289
        %v614 = vpop.f32.mrf.mxu0
        %v615 = vadd.f32 0.0, %v614
        %v616 = vpop.f32.mrf.mxu0
        %v617 = vadd.f32 0.0, %v616
        %618 = vmatprep.mubr.f32.mxu0 0.0
        %619 = vmatmul.mubr.f32.gmra.mxu0 %v290
        %v620 = vpop.f32.mrf.mxu0
        %v621 = vadd.f32 0.0, %v620
        %v622 = vpop.f32.mrf.mxu0
        %v623 = vadd.f32 0.0, %v622
        %624 = vmatprep.mubr.f32.mxu0 0.0
        %625 = vmatmul.mubr.f32.gmra.mxu0 %v291
        %v626 = vpop.f32.mrf.mxu0
        %v627 = vadd.f32 0.0, %v626
        %v628 = vpop.f32.mrf.mxu0
        %v629 = vadd.f32 0.0, %v628
        %630 = vmatprep.mubr.f32.mxu0 0.0
        %631 = vmatmul.mubr.f32.gmra.mxu0 %v292
        %v632 = vpop.f32.mrf.mxu0
        %v633 = vadd.f32 0.0, %v632
        %v634 = vpop.f32.mrf.mxu0
        %v635 = vadd.f32 0.0, %v634
        %636 = vmatprep.mubr.f32.mxu0 0.0
        %637 = vmatmul.mubr.f32.gmra.mxu0 %v293
        %v638 = vpop.f32.mrf.mxu0
        %v639 = vadd.f32 0.0, %v638
        %v640 = vpop.f32.mrf.mxu0
        %v641 = vadd.f32 0.0, %v640
        %642 = vmatprep.mubr.f32.mxu0 0.0
        %643 = vmatmul.mubr.f32.gmra.mxu0 %v294
        %v644 = vpop.f32.mrf.mxu0
        %v645 = vadd.f32 0.0, %v644
        %v646 = vpop.f32.mrf.mxu0
        %v647 = vadd.f32 0.0, %v646
        %648 = vdwg.mxu0
        %649 = vmatprep.subr.mxu0 %v420
        %650 = vmatpush1.msra.mxu0 %v419
        %651 = vmatprep.subr.mxu0 %v412
        %652 = vmatpush1.msra.mxu0 %v411
        %653 = vmatprep.subr.mxu0 %v404
        %654 = vmatpush1.msra.mxu0 %v403
        %655 = vmatprep.subr.mxu0 %v396
        %656 = vmatpush1.msra.mxu0 %v395
        %657 = vmatprep.subr.mxu0 %v388
        %658 = vmatpush1.msra.mxu0 %v387
        %659 = vmatprep.subr.mxu0 %v380
        %660 = vmatpush1.msra.mxu0 %v379
        %661 = vmatprep.subr.mxu0 %v372
        %662 = vmatpush1.msra.mxu0 %v371
        %663 = vmatprep.subr.mxu0 %v364
        %664 = vmatpush1.msra.mxu0 %v363
        %665 = vmatprep.subr.mxu0 %v356
        %666 = vmatpush1.msra.mxu0 %v355
        %667 = vmatprep.subr.mxu0 %v348
        %668 = vmatpush1.msra.mxu0 %v347
        %669 = vmatprep.subr.mxu0 %v340
        %670 = vmatpush1.msra.mxu0 %v339
        %671 = vmatprep.subr.mxu0 %v332
        %672 = vmatpush1.msra.mxu0 %v331
        %673 = vmatprep.subr.mxu0 %v324
        %674 = vmatpush1.msra.mxu0 %v323
        %675 = vmatprep.subr.mxu0 %v316
        %676 = vmatpush1.msra.mxu0 %v315
        %677 = vmatprep.subr.mxu0 %v308
        %678 = vmatpush1.msra.mxu0 %v307
        %679 = vmatprep.subr.mxu0 %v300
        %680 = vmatpush1.msra.mxu0 %v299
        %681 = vmatprep.subr.mxu0 0.0
        %682 = vmatpush2.msra.mxu0 0.0
        %683 = vmatprep.subr.mxu0 0.0
        %684 = vmatpush2.msra.mxu0 0.0
        %685 = vmatprep.subr.mxu0 0.0
        %686 = vmatpush2.msra.mxu0 0.0
        %687 = vmatprep.subr.mxu0 0.0
        %688 = vmatpush2.msra.mxu0 0.0
        %689 = vmatprep.subr.mxu0 0.0
        %690 = vmatpush2.msra.mxu0 0.0
        %691 = vmatprep.subr.mxu0 0.0
        %692 = vmatpush2.msra.mxu0 0.0
        %693 = vmatprep.subr.mxu0 0.0
        %694 = vmatpush2.msra.mxu0 0.0
        %695 = vmatprep.subr.mxu0 0.0
        %696 = vmatpush2.msra.mxu0 0.0
        %697 = vmatprep.subr.mxu0 0.0
        %698 = vmatpush2.msra.mxu0 0.0
        %699 = vmatprep.subr.mxu0 0.0
        %700 = vmatpush2.msra.mxu0 0.0
        %701 = vmatprep.subr.mxu0 0.0
        %702 = vmatpush2.msra.mxu0 0.0
        %703 = vmatprep.subr.mxu0 0.0
        %704 = vmatpush2.msra.mxu0 0.0
        %705 = vmatprep.subr.mxu0 0.0
        %706 = vmatpush2.msra.mxu0 0.0
        %707 = vmatprep.subr.mxu0 0.0
        %708 = vmatpush2.msra.mxu0 0.0
        %709 = vmatprep.subr.mxu0 0.0
        %710 = vmatpush2.msra.mxu0 0.0
        %711 = vmatprep.subr.mxu0 0.0
        %712 = vmatpush2.msra.mxu0 0.0
        %713 = vmatprep.mubr.f32.mxu0 0.0
        %714 = vmatmul.mubr.f32.gmra.mxu0 %v287
        %v715 = vpop.f32.mrf.mxu0
        %v716 = vadd.f32 0.0, %v715
        %v717 = vpop.f32.mrf.mxu0
        %v718 = vadd.f32 0.0, %v717
        %719 = vmatprep.mubr.f32.mxu0 0.0
        %720 = vmatmul.mubr.f32.gmra.mxu0 %v288
        %v721 = vpop.f32.mrf.mxu0
        %v722 = vadd.f32 0.0, %v721
        %v723 = vpop.f32.mrf.mxu0
        %v724 = vadd.f32 0.0, %v723
        %725 = vmatprep.mubr.f32.mxu0 0.0
        %726 = vmatmul.mubr.f32.gmra.mxu0 %v289
        %v727 = vpop.f32.mrf.mxu0
        %v728 = vadd.f32 0.0, %v727
        %v729 = vpop.f32.mrf.mxu0
        %v730 = vadd.f32 0.0, %v729
        %731 = vmatprep.mubr.f32.mxu0 0.0
        %732 = vmatmul.mubr.f32.gmra.mxu0 %v290
        %v733 = vpop.f32.mrf.mxu0
        %v734 = vadd.f32 0.0, %v733
        %v735 = vpop.f32.mrf.mxu0
        %v736 = vadd.f32 0.0, %v735
        %737 = vmatprep.mubr.f32.mxu0 0.0
        %738 = vmatmul.mubr.f32.gmra.mxu0 %v291
        %v739 = vpop.f32.mrf.mxu0
        %v740 = vadd.f32 0.0, %v739
        %v741 = vpop.f32.mrf.mxu0
        %v742 = vadd.f32 0.0, %v741
        %743 = vmatprep.mubr.f32.mxu0 0.0
        %744 = vmatmul.mubr.f32.gmra.mxu0 %v292
        %v745 = vpop.f32.mrf.mxu0
        %v746 = vadd.f32 0.0, %v745
        %v747 = vpop.f32.mrf.mxu0
        %v748 = vadd.f32 0.0, %v747
        %749 = vmatprep.mubr.f32.mxu0 0.0
        %750 = vmatmul.mubr.f32.gmra.mxu0 %v293
        %v751 = vpop.f32.mrf.mxu0
        %v752 = vadd.f32 0.0, %v751
        %v753 = vpop.f32.mrf.mxu0
        %v754 = vadd.f32 0.0, %v753
        %755 = vmatprep.mubr.f32.mxu0 0.0
        %756 = vmatmul.mubr.f32.gmra.mxu0 %v294
        %v757 = vpop.f32.mrf.mxu0
        %v758 = vadd.f32 0.0, %v757
        %v759 = vpop.f32.mrf.mxu0
        %v760 = vadd.f32 0.0, %v759
        %761 = vdwg.mxu0
        %762 = vmatprep.subr.mxu0 %v422
        %763 = vmatpush1.msra.mxu0 %v421
        %764 = vmatprep.subr.mxu0 %v414
        %765 = vmatpush1.msra.mxu0 %v413
        %766 = vmatprep.subr.mxu0 %v406
        %767 = vmatpush1.msra.mxu0 %v405
        %768 = vmatprep.subr.mxu0 %v398
        %769 = vmatpush1.msra.mxu0 %v397
        %770 = vmatprep.subr.mxu0 %v390
        %771 = vmatpush1.msra.mxu0 %v389
        %772 = vmatprep.subr.mxu0 %v382
        %773 = vmatpush1.msra.mxu0 %v381
        %774 = vmatprep.subr.mxu0 %v374
        %775 = vmatpush1.msra.mxu0 %v373
        %776 = vmatprep.subr.mxu0 %v366
        %777 = vmatpush1.msra.mxu0 %v365
        %778 = vmatprep.subr.mxu0 %v358
        %779 = vmatpush1.msra.mxu0 %v357
        %780 = vmatprep.subr.mxu0 %v350
        %781 = vmatpush1.msra.mxu0 %v349
        %782 = vmatprep.subr.mxu0 %v342
        %783 = vmatpush1.msra.mxu0 %v341
        %784 = vmatprep.subr.mxu0 %v334
        %785 = vmatpush1.msra.mxu0 %v333
        %786 = vmatprep.subr.mxu0 %v326
        %787 = vmatpush1.msra.mxu0 %v325
        %788 = vmatprep.subr.mxu0 %v318
        %789 = vmatpush1.msra.mxu0 %v317
        %790 = vmatprep.subr.mxu0 %v310
        %791 = vmatpush1.msra.mxu0 %v309
        %792 = vmatprep.subr.mxu0 %v302
        %793 = vmatpush1.msra.mxu0 %v301
        %794 = vmatprep.subr.mxu0 0.0
        %795 = vmatpush2.msra.mxu0 0.0
        %796 = vmatprep.subr.mxu0 0.0
        %797 = vmatpush2.msra.mxu0 0.0
        %798 = vmatprep.subr.mxu0 0.0
        %799 = vmatpush2.msra.mxu0 0.0
        %800 = vmatprep.subr.mxu0 0.0
        %801 = vmatpush2.msra.mxu0 0.0
        %802 = vmatprep.subr.mxu0 0.0
        %803 = vmatpush2.msra.mxu0 0.0
        %804 = vmatprep.subr.mxu0 0.0
        %805 = vmatpush2.msra.mxu0 0.0
        %806 = vmatprep.subr.mxu0 0.0
        %807 = vmatpush2.msra.mxu0 0.0
        %808 = vmatprep.subr.mxu0 0.0
        %809 = vmatpush2.msra.mxu0 0.0
        %810 = vmatprep.subr.mxu0 0.0
        %811 = vmatpush2.msra.mxu0 0.0
        %812 = vmatprep.subr.mxu0 0.0
        %813 = vmatpush2.msra.mxu0 0.0
        %814 = vmatprep.subr.mxu0 0.0
        %815 = vmatpush2.msra.mxu0 0.0
        %816 = vmatprep.subr.mxu0 0.0
        %817 = vmatpush2.msra.mxu0 0.0
        %818 = vmatprep.subr.mxu0 0.0
        %819 = vmatpush2.msra.mxu0 0.0
        %820 = vmatprep.subr.mxu0 0.0
        %821 = vmatpush2.msra.mxu0 0.0
        %822 = vmatprep.subr.mxu0 0.0
        %823 = vmatpush2.msra.mxu0 0.0
        %824 = vmatprep.subr.mxu0 0.0
        %825 = vmatpush2.msra.mxu0 0.0
        %826 = vmatprep.mubr.f32.mxu0 0.0
        %827 = vmatmul.mubr.f32.gmra.mxu0 %v287
        %v828 = vpop.f32.mrf.mxu0
        %v829 = vadd.f32 0.0, %v828
        %v830 = vpop.f32.mrf.mxu0
        %v831 = vadd.f32 0.0, %v830
        %832 = vmatprep.mubr.f32.mxu0 0.0
        %833 = vmatmul.mubr.f32.gmra.mxu0 %v288
        %v834 = vpop.f32.mrf.mxu0
        %v835 = vadd.f32 0.0, %v834
        %v836 = vpop.f32.mrf.mxu0
        %v837 = vadd.f32 0.0, %v836
        %838 = vmatprep.mubr.f32.mxu0 0.0
        %839 = vmatmul.mubr.f32.gmra.mxu0 %v289
        %v840 = vpop.f32.mrf.mxu0
        %v841 = vadd.f32 0.0, %v840
        %v842 = vpop.f32.mrf.mxu0
        %v843 = vadd.f32 0.0, %v842
        %844 = vmatprep.mubr.f32.mxu0 0.0
        %845 = vmatmul.mubr.f32.gmra.mxu0 %v290
        %v846 = vpop.f32.mrf.mxu0
        %v847 = vadd.f32 0.0, %v846
        %v848 = vpop.f32.mrf.mxu0
        %v849 = vadd.f32 0.0, %v848
        %850 = vmatprep.mubr.f32.mxu0 0.0
        %851 = vmatmul.mubr.f32.gmra.mxu0 %v291
        %v852 = vpop.f32.mrf.mxu0
        %v853 = vadd.f32 0.0, %v852
        %v854 = vpop.f32.mrf.mxu0
        %v855 = vadd.f32 0.0, %v854
        %856 = vmatprep.mubr.f32.mxu0 0.0
        %857 = vmatmul.mubr.f32.gmra.mxu0 %v292
        %v858 = vpop.f32.mrf.mxu0
        %v859 = vadd.f32 0.0, %v858
        %v860 = vpop.f32.mrf.mxu0
        %v861 = vadd.f32 0.0, %v860
        %862 = vmatprep.mubr.f32.mxu0 0.0
        %863 = vmatmul.mubr.f32.gmra.mxu0 %v293
        %v864 = vpop.f32.mrf.mxu0
        %v865 = vadd.f32 0.0, %v864
        %v866 = vpop.f32.mrf.mxu0
        %v867 = vadd.f32 0.0, %v866
        %868 = vmatprep.mubr.f32.mxu0 0.0
        %869 = vmatmul.mubr.f32.gmra.mxu0 %v294
        %v870 = vpop.f32.mrf.mxu0
        %v871 = vadd.f32 0.0, %v870
        %v872 = vpop.f32.mrf.mxu0
        %v873 = vadd.f32 0.0, %v872
        %874 = vdwg.mxu0
        %v875 = vmul.f32 %v490, 0.125
        %v876 = vmul.f32 %v492, 0.125
        %v877 = vmul.f32 %v603, 0.125
        %v878 = vmul.f32 %v605, 0.125
        %v879 = vmul.f32 %v496, 0.125
        %v880 = vmul.f32 %v498, 0.125
        %v881 = vmul.f32 %v609, 0.125
        %v882 = vmul.f32 %v611, 0.125
        %v883 = vmul.f32 %v502, 0.125
        %v884 = vmul.f32 %v504, 0.125
        %v885 = vmul.f32 %v615, 0.125
        %v886 = vmul.f32 %v617, 0.125
        %v887 = vmul.f32 %v508, 0.125
        %v888 = vmul.f32 %v510, 0.125
        %v889 = vmul.f32 %v621, 0.125
        %v890 = vmul.f32 %v623, 0.125
        %v891 = vmul.f32 %v514, 0.125
        %v892 = vmul.f32 %v516, 0.125
        %v893 = vmul.f32 %v627, 0.125
        %v894 = vmul.f32 %v629, 0.125
        %v895 = vmul.f32 %v520, 0.125
        %v896 = vmul.f32 %v522, 0.125
        %v897 = vmul.f32 %v633, 0.125
        %v898 = vmul.f32 %v635, 0.125
        %v899 = vmul.f32 %v526, 0.125
        %v900 = vmul.f32 %v528, 0.125
        %v901 = vmul.f32 %v639, 0.125
        %v902 = vmul.f32 %v641, 0.125
        %v903 = vmul.f32 %v532, 0.125
        %v904 = vmul.f32 %v534, 0.125
        %v905 = vmul.f32 %v645, 0.125
        %v906 = vmul.f32 %v647, 0.125
        %v907 = vld [vmem:[#allocation7] sm:$0xff]
        %v908 = vld [vmem:[#allocation7 + $0x8] sm:$0xff]
        %v909 = vld [vmem:[#allocation7 + $0x10] sm:$0xff]
        %v910 = vld [vmem:[#allocation7 + $0x18] sm:$0xff]
        %v911 = vld [vmem:[#allocation7 + $0x20] sm:$0xff]
        %v912 = vld [vmem:[#allocation7 + $0x28] sm:$0xff]
        %v913 = vld [vmem:[#allocation7 + $0x30] sm:$0xff]
        %v914 = vld [vmem:[#allocation7 + $0x38] sm:$0xff]
        %v915 = vld [vmem:[#allocation7 + $0x40] sm:$0xff]
        %v916 = vld [vmem:[#allocation7 + $0x48] sm:$0xff]
        %v917 = vld [vmem:[#allocation7 + $0x50] sm:$0xff]
        %v918 = vld [vmem:[#allocation7 + $0x58] sm:$0xff]
        %v919 = vld [vmem:[#allocation7 + $0x60] sm:$0xff]
        %v920 = vld [vmem:[#allocation7 + $0x68] sm:$0xff]
        %v921 = vld [vmem:[#allocation7 + $0x70] sm:$0xff]
        %v922 = vld [vmem:[#allocation7 + $0x78] sm:$0xff]
        %v923 = vld [vmem:[#allocation7 + $0x80] sm:$0xff]
        %v924 = vld [vmem:[#allocation7 + $0x88] sm:$0xff]
        %v925 = vld [vmem:[#allocation7 + $0x90] sm:$0xff]
        %v926 = vld [vmem:[#allocation7 + $0x98] sm:$0xff]
        %v927 = vld [vmem:[#allocation7 + $0xa0] sm:$0xff]
        %v928 = vld [vmem:[#allocation7 + $0xa8] sm:$0xff]
        %v929 = vld [vmem:[#allocation7 + $0xb0] sm:$0xff]
        %v930 = vld [vmem:[#allocation7 + $0xb8] sm:$0xff]
        %v931 = vld [vmem:[#allocation7 + $0xc0] sm:$0xff]
        %v932 = vld [vmem:[#allocation7 + $0xc8] sm:$0xff]
        %v933 = vld [vmem:[#allocation7 + $0xd0] sm:$0xff]
        %v934 = vld [vmem:[#allocation7 + $0xd8] sm:$0xff]
        %v935 = vld [vmem:[#allocation7 + $0xe0] sm:$0xff]
        %v936 = vld [vmem:[#allocation7 + $0xe8] sm:$0xff]
        %v937 = vld [vmem:[#allocation7 + $0xf0] sm:$0xff]
        %v938 = vld [vmem:[#allocation7 + $0xf8] sm:$0xff]
        %v939 = vld [vmem:[#allocation7 + $0x100] sm:$0xff]
        %v940 = vld [vmem:[#allocation7 + $0x108] sm:$0xff]
        %v941 = vld [vmem:[#allocation7 + $0x110] sm:$0xff]
        %v942 = vld [vmem:[#allocation7 + $0x118] sm:$0xff]
        %v943 = vld [vmem:[#allocation7 + $0x120] sm:$0xff]
        %v944 = vld [vmem:[#allocation7 + $0x128] sm:$0xff]
        %v945 = vld [vmem:[#allocation7 + $0x130] sm:$0xff]
        %v946 = vld [vmem:[#allocation7 + $0x138] sm:$0xff]
        %v947 = vld [vmem:[#allocation7 + $0x140] sm:$0xff]
        %v948 = vld [vmem:[#allocation7 + $0x148] sm:$0xff]
        %v949 = vld [vmem:[#allocation7 + $0x150] sm:$0xff]
        %v950 = vld [vmem:[#allocation7 + $0x158] sm:$0xff]
        %v951 = vld [vmem:[#allocation7 + $0x160] sm:$0xff]
        %v952 = vld [vmem:[#allocation7 + $0x168] sm:$0xff]
        %v953 = vld [vmem:[#allocation7 + $0x170] sm:$0xff]
        %v954 = vld [vmem:[#allocation7 + $0x178] sm:$0xff]
        %v955 = vld [vmem:[#allocation7 + $0x180] sm:$0xff]
        %v956 = vld [vmem:[#allocation7 + $0x188] sm:$0xff]
        %v957 = vld [vmem:[#allocation7 + $0x190] sm:$0xff]
        %v958 = vld [vmem:[#allocation7 + $0x198] sm:$0xff]
        %v959 = vld [vmem:[#allocation7 + $0x1a0] sm:$0xff]
        %v960 = vld [vmem:[#allocation7 + $0x1a8] sm:$0xff]
        %v961 = vld [vmem:[#allocation7 + $0x1b0] sm:$0xff]
        %v962 = vld [vmem:[#allocation7 + $0x1b8] sm:$0xff]
        %v963 = vld [vmem:[#allocation7 + $0x1c0] sm:$0xff]
        %v964 = vld [vmem:[#allocation7 + $0x1c8] sm:$0xff]
        %v965 = vld [vmem:[#allocation7 + $0x1d0] sm:$0xff]
        %v966 = vld [vmem:[#allocation7 + $0x1d8] sm:$0xff]
        %v967 = vld [vmem:[#allocation7 + $0x1e0] sm:$0xff]
        %v968 = vld [vmem:[#allocation7 + $0x1e8] sm:$0xff]
        %v969 = vld [vmem:[#allocation7 + $0x1f0] sm:$0xff]
        %v970 = vld [vmem:[#allocation7 + $0x1f8] sm:$0xff]
        %971 = vmatprep.subr.mxu0 0.0
        %972 = vmatpush1.xpose.msra.mxu0 0.0
        %973 = vmatprep.subr.mxu0 0.0
        %974 = vmatpush1.xpose.msra.mxu0 0.0
        %975 = vmatprep.subr.mxu0 0.0
        %976 = vmatpush1.xpose.msra.mxu0 0.0
        %977 = vmatprep.subr.mxu0 0.0
        %978 = vmatpush1.xpose.msra.mxu0 0.0
        %979 = vmatprep.subr.mxu0 0.0
        %980 = vmatpush1.xpose.msra.mxu0 0.0
        %981 = vmatprep.subr.mxu0 0.0
        %982 = vmatpush1.xpose.msra.mxu0 0.0
        %983 = vmatprep.subr.mxu0 0.0
        %984 = vmatpush1.xpose.msra.mxu0 0.0
        %985 = vmatprep.subr.mxu0 0.0
        %986 = vmatpush1.xpose.msra.mxu0 0.0
        %987 = vmatprep.subr.mxu0 0.0
        %988 = vmatpush1.xpose.msra.mxu0 %v294
        %989 = vmatprep.subr.mxu0 0.0
        %990 = vmatpush1.xpose.msra.mxu0 %v293
        %991 = vmatprep.subr.mxu0 0.0
        %992 = vmatpush1.xpose.msra.mxu0 %v292
        %993 = vmatprep.subr.mxu0 0.0
        %994 = vmatpush1.xpose.msra.mxu0 %v291
        %995 = vmatprep.subr.mxu0 0.0
        %996 = vmatpush1.xpose.msra.mxu0 %v290
        %997 = vmatprep.subr.mxu0 0.0
        %998 = vmatpush1.xpose.msra.mxu0 %v289
        %999 = vmatprep.subr.mxu0 0.0
        %1000 = vmatpush1.xpose.msra.mxu0 %v288
        %1001 = vmatprep.subr.mxu0 0.0
        %1002 = vmatpush1.xpose.msra.mxu0 %v287
        %1003 = vmatprep.subr.mxu0 0.0
        %1004 = vmatpush2.xpose.msra.mxu0 0.0
        %1005 = vmatprep.subr.mxu0 0.0
        %1006 = vmatpush2.xpose.msra.mxu0 0.0
        %1007 = vmatprep.subr.mxu0 0.0
        %1008 = vmatpush2.xpose.msra.mxu0 0.0
        %1009 = vmatprep.subr.mxu0 0.0
        %1010 = vmatpush2.xpose.msra.mxu0 0.0
        %1011 = vmatprep.subr.mxu0 0.0
        %1012 = vmatpush2.xpose.msra.mxu0 0.0
        %1013 = vmatprep.subr.mxu0 0.0
        %1014 = vmatpush2.xpose.msra.mxu0 0.0
        %1015 = vmatprep.subr.mxu0 0.0
        %1016 = vmatpush2.xpose.msra.mxu0 0.0
        %1017 = vmatprep.subr.mxu0 0.0
        %1018 = vmatpush2.xpose.msra.mxu0 0.0
        %1019 = vmatprep.subr.mxu0 0.0
        %1020 = vmatpush2.xpose.msra.mxu0 0.0
        %1021 = vmatprep.subr.mxu0 0.0
        %1022 = vmatpush2.xpose.msra.mxu0 0.0
        %1023 = vmatprep.subr.mxu0 0.0
        %1024 = vmatpush2.xpose.msra.mxu0 0.0
        %1025 = vmatprep.subr.mxu0 0.0
        %1026 = vmatpush2.xpose.msra.mxu0 0.0
        %1027 = vmatprep.subr.mxu0 0.0
        %1028 = vmatpush2.xpose.msra.mxu0 0.0
        %1029 = vmatprep.subr.mxu0 0.0
        %1030 = vmatpush2.xpose.msra.mxu0 0.0
        %1031 = vmatprep.subr.mxu0 0.0
        %1032 = vmatpush2.xpose.msra.mxu0 0.0
        %1033 = vmatprep.subr.mxu0 0.0
        %1034 = vmatpush2.xpose.msra.mxu0 0.0
        %1035 = vmatprep.mubr.f32.mxu0 0.0
        %1036 = vmatmul.mubr.f32.gmra.mxu0 %v907
        %v1037 = vpop.f32.mrf.mxu0
        %v1038 = vadd.f32 0.0, %v1037
        %v1039 = vpop.f32.mrf.mxu0
        %1040 = vmatprep.mubr.f32.mxu0 0.0
        %1041 = vmatmul.mubr.f32.gmra.mxu0 %v908
        %v1042 = vpop.f32.mrf.mxu0
        %v1043 = vadd.f32 0.0, %v1042
        %v1044 = vpop.f32.mrf.mxu0
        %1045 = vmatprep.mubr.f32.mxu0 0.0
        %1046 = vmatmul.mubr.f32.gmra.mxu0 %v909
        %v1047 = vpop.f32.mrf.mxu0
        %v1048 = vadd.f32 0.0, %v1047
        %v1049 = vpop.f32.mrf.mxu0
        %1050 = vmatprep.mubr.f32.mxu0 0.0
        %1051 = vmatmul.mubr.f32.gmra.mxu0 %v910
        %v1052 = vpop.f32.mrf.mxu0
        %v1053 = vadd.f32 0.0, %v1052
        %v1054 = vpop.f32.mrf.mxu0
        %1055 = vmatprep.mubr.f32.mxu0 0.0
        %1056 = vmatmul.mubr.f32.gmra.mxu0 %v911
        %v1057 = vpop.f32.mrf.mxu0
        %v1058 = vadd.f32 0.0, %v1057
        %v1059 = vpop.f32.mrf.mxu0
        %1060 = vmatprep.mubr.f32.mxu0 0.0
        %1061 = vmatmul.mubr.f32.gmra.mxu0 %v912
        %v1062 = vpop.f32.mrf.mxu0
        %v1063 = vadd.f32 0.0, %v1062
        %v1064 = vpop.f32.mrf.mxu0
        %1065 = vmatprep.mubr.f32.mxu0 0.0
        %1066 = vmatmul.mubr.f32.gmra.mxu0 %v913
        %v1067 = vpop.f32.mrf.mxu0
        %v1068 = vadd.f32 0.0, %v1067
        %v1069 = vpop.f32.mrf.mxu0
        %1070 = vmatprep.mubr.f32.mxu0 0.0
        %1071 = vmatmul.mubr.f32.gmra.mxu0 %v914
        %v1072 = vpop.f32.mrf.mxu0
        %v1073 = vadd.f32 0.0, %v1072
        %v1074 = vpop.f32.mrf.mxu0
        %1075 = vmatprep.mubr.f32.mxu0 0.0
        %1076 = vmatmul.mubr.f32.gmra.mxu0 %v915
        %v1077 = vpop.f32.mrf.mxu0
        %v1078 = vadd.f32 0.0, %v1077
        %v1079 = vpop.f32.mrf.mxu0
        %1080 = vmatprep.mubr.f32.mxu0 0.0
        %1081 = vmatmul.mubr.f32.gmra.mxu0 %v916
        %v1082 = vpop.f32.mrf.mxu0
        %v1083 = vadd.f32 0.0, %v1082
        %v1084 = vpop.f32.mrf.mxu0
        %1085 = vmatprep.mubr.f32.mxu0 0.0
        %1086 = vmatmul.mubr.f32.gmra.mxu0 %v917
        %v1087 = vpop.f32.mrf.mxu0
        %v1088 = vadd.f32 0.0, %v1087
        %v1089 = vpop.f32.mrf.mxu0
        %1090 = vmatprep.mubr.f32.mxu0 0.0
        %1091 = vmatmul.mubr.f32.gmra.mxu0 %v918
        %v1092 = vpop.f32.mrf.mxu0
        %v1093 = vadd.f32 0.0, %v1092
        %v1094 = vpop.f32.mrf.mxu0
        %1095 = vmatprep.mubr.f32.mxu0 0.0
        %1096 = vmatmul.mubr.f32.gmra.mxu0 %v919
        %v1097 = vpop.f32.mrf.mxu0
        %v1098 = vadd.f32 0.0, %v1097
        %v1099 = vpop.f32.mrf.mxu0
        %1100 = vmatprep.mubr.f32.mxu0 0.0
        %1101 = vmatmul.mubr.f32.gmra.mxu0 %v920
        %v1102 = vpop.f32.mrf.mxu0
        %v1103 = vadd.f32 0.0, %v1102
        %v1104 = vpop.f32.mrf.mxu0
        %1105 = vmatprep.mubr.f32.mxu0 0.0
        %1106 = vmatmul.mubr.f32.gmra.mxu0 %v921
        %v1107 = vpop.f32.mrf.mxu0
        %v1108 = vadd.f32 0.0, %v1107
        %v1109 = vpop.f32.mrf.mxu0
        %1110 = vmatprep.mubr.f32.mxu0 0.0
        %1111 = vmatmul.mubr.f32.gmra.mxu0 %v922
        %v1112 = vpop.f32.mrf.mxu0
        %v1113 = vadd.f32 0.0, %v1112
        %v1114 = vpop.f32.mrf.mxu0
        %1115 = vmatprep.mubr.f32.mxu0 0.0
        %1116 = vmatmul.mubr.f32.gmra.mxu0 %v923
        %v1117 = vpop.f32.mrf.mxu0
        %v1118 = vadd.f32 0.0, %v1117
        %v1119 = vpop.f32.mrf.mxu0
        %1120 = vmatprep.mubr.f32.mxu0 0.0
        %1121 = vmatmul.mubr.f32.gmra.mxu0 %v924
        %v1122 = vpop.f32.mrf.mxu0
        %v1123 = vadd.f32 0.0, %v1122
        %v1124 = vpop.f32.mrf.mxu0
        %1125 = vmatprep.mubr.f32.mxu0 0.0
        %1126 = vmatmul.mubr.f32.gmra.mxu0 %v925
        %v1127 = vpop.f32.mrf.mxu0
        %v1128 = vadd.f32 0.0, %v1127
        %v1129 = vpop.f32.mrf.mxu0
        %1130 = vmatprep.mubr.f32.mxu0 0.0
        %1131 = vmatmul.mubr.f32.gmra.mxu0 %v926
        %v1132 = vpop.f32.mrf.mxu0
        %v1133 = vadd.f32 0.0, %v1132
        %v1134 = vpop.f32.mrf.mxu0
        %1135 = vmatprep.mubr.f32.mxu0 0.0
        %1136 = vmatmul.mubr.f32.gmra.mxu0 %v927
        %v1137 = vpop.f32.mrf.mxu0
        %v1138 = vadd.f32 0.0, %v1137
        %v1139 = vpop.f32.mrf.mxu0
        %1140 = vmatprep.mubr.f32.mxu0 0.0
        %1141 = vmatmul.mubr.f32.gmra.mxu0 %v928
        %v1142 = vpop.f32.mrf.mxu0
        %v1143 = vadd.f32 0.0, %v1142
        %v1144 = vpop.f32.mrf.mxu0
        %1145 = vmatprep.mubr.f32.mxu0 0.0
        %1146 = vmatmul.mubr.f32.gmra.mxu0 %v929
        %v1147 = vpop.f32.mrf.mxu0
        %v1148 = vadd.f32 0.0, %v1147
        %v1149 = vpop.f32.mrf.mxu0
        %1150 = vmatprep.mubr.f32.mxu0 0.0
        %1151 = vmatmul.mubr.f32.gmra.mxu0 %v930
        %v1152 = vpop.f32.mrf.mxu0
        %v1153 = vadd.f32 0.0, %v1152
        %v1154 = vpop.f32.mrf.mxu0
        %1155 = vmatprep.mubr.f32.mxu0 0.0
        %1156 = vmatmul.mubr.f32.gmra.mxu0 %v931
        %v1157 = vpop.f32.mrf.mxu0
        %v1158 = vadd.f32 0.0, %v1157
        %v1159 = vpop.f32.mrf.mxu0
        %1160 = vmatprep.mubr.f32.mxu0 0.0
        %1161 = vmatmul.mubr.f32.gmra.mxu0 %v932
        %v1162 = vpop.f32.mrf.mxu0
        %v1163 = vadd.f32 0.0, %v1162
        %v1164 = vpop.f32.mrf.mxu0
        %1165 = vmatprep.mubr.f32.mxu0 0.0
        %1166 = vmatmul.mubr.f32.gmra.mxu0 %v933
        %v1167 = vpop.f32.mrf.mxu0
        %v1168 = vadd.f32 0.0, %v1167
        %v1169 = vpop.f32.mrf.mxu0
        %1170 = vmatprep.mubr.f32.mxu0 0.0
        %1171 = vmatmul.mubr.f32.gmra.mxu0 %v934
        %v1172 = vpop.f32.mrf.mxu0
        %v1173 = vadd.f32 0.0, %v1172
        %v1174 = vpop.f32.mrf.mxu0
        %1175 = vmatprep.mubr.f32.mxu0 0.0
        %1176 = vmatmul.mubr.f32.gmra.mxu0 %v935
        %v1177 = vpop.f32.mrf.mxu0
        %v1178 = vadd.f32 0.0, %v1177
        %v1179 = vpop.f32.mrf.mxu0
        %1180 = vmatprep.mubr.f32.mxu0 0.0
        %1181 = vmatmul.mubr.f32.gmra.mxu0 %v936
        %v1182 = vpop.f32.mrf.mxu0
        %v1183 = vadd.f32 0.0, %v1182
        %v1184 = vpop.f32.mrf.mxu0
        %1185 = vmatprep.mubr.f32.mxu0 0.0
        %1186 = vmatmul.mubr.f32.gmra.mxu0 %v937
        %v1187 = vpop.f32.mrf.mxu0
        %v1188 = vadd.f32 0.0, %v1187
        %v1189 = vpop.f32.mrf.mxu0
        %1190 = vmatprep.mubr.f32.mxu0 0.0
        %1191 = vmatmul.mubr.f32.gmra.mxu0 %v938
        %v1192 = vpop.f32.mrf.mxu0
        %v1193 = vadd.f32 0.0, %v1192
        %v1194 = vpop.f32.mrf.mxu0
        %1195 = vmatprep.mubr.f32.mxu0 0.0
        %1196 = vmatmul.mubr.f32.gmra.mxu0 %v939
        %v1197 = vpop.f32.mrf.mxu0
        %v1198 = vadd.f32 0.0, %v1197
        %v1199 = vpop.f32.mrf.mxu0
        %1200 = vmatprep.mubr.f32.mxu0 0.0
        %1201 = vmatmul.mubr.f32.gmra.mxu0 %v940
        %v1202 = vpop.f32.mrf.mxu0
        %v1203 = vadd.f32 0.0, %v1202
        %v1204 = vpop.f32.mrf.mxu0
        %1205 = vmatprep.mubr.f32.mxu0 0.0
        %1206 = vmatmul.mubr.f32.gmra.mxu0 %v941
        %v1207 = vpop.f32.mrf.mxu0
        %v1208 = vadd.f32 0.0, %v1207
        %v1209 = vpop.f32.mrf.mxu0
        %1210 = vmatprep.mubr.f32.mxu0 0.0
        %1211 = vmatmul.mubr.f32.gmra.mxu0 %v942
        %v1212 = vpop.f32.mrf.mxu0
        %v1213 = vadd.f32 0.0, %v1212
        %v1214 = vpop.f32.mrf.mxu0
        %1215 = vmatprep.mubr.f32.mxu0 0.0
        %1216 = vmatmul.mubr.f32.gmra.mxu0 %v943
        %v1217 = vpop.f32.mrf.mxu0
        %v1218 = vadd.f32 0.0, %v1217
        %v1219 = vpop.f32.mrf.mxu0
        %1220 = vmatprep.mubr.f32.mxu0 0.0
        %1221 = vmatmul.mubr.f32.gmra.mxu0 %v944
        %v1222 = vpop.f32.mrf.mxu0
        %v1223 = vadd.f32 0.0, %v1222
        %v1224 = vpop.f32.mrf.mxu0
        %1225 = vmatprep.mubr.f32.mxu0 0.0
        %1226 = vmatmul.mubr.f32.gmra.mxu0 %v945
        %v1227 = vpop.f32.mrf.mxu0
        %v1228 = vadd.f32 0.0, %v1227
        %v1229 = vpop.f32.mrf.mxu0
        %1230 = vmatprep.mubr.f32.mxu0 0.0
        %1231 = vmatmul.mubr.f32.gmra.mxu0 %v946
        %v1232 = vpop.f32.mrf.mxu0
        %v1233 = vadd.f32 0.0, %v1232
        %v1234 = vpop.f32.mrf.mxu0
        %1235 = vmatprep.mubr.f32.mxu0 0.0
        %1236 = vmatmul.mubr.f32.gmra.mxu0 %v947
        %v1237 = vpop.f32.mrf.mxu0
        %v1238 = vadd.f32 0.0, %v1237
        %v1239 = vpop.f32.mrf.mxu0
        %1240 = vmatprep.mubr.f32.mxu0 0.0
        %1241 = vmatmul.mubr.f32.gmra.mxu0 %v948
        %v1242 = vpop.f32.mrf.mxu0
        %v1243 = vadd.f32 0.0, %v1242
        %v1244 = vpop.f32.mrf.mxu0
        %1245 = vmatprep.mubr.f32.mxu0 0.0
        %1246 = vmatmul.mubr.f32.gmra.mxu0 %v949
        %v1247 = vpop.f32.mrf.mxu0
        %v1248 = vadd.f32 0.0, %v1247
        %v1249 = vpop.f32.mrf.mxu0
        %1250 = vmatprep.mubr.f32.mxu0 0.0
        %1251 = vmatmul.mubr.f32.gmra.mxu0 %v950
        %v1252 = vpop.f32.mrf.mxu0
        %v1253 = vadd.f32 0.0, %v1252
        %v1254 = vpop.f32.mrf.mxu0
        %1255 = vmatprep.mubr.f32.mxu0 0.0
        %1256 = vmatmul.mubr.f32.gmra.mxu0 %v951
        %v1257 = vpop.f32.mrf.mxu0
        %v1258 = vadd.f32 0.0, %v1257
        %v1259 = vpop.f32.mrf.mxu0
        %1260 = vmatprep.mubr.f32.mxu0 0.0
        %1261 = vmatmul.mubr.f32.gmra.mxu0 %v952
        %v1262 = vpop.f32.mrf.mxu0
        %v1263 = vadd.f32 0.0, %v1262
        %v1264 = vpop.f32.mrf.mxu0
        %1265 = vmatprep.mubr.f32.mxu0 0.0
        %1266 = vmatmul.mubr.f32.gmra.mxu0 %v953
        %v1267 = vpop.f32.mrf.mxu0
        %v1268 = vadd.f32 0.0, %v1267
        %v1269 = vpop.f32.mrf.mxu0
        %1270 = vmatprep.mubr.f32.mxu0 0.0
        %1271 = vmatmul.mubr.f32.gmra.mxu0 %v954
        %v1272 = vpop.f32.mrf.mxu0
        %v1273 = vadd.f32 0.0, %v1272
        %v1274 = vpop.f32.mrf.mxu0
        %1275 = vmatprep.mubr.f32.mxu0 0.0
        %1276 = vmatmul.mubr.f32.gmra.mxu0 %v955
        %v1277 = vpop.f32.mrf.mxu0
        %v1278 = vadd.f32 0.0, %v1277
        %v1279 = vpop.f32.mrf.mxu0
        %1280 = vmatprep.mubr.f32.mxu0 0.0
        %1281 = vmatmul.mubr.f32.gmra.mxu0 %v956
        %v1282 = vpop.f32.mrf.mxu0
        %v1283 = vadd.f32 0.0, %v1282
        %v1284 = vpop.f32.mrf.mxu0
        %1285 = vmatprep.mubr.f32.mxu0 0.0
        %1286 = vmatmul.mubr.f32.gmra.mxu0 %v957
        %v1287 = vpop.f32.mrf.mxu0
        %v1288 = vadd.f32 0.0, %v1287
        %v1289 = vpop.f32.mrf.mxu0
        %1290 = vmatprep.mubr.f32.mxu0 0.0
        %1291 = vmatmul.mubr.f32.gmra.mxu0 %v958
        %v1292 = vpop.f32.mrf.mxu0
        %v1293 = vadd.f32 0.0, %v1292
        %v1294 = vpop.f32.mrf.mxu0
        %1295 = vmatprep.mubr.f32.mxu0 0.0
        %1296 = vmatmul.mubr.f32.gmra.mxu0 %v959
        %v1297 = vpop.f32.mrf.mxu0
        %v1298 = vadd.f32 0.0, %v1297
        %v1299 = vpop.f32.mrf.mxu0
        %1300 = vmatprep.mubr.f32.mxu0 0.0
        %1301 = vmatmul.mubr.f32.gmra.mxu0 %v960
        %v1302 = vpop.f32.mrf.mxu0
        %v1303 = vadd.f32 0.0, %v1302
        %v1304 = vpop.f32.mrf.mxu0
        %1305 = vmatprep.mubr.f32.mxu0 0.0
        %1306 = vmatmul.mubr.f32.gmra.mxu0 %v961
        %v1307 = vpop.f32.mrf.mxu0
        %v1308 = vadd.f32 0.0, %v1307
        %v1309 = vpop.f32.mrf.mxu0
        %1310 = vmatprep.mubr.f32.mxu0 0.0
        %1311 = vmatmul.mubr.f32.gmra.mxu0 %v962
        %v1312 = vpop.f32.mrf.mxu0
        %v1313 = vadd.f32 0.0, %v1312
        %v1314 = vpop.f32.mrf.mxu0
        %1315 = vmatprep.mubr.f32.mxu0 0.0
        %1316 = vmatmul.mubr.f32.gmra.mxu0 %v963
        %v1317 = vpop.f32.mrf.mxu0
        %v1318 = vadd.f32 0.0, %v1317
        %v1319 = vpop.f32.mrf.mxu0
        %1320 = vmatprep.mubr.f32.mxu0 0.0
        %1321 = vmatmul.mubr.f32.gmra.mxu0 %v964
        %v1322 = vpop.f32.mrf.mxu0
        %v1323 = vadd.f32 0.0, %v1322
        %v1324 = vpop.f32.mrf.mxu0
        %1325 = vmatprep.mubr.f32.mxu0 0.0
        %1326 = vmatmul.mubr.f32.gmra.mxu0 %v965
        %v1327 = vpop.f32.mrf.mxu0
        %v1328 = vadd.f32 0.0, %v1327
        %v1329 = vpop.f32.mrf.mxu0
        %1330 = vmatprep.mubr.f32.mxu0 0.0
        %1331 = vmatmul.mubr.f32.gmra.mxu0 %v966
        %v1332 = vpop.f32.mrf.mxu0
        %v1333 = vadd.f32 0.0, %v1332
        %v1334 = vpop.f32.mrf.mxu0
        %1335 = vmatprep.mubr.f32.mxu0 0.0
        %1336 = vmatmul.mubr.f32.gmra.mxu0 %v967
        %v1337 = vpop.f32.mrf.mxu0
        %v1338 = vadd.f32 0.0, %v1337
        %v1339 = vpop.f32.mrf.mxu0
        %1340 = vmatprep.mubr.f32.mxu0 0.0
        %1341 = vmatmul.mubr.f32.gmra.mxu0 %v968
        %v1342 = vpop.f32.mrf.mxu0
        %v1343 = vadd.f32 0.0, %v1342
        %v1344 = vpop.f32.mrf.mxu0
        %1345 = vmatprep.mubr.f32.mxu0 0.0
        %1346 = vmatmul.mubr.f32.gmra.mxu0 %v969
        %v1347 = vpop.f32.mrf.mxu0
        %v1348 = vadd.f32 0.0, %v1347
        %v1349 = vpop.f32.mrf.mxu0
        %1350 = vmatprep.mubr.f32.mxu0 0.0
        %1351 = vmatmul.mubr.f32.gmra.mxu0 %v970
        %v1352 = vpop.f32.mrf.mxu0
        %v1353 = vadd.f32 0.0, %v1352
        %v1354 = vpop.f32.mrf.mxu0
        %1355 = vdwg.mxu0
        %vm1356 = vcmask 523264
        %v1358 = vsel %vm1356, %v875, 0
        %v1361 = vsel %vm1356, %v879, 0
        %v1364 = vsel %vm1356, %v883, 0
        %v1367 = vsel %vm1356, %v887, 0
        %v1370 = vsel %vm1356, %v891, 0
        %v1373 = vsel %vm1356, %v895, 0
        %v1376 = vsel %vm1356, %v899, 0
        %v1379 = vsel %vm1356, %v903, 0
        %1381 = vmatprep.subr.mxu0 0.0
        %1382 = vmatpush1.msra.mxu0 0.0
        %1383 = vmatprep.subr.mxu0 0.0
        %1384 = vmatpush1.msra.mxu0 0.0
        %1385 = vmatprep.subr.mxu0 0.0
        %1386 = vmatpush1.msra.mxu0 0.0
        %1387 = vmatprep.subr.mxu0 0.0
        %1388 = vmatpush1.msra.mxu0 0.0
        %1389 = vmatprep.subr.mxu0 0.0
        %1390 = vmatpush1.msra.mxu0 0.0
        %1391 = vmatprep.subr.mxu0 0.0
        %1392 = vmatpush1.msra.mxu0 0.0
        %1393 = vmatprep.subr.mxu0 0.0
        %1394 = vmatpush1.msra.mxu0 0.0
        %1395 = vmatprep.subr.mxu0 0.0
        %1396 = vmatpush1.msra.mxu0 0.0
        %1397 = vmatprep.subr.mxu0 0.0
        %1398 = vmatpush1.msra.mxu0 %v1073
        %1399 = vmatprep.subr.mxu0 0.0
        %1400 = vmatpush1.msra.mxu0 %v1068
        %1401 = vmatprep.subr.mxu0 0.0
        %1402 = vmatpush1.msra.mxu0 %v1063
        %1403 = vmatprep.subr.mxu0 0.0
        %1404 = vmatpush1.msra.mxu0 %v1058
        %1405 = vmatprep.subr.mxu0 0.0
        %1406 = vmatpush1.msra.mxu0 %v1053
        %1407 = vmatprep.subr.mxu0 0.0
        %1408 = vmatpush1.msra.mxu0 %v1048
        %1409 = vmatprep.subr.mxu0 0.0
        %1410 = vmatpush1.msra.mxu0 %v1043
        %1411 = vmatprep.subr.mxu0 0.0
        %1412 = vmatpush1.msra.mxu0 %v1038
        %1413 = vmatprep.subr.mxu0 0.0
        %1414 = vmatpush2.msra.mxu0 0.0
        %1415 = vmatprep.subr.mxu0 0.0
        %1416 = vmatpush2.msra.mxu0 0.0
        %1417 = vmatprep.subr.mxu0 0.0
        %1418 = vmatpush2.msra.mxu0 0.0
        %1419 = vmatprep.subr.mxu0 0.0
        %1420 = vmatpush2.msra.mxu0 0.0
        %1421 = vmatprep.subr.mxu0 0.0
        %1422 = vmatpush2.msra.mxu0 0.0
        %1423 = vmatprep.subr.mxu0 0.0
        %1424 = vmatpush2.msra.mxu0 0.0
        %1425 = vmatprep.subr.mxu0 0.0
        %1426 = vmatpush2.msra.mxu0 0.0
        %1427 = vmatprep.subr.mxu0 0.0
        %1428 = vmatpush2.msra.mxu0 0.0
        %1429 = vmatprep.subr.mxu0 0.0
        %1430 = vmatpush2.msra.mxu0 0.0
        %1431 = vmatprep.subr.mxu0 0.0
        %1432 = vmatpush2.msra.mxu0 0.0
        %1433 = vmatprep.subr.mxu0 0.0
        %1434 = vmatpush2.msra.mxu0 0.0
        %1435 = vmatprep.subr.mxu0 0.0
        %1436 = vmatpush2.msra.mxu0 0.0
        %1437 = vmatprep.subr.mxu0 0.0
        %1438 = vmatpush2.msra.mxu0 0.0
        %1439 = vmatprep.subr.mxu0 0.0
        %1440 = vmatpush2.msra.mxu0 0.0
        %1441 = vmatprep.subr.mxu0 0.0
        %1442 = vmatpush2.msra.mxu0 0.0
        %1443 = vmatprep.subr.mxu0 0.0
        %1444 = vmatpush2.msra.mxu0 0.0
        %1445 = vmatprep.mubr.f32.mxu0 0.0
        %1446 = vmatmul.mubr.f32.gmra.mxu0 %v1358
        %v1447 = vpop.f32.mrf.mxu0
        %v1448 = vadd.f32 0.0, %v1447
        %v1449 = vpop.f32.mrf.mxu0
        %1450 = vmatprep.mubr.f32.mxu0 0.0
        %1451 = vmatmul.mubr.f32.gmra.mxu0 %v1361
        %v1452 = vpop.f32.mrf.mxu0
        %v1453 = vadd.f32 0.0, %v1452
        %v1454 = vpop.f32.mrf.mxu0
        %1455 = vmatprep.mubr.f32.mxu0 0.0
        %1456 = vmatmul.mubr.f32.gmra.mxu0 %v1364
        %v1457 = vpop.f32.mrf.mxu0
        %v1458 = vadd.f32 0.0, %v1457
        %v1459 = vpop.f32.mrf.mxu0
        %1460 = vmatprep.mubr.f32.mxu0 0.0
        %1461 = vmatmul.mubr.f32.gmra.mxu0 %v1367
        %v1462 = vpop.f32.mrf.mxu0
        %v1463 = vadd.f32 0.0, %v1462
        %v1464 = vpop.f32.mrf.mxu0
        %1465 = vmatprep.mubr.f32.mxu0 0.0
        %1466 = vmatmul.mubr.f32.gmra.mxu0 %v1370
        %v1467 = vpop.f32.mrf.mxu0
        %v1468 = vadd.f32 0.0, %v1467
        %v1469 = vpop.f32.mrf.mxu0
        %1470 = vmatprep.mubr.f32.mxu0 0.0
        %1471 = vmatmul.mubr.f32.gmra.mxu0 %v1373
        %v1472 = vpop.f32.mrf.mxu0
        %v1473 = vadd.f32 0.0, %v1472
        %v1474 = vpop.f32.mrf.mxu0
        %1475 = vmatprep.mubr.f32.mxu0 0.0
        %1476 = vmatmul.mubr.f32.gmra.mxu0 %v1376
        %v1477 = vpop.f32.mrf.mxu0
        %v1478 = vadd.f32 0.0, %v1477
        %v1479 = vpop.f32.mrf.mxu0
        %1480 = vmatprep.mubr.f32.mxu0 0.0
        %1481 = vmatmul.mubr.f32.gmra.mxu0 %v1379
        %v1482 = vpop.f32.mrf.mxu0
        %v1483 = vadd.f32 0.0, %v1482
        %v1484 = vpop.f32.mrf.mxu0
        %1485 = vdwg.mxu0
        %v1486 = vsel %vm1356, %v1448, -inf
        %1487 = vmax.xlane.f32.xlu0 %v1486
        %v1488 = vpop.xlane.xlu0 %1487
        %v1489 = vsel %vm1356, %v1453, -inf
        %1490 = vmax.xlane.f32.xlu0 %v1489
        %v1491 = vpop.xlane.xlu0 %1490
        %v1492 = vsel %vm1356, %v1458, -inf
        %1493 = vmax.xlane.f32.xlu0 %v1492
        %v1494 = vpop.xlane.xlu0 %1493
        %v1495 = vsel %vm1356, %v1463, -inf
        %1496 = vmax.xlane.f32.xlu0 %v1495
        %v1497 = vpop.xlane.xlu0 %1496
        %v1498 = vsel %vm1356, %v1468, -inf
        %1499 = vmax.xlane.f32.xlu0 %v1498
        %v1500 = vpop.xlane.xlu0 %1499
        %v1501 = vsel %vm1356, %v1473, -inf
        %1502 = vmax.xlane.f32.xlu0 %v1501
        %v1503 = vpop.xlane.xlu0 %1502
        %v1504 = vsel %vm1356, %v1478, -inf
        %1505 = vmax.xlane.f32.xlu0 %v1504
        %v1506 = vpop.xlane.xlu0 %1505
        %v1507 = vsel %vm1356, %v1483, -inf
        %1508 = vmax.xlane.f32.xlu0 %v1507
        %v1509 = vpop.xlane.xlu0 %1508
        %v1510 = vsub.f32 %v1448, %v1488
        %v1511 = vsub.f32 %v1453, %v1491
        %v1512 = vsub.f32 %v1458, %v1494
        %v1513 = vsub.f32 %v1463, %v1497
        %v1514 = vsub.f32 %v1468, %v1500
        %v1515 = vsub.f32 %v1473, %v1503
        %v1516 = vsub.f32 %v1478, %v1506
        %v1517 = vsub.f32 %v1483, %v1509
        %v1518 = vmul.f32 %v1510, 1.442695
        %v1519 = vpow.pop %v1518
        %v1520 = vmul.f32 %v1511, 1.442695
        %v1521 = vpow.pop %v1520
        %v1522 = vmul.f32 %v1512, 1.442695
        %v1523 = vpow.pop %v1522
        %v1524 = vmul.f32 %v1513, 1.442695
        %v1525 = vpow.pop %v1524
        %v1526 = vmul.f32 %v1514, 1.442695
        %v1527 = vpow.pop %v1526
        %v1528 = vmul.f32 %v1515, 1.442695
        %v1529 = vpow.pop %v1528
        %v1530 = vmul.f32 %v1516, 1.442695
        %v1531 = vpow.pop %v1530
        %v1532 = vmul.f32 %v1517, 1.442695
        %v1533 = vpow.pop %v1532
        %v1534 = vsel %vm1356, %v1519, 0.0
        %1535 = vadd.xlane.f32.xlu0 %v1534
        %v1536 = vpop.xlane.xlu0 %1535
        %v1537 = vsel %vm1356, %v1521, 0.0
        %1538 = vadd.xlane.f32.xlu0 %v1537
        %v1539 = vpop.xlane.xlu0 %1538
        %v1540 = vsel %vm1356, %v1523, 0.0
        %1541 = vadd.xlane.f32.xlu0 %v1540
        %v1542 = vpop.xlane.xlu0 %1541
        %v1543 = vsel %vm1356, %v1525, 0.0
        %1544 = vadd.xlane.f32.xlu0 %v1543
        %v1545 = vpop.xlane.xlu0 %1544
        %v1546 = vsel %vm1356, %v1527, 0.0
        %1547 = vadd.xlane.f32.xlu0 %v1546
        %v1548 = vpop.xlane.xlu0 %1547
        %v1549 = vsel %vm1356, %v1529, 0.0
        %1550 = vadd.xlane.f32.xlu0 %v1549
        %v1551 = vpop.xlane.xlu0 %1550
        %v1552 = vsel %vm1356, %v1531, 0.0
        %1553 = vadd.xlane.f32.xlu0 %v1552
        %v1554 = vpop.xlane.xlu0 %1553
        %v1555 = vsel %vm1356, %v1533, 0.0
        %1556 = vadd.xlane.f32.xlu0 %v1555
        %v1557 = vpop.xlane.xlu0 %1556
        %v1559 = vsel %vm1356, %v1519, 0
        %v1562 = vsel %vm1356, %v1521, 0
        %v1565 = vsel %vm1356, %v1523, 0
        %v1568 = vsel %vm1356, %v1525, 0
        %v1571 = vsel %vm1356, %v1527, 0
        %v1574 = vsel %vm1356, %v1529, 0
        %v1577 = vsel %vm1356, %v1531, 0
        %v1580 = vsel %vm1356, %v1533, 0
        %1582 = vmatprep.subr.mxu0 0.0
        %1583 = vmatpush1.msra.mxu0 0.0
        %1584 = vmatprep.subr.mxu0 0.0
        %1585 = vmatpush1.msra.mxu0 0.0
        %1586 = vmatprep.subr.mxu0 0.0
        %1587 = vmatpush1.msra.mxu0 0.0
        %1588 = vmatprep.subr.mxu0 0.0
        %1589 = vmatpush1.msra.mxu0 0.0
        %1590 = vmatprep.subr.mxu0 0.0
        %1591 = vmatpush1.msra.mxu0 0.0
        %1592 = vmatprep.subr.mxu0 0.0
        %1593 = vmatpush1.msra.mxu0 0.0
        %1594 = vmatprep.subr.mxu0 0.0
        %1595 = vmatpush1.msra.mxu0 0.0
        %1596 = vmatprep.subr.mxu0 0.0
        %1597 = vmatpush1.msra.mxu0 0.0
        %1598 = vmatprep.subr.mxu0 0.0
        %1599 = vmatpush1.msra.mxu0 %v758
        %1600 = vmatprep.subr.mxu0 0.0
        %1601 = vmatpush1.msra.mxu0 %v752
        %1602 = vmatprep.subr.mxu0 0.0
        %1603 = vmatpush1.msra.mxu0 %v746
        %1604 = vmatprep.subr.mxu0 0.0
        %1605 = vmatpush1.msra.mxu0 %v740
        %1606 = vmatprep.subr.mxu0 0.0
        %1607 = vmatpush1.msra.mxu0 %v734
        %1608 = vmatprep.subr.mxu0 0.0
        %1609 = vmatpush1.msra.mxu0 %v728
        %1610 = vmatprep.subr.mxu0 0.0
        %1611 = vmatpush1.msra.mxu0 %v722
        %1612 = vmatprep.subr.mxu0 0.0
        %1613 = vmatpush1.msra.mxu0 %v716
        %1614 = vmatprep.subr.mxu0 0.0
        %1615 = vmatpush2.msra.mxu0 0.0
        %1616 = vmatprep.subr.mxu0 0.0
        %1617 = vmatpush2.msra.mxu0 0.0
        %1618 = vmatprep.subr.mxu0 0.0
        %1619 = vmatpush2.msra.mxu0 0.0
        %1620 = vmatprep.subr.mxu0 0.0
        %1621 = vmatpush2.msra.mxu0 0.0
        %1622 = vmatprep.subr.mxu0 0.0
        %1623 = vmatpush2.msra.mxu0 0.0
        %1624 = vmatprep.subr.mxu0 0.0
        %1625 = vmatpush2.msra.mxu0 0.0
        %1626 = vmatprep.subr.mxu0 0.0
        %1627 = vmatpush2.msra.mxu0 0.0
        %1628 = vmatprep.subr.mxu0 0.0
        %1629 = vmatpush2.msra.mxu0 0.0
        %1630 = vmatprep.subr.mxu0 0.0
        %1631 = vmatpush2.msra.mxu0 0.0
        %1632 = vmatprep.subr.mxu0 0.0
        %1633 = vmatpush2.msra.mxu0 0.0
        %1634 = vmatprep.subr.mxu0 0.0
        %1635 = vmatpush2.msra.mxu0 0.0
        %1636 = vmatprep.subr.mxu0 0.0
        %1637 = vmatpush2.msra.mxu0 0.0
        %1638 = vmatprep.subr.mxu0 0.0
        %1639 = vmatpush2.msra.mxu0 0.0
        %1640 = vmatprep.subr.mxu0 0.0
        %1641 = vmatpush2.msra.mxu0 0.0
        %1642 = vmatprep.subr.mxu0 0.0
        %1643 = vmatpush2.msra.mxu0 0.0
        %1644 = vmatprep.subr.mxu0 0.0
        %1645 = vmatpush2.msra.mxu0 0.0
        %1646 = vmatprep.mubr.f32.mxu0 0.0
        %1647 = vmatmul.mubr.f32.gmra.mxu0 %v1559
        %v1648 = vpop.f32.mrf.mxu0
        %v1649 = vadd.f32 0.0, %v1648
        %v1650 = vpop.f32.mrf.mxu0
        %1651 = vmatprep.mubr.f32.mxu0 0.0
        %1652 = vmatmul.mubr.f32.gmra.mxu0 %v1562
        %v1653 = vpop.f32.mrf.mxu0
        %v1654 = vadd.f32 0.0, %v1653
        %v1655 = vpop.f32.mrf.mxu0
        %1656 = vmatprep.mubr.f32.mxu0 0.0
        %1657 = vmatmul.mubr.f32.gmra.mxu0 %v1565
        %v1658 = vpop.f32.mrf.mxu0
        %v1659 = vadd.f32 0.0, %v1658
        %v1660 = vpop.f32.mrf.mxu0
        %1661 = vmatprep.mubr.f32.mxu0 0.0
        %1662 = vmatmul.mubr.f32.gmra.mxu0 %v1568
        %v1663 = vpop.f32.mrf.mxu0
        %v1664 = vadd.f32 0.0, %v1663
        %v1665 = vpop.f32.mrf.mxu0
        %1666 = vmatprep.mubr.f32.mxu0 0.0
        %1667 = vmatmul.mubr.f32.gmra.mxu0 %v1571
        %v1668 = vpop.f32.mrf.mxu0
        %v1669 = vadd.f32 0.0, %v1668
        %v1670 = vpop.f32.mrf.mxu0
        %1671 = vmatprep.mubr.f32.mxu0 0.0
        %1672 = vmatmul.mubr.f32.gmra.mxu0 %v1574
        %v1673 = vpop.f32.mrf.mxu0
        %v1674 = vadd.f32 0.0, %v1673
        %v1675 = vpop.f32.mrf.mxu0
        %1676 = vmatprep.mubr.f32.mxu0 0.0
        %1677 = vmatmul.mubr.f32.gmra.mxu0 %v1577
        %v1678 = vpop.f32.mrf.mxu0
        %v1679 = vadd.f32 0.0, %v1678
        %v1680 = vpop.f32.mrf.mxu0
        %1681 = vmatprep.mubr.f32.mxu0 0.0
        %1682 = vmatmul.mubr.f32.gmra.mxu0 %v1580
        %v1683 = vpop.f32.mrf.mxu0
        %v1684 = vadd.f32 0.0, %v1683
        %v1685 = vpop.f32.mrf.mxu0
        %1686 = vdwg.mxu0
        %v1687 = vrcp.pop %v1536
        %v1688 = vrcp.pop %v1539
        %v1689 = vrcp.pop %v1542
        %v1690 = vrcp.pop %v1545
        %v1691 = vrcp.pop %v1548
        %v1692 = vrcp.pop %v1551
        %v1693 = vrcp.pop %v1554
        %v1694 = vrcp.pop %v1557
        %v1695 = vmul.f32 %v1649, %v1687
        %v1696 = vmul.f32 %v1654, %v1688
        %v1697 = vmul.f32 %v1659, %v1689
        %v1698 = vmul.f32 %v1664, %v1690
        %v1699 = vmul.f32 %v1669, %v1691
        %v1700 = vmul.f32 %v1674, %v1692
        %v1701 = vmul.f32 %v1679, %v1693
        %v1702 = vmul.f32 %v1684, %v1694
        %1703 = vrot.lane.b32.xlu0 %v875, 64
        %v1704 = vpop.permute.xlu0 %1703
        %1705 = vrot.lane.b32.xlu0 %v879, 64
        %v1706 = vpop.permute.xlu0 %1705
        %1707 = vrot.lane.b32.xlu0 %v883, 64
        %v1708 = vpop.permute.xlu0 %1707
        %1709 = vrot.lane.b32.xlu0 %v887, 64
        %v1710 = vpop.permute.xlu0 %1709
        %1711 = vrot.lane.b32.xlu0 %v891, 64
        %v1712 = vpop.permute.xlu0 %1711
        %1713 = vrot.lane.b32.xlu0 %v895, 64
        %v1714 = vpop.permute.xlu0 %1713
        %1715 = vrot.lane.b32.xlu0 %v899, 64
        %v1716 = vpop.permute.xlu0 %1715
        %1717 = vrot.lane.b32.xlu0 %v903, 64
        %v1718 = vpop.permute.xlu0 %1717
        %v1719 = vsel %vm1356, %v1704, 0
        %v1721 = vsel %vm1356, %v1706, 0
        %v1723 = vsel %vm1356, %v1708, 0
        %v1725 = vsel %vm1356, %v1710, 0
        %v1727 = vsel %vm1356, %v1712, 0
        %v1729 = vsel %vm1356, %v1714, 0
        %v1731 = vsel %vm1356, %v1716, 0
        %v1733 = vsel %vm1356, %v1718, 0
        %1735 = vmatprep.subr.mxu0 0.0
        %1736 = vmatpush1.msra.mxu0 0.0
        %1737 = vmatprep.subr.mxu0 0.0
        %1738 = vmatpush1.msra.mxu0 0.0
        %1739 = vmatprep.subr.mxu0 0.0
        %1740 = vmatpush1.msra.mxu0 0.0
        %1741 = vmatprep.subr.mxu0 0.0
        %1742 = vmatpush1.msra.mxu0 0.0
        %1743 = vmatprep.subr.mxu0 0.0
        %1744 = vmatpush1.msra.mxu0 0.0
        %1745 = vmatprep.subr.mxu0 0.0
        %1746 = vmatpush1.msra.mxu0 0.0
        %1747 = vmatprep.subr.mxu0 0.0
        %1748 = vmatpush1.msra.mxu0 0.0
        %1749 = vmatprep.subr.mxu0 0.0
        %1750 = vmatpush1.msra.mxu0 0.0
        %1751 = vmatprep.subr.mxu0 0.0
        %1752 = vmatpush1.msra.mxu0 %v1113
        %1753 = vmatprep.subr.mxu0 0.0
        %1754 = vmatpush1.msra.mxu0 %v1108
        %1755 = vmatprep.subr.mxu0 0.0
        %1756 = vmatpush1.msra.mxu0 %v1103
        %1757 = vmatprep.subr.mxu0 0.0
        %1758 = vmatpush1.msra.mxu0 %v1098
        %1759 = vmatprep.subr.mxu0 0.0
        %1760 = vmatpush1.msra.mxu0 %v1093
        %1761 = vmatprep.subr.mxu0 0.0
        %1762 = vmatpush1.msra.mxu0 %v1088
        %1763 = vmatprep.subr.mxu0 0.0
        %1764 = vmatpush1.msra.mxu0 %v1083
        %1765 = vmatprep.subr.mxu0 0.0
        %1766 = vmatpush1.msra.mxu0 %v1078
        %1767 = vmatprep.subr.mxu0 0.0
        %1768 = vmatpush2.msra.mxu0 0.0
        %1769 = vmatprep.subr.mxu0 0.0
        %1770 = vmatpush2.msra.mxu0 0.0
        %1771 = vmatprep.subr.mxu0 0.0
        %1772 = vmatpush2.msra.mxu0 0.0
        %1773 = vmatprep.subr.mxu0 0.0
        %1774 = vmatpush2.msra.mxu0 0.0
        %1775 = vmatprep.subr.mxu0 0.0
        %1776 = vmatpush2.msra.mxu0 0.0
        %1777 = vmatprep.subr.mxu0 0.0
        %1778 = vmatpush2.msra.mxu0 0.0
        %1779 = vmatprep.subr.mxu0 0.0
        %1780 = vmatpush2.msra.mxu0 0.0
        %1781 = vmatprep.subr.mxu0 0.0
        %1782 = vmatpush2.msra.mxu0 0.0
        %1783 = vmatprep.subr.mxu0 0.0
        %1784 = vmatpush2.msra.mxu0 0.0
        %1785 = vmatprep.subr.mxu0 0.0
        %1786 = vmatpush2.msra.mxu0 0.0
        %1787 = vmatprep.subr.mxu0 0.0
        %1788 = vmatpush2.msra.mxu0 0.0
        %1789 = vmatprep.subr.mxu0 0.0
        %1790 = vmatpush2.msra.mxu0 0.0
        %1791 = vmatprep.subr.mxu0 0.0
        %1792 = vmatpush2.msra.mxu0 0.0
        %1793 = vmatprep.subr.mxu0 0.0
        %1794 = vmatpush2.msra.mxu0 0.0
        %1795 = vmatprep.subr.mxu0 0.0
        %1796 = vmatpush2.msra.mxu0 0.0
        %1797 = vmatprep.subr.mxu0 0.0
        %1798 = vmatpush2.msra.mxu0 0.0
        %1799 = vmatprep.mubr.f32.mxu0 0.0
        %1800 = vmatmul.mubr.f32.gmra.mxu0 %v1719
        %v1801 = vpop.f32.mrf.mxu0
        %v1802 = vadd.f32 0.0, %v1801
        %v1803 = vpop.f32.mrf.mxu0
        %1804 = vmatprep.mubr.f32.mxu0 0.0
        %1805 = vmatmul.mubr.f32.gmra.mxu0 %v1721
        %v1806 = vpop.f32.mrf.mxu0
        %v1807 = vadd.f32 0.0, %v1806
        %v1808 = vpop.f32.mrf.mxu0
        %1809 = vmatprep.mubr.f32.mxu0 0.0
        %1810 = vmatmul.mubr.f32.gmra.mxu0 %v1723
        %v1811 = vpop.f32.mrf.mxu0
        %v1812 = vadd.f32 0.0, %v1811
        %v1813 = vpop.f32.mrf.mxu0
        %1814 = vmatprep.mubr.f32.mxu0 0.0
        %1815 = vmatmul.mubr.f32.gmra.mxu0 %v1725
        %v1816 = vpop.f32.mrf.mxu0
        %v1817 = vadd.f32 0.0, %v1816
        %v1818 = vpop.f32.mrf.mxu0
        %1819 = vmatprep.mubr.f32.mxu0 0.0
        %1820 = vmatmul.mubr.f32.gmra.mxu0 %v1727
        %v1821 = vpop.f32.mrf.mxu0
        %v1822 = vadd.f32 0.0, %v1821
        %v1823 = vpop.f32.mrf.mxu0
        %1824 = vmatprep.mubr.f32.mxu0 0.0
        %1825 = vmatmul.mubr.f32.gmra.mxu0 %v1729
        %v1826 = vpop.f32.mrf.mxu0
        %v1827 = vadd.f32 0.0, %v1826
        %v1828 = vpop.f32.mrf.mxu0
        %1829 = vmatprep.mubr.f32.mxu0 0.0
        %1830 = vmatmul.mubr.f32.gmra.mxu0 %v1731
        %v1831 = vpop.f32.mrf.mxu0
        %v1832 = vadd.f32 0.0, %v1831
        %v1833 = vpop.f32.mrf.mxu0
        %1834 = vmatprep.mubr.f32.mxu0 0.0
        %1835 = vmatmul.mubr.f32.gmra.mxu0 %v1733
        %v1836 = vpop.f32.mrf.mxu0
        %v1837 = vadd.f32 0.0, %v1836
        %v1838 = vpop.f32.mrf.mxu0
        %1839 = vdwg.mxu0
        %v1840 = vsel %vm1356, %v1802, -inf
        %1841 = vmax.xlane.f32.xlu0 %v1840
        %v1842 = vpop.xlane.xlu0 %1841
        %v1843 = vsel %vm1356, %v1807, -inf
        %1844 = vmax.xlane.f32.xlu0 %v1843
        %v1845 = vpop.xlane.xlu0 %1844
        %v1846 = vsel %vm1356, %v1812, -inf
        %1847 = vmax.xlane.f32.xlu0 %v1846
        %v1848 = vpop.xlane.xlu0 %1847
        %v1849 = vsel %vm1356, %v1817, -inf
        %1850 = vmax.xlane.f32.xlu0 %v1849
        %v1851 = vpop.xlane.xlu0 %1850
        %v1852 = vsel %vm1356, %v1822, -inf
        %1853 = vmax.xlane.f32.xlu0 %v1852
        %v1854 = vpop.xlane.xlu0 %1853
        %v1855 = vsel %vm1356, %v1827, -inf
        %1856 = vmax.xlane.f32.xlu0 %v1855
        %v1857 = vpop.xlane.xlu0 %1856
        %v1858 = vsel %vm1356, %v1832, -inf
        %1859 = vmax.xlane.f32.xlu0 %v1858
        %v1860 = vpop.xlane.xlu0 %1859
        %v1861 = vsel %vm1356, %v1837, -inf
        %1862 = vmax.xlane.f32.xlu0 %v1861
        %v1863 = vpop.xlane.xlu0 %1862
        %v1864 = vsub.f32 %v1802, %v1842
        %v1865 = vsub.f32 %v1807, %v1845
        %v1866 = vsub.f32 %v1812, %v1848
        %v1867 = vsub.f32 %v1817, %v1851
        %v1868 = vsub.f32 %v1822, %v1854
        %v1869 = vsub.f32 %v1827, %v1857
        %v1870 = vsub.f32 %v1832, %v1860
        %v1871 = vsub.f32 %v1837, %v1863
        %v1872 = vmul.f32 %v1864, 1.442695
        %v1873 = vpow.pop %v1872
        %v1874 = vmul.f32 %v1865, 1.442695
        %v1875 = vpow.pop %v1874
        %v1876 = vmul.f32 %v1866, 1.442695
        %v1877 = vpow.pop %v1876
        %v1878 = vmul.f32 %v1867, 1.442695
        %v1879 = vpow.pop %v1878
        %v1880 = vmul.f32 %v1868, 1.442695
        %v1881 = vpow.pop %v1880
        %v1882 = vmul.f32 %v1869, 1.442695
        %v1883 = vpow.pop %v1882
        %v1884 = vmul.f32 %v1870, 1.442695
        %v1885 = vpow.pop %v1884
        %v1886 = vmul.f32 %v1871, 1.442695
        %v1887 = vpow.pop %v1886
        %v1888 = vsel %vm1356, %v1873, 0.0
        %1889 = vadd.xlane.f32.xlu0 %v1888
        %v1890 = vpop.xlane.xlu0 %1889
        %v1891 = vsel %vm1356, %v1875, 0.0
        %1892 = vadd.xlane.f32.xlu0 %v1891
        %v1893 = vpop.xlane.xlu0 %1892
        %v1894 = vsel %vm1356, %v1877, 0.0
        %1895 = vadd.xlane.f32.xlu0 %v1894
        %v1896 = vpop.xlane.xlu0 %1895
        %v1897 = vsel %vm1356, %v1879, 0.0
        %1898 = vadd.xlane.f32.xlu0 %v1897
        %v1899 = vpop.xlane.xlu0 %1898
        %v1900 = vsel %vm1356, %v1881, 0.0
        %1901 = vadd.xlane.f32.xlu0 %v1900
        %v1902 = vpop.xlane.xlu0 %1901
        %v1903 = vsel %vm1356, %v1883, 0.0
        %1904 = vadd.xlane.f32.xlu0 %v1903
        %v1905 = vpop.xlane.xlu0 %1904
        %v1906 = vsel %vm1356, %v1885, 0.0
        %1907 = vadd.xlane.f32.xlu0 %v1906
        %v1908 = vpop.xlane.xlu0 %1907
        %v1909 = vsel %vm1356, %v1887, 0.0
        %1910 = vadd.xlane.f32.xlu0 %v1909
        %v1911 = vpop.xlane.xlu0 %1910
        %1920 = vrot.lane.b32.xlu0 %v716, 64
        %v1921 = vpop.permute.xlu0 %1920
        %1922 = vrot.lane.b32.xlu0 %v722, 64
        %v1923 = vpop.permute.xlu0 %1922
        %1924 = vrot.lane.b32.xlu0 %v728, 64
        %v1925 = vpop.permute.xlu0 %1924
        %1926 = vrot.lane.b32.xlu0 %v734, 64
        %v1927 = vpop.permute.xlu0 %1926
        %1928 = vrot.lane.b32.xlu0 %v740, 64
        %v1929 = vpop.permute.xlu0 %1928
        %1930 = vrot.lane.b32.xlu0 %v746, 64
        %v1931 = vpop.permute.xlu0 %1930
        %1932 = vrot.lane.b32.xlu0 %v752, 64
        %v1933 = vpop.permute.xlu0 %1932
        %1934 = vrot.lane.b32.xlu0 %v758, 64
        %v1935 = vpop.permute.xlu0 %1934
        %v1945 = vsel %vm1356, %v1873, 0
        %v1948 = vsel %vm1356, %v1875, 0
        %v1951 = vsel %vm1356, %v1877, 0
        %v1954 = vsel %vm1356, %v1879, 0
        %v1957 = vsel %vm1356, %v1881, 0
        %v1960 = vsel %vm1356, %v1883, 0
        %v1963 = vsel %vm1356, %v1885, 0
        %v1966 = vsel %vm1356, %v1887, 0
        %1968 = vmatprep.subr.mxu0 0.0
        %1969 = vmatpush1.msra.mxu0 0.0
        %1970 = vmatprep.subr.mxu0 0.0
        %1971 = vmatpush1.msra.mxu0 0.0
        %1972 = vmatprep.subr.mxu0 0.0
        %1973 = vmatpush1.msra.mxu0 0.0
        %1974 = vmatprep.subr.mxu0 0.0
        %1975 = vmatpush1.msra.mxu0 0.0
        %1976 = vmatprep.subr.mxu0 0.0
        %1977 = vmatpush1.msra.mxu0 0.0
        %1978 = vmatprep.subr.mxu0 0.0
        %1979 = vmatpush1.msra.mxu0 0.0
        %1980 = vmatprep.subr.mxu0 0.0
        %1981 = vmatpush1.msra.mxu0 0.0
        %1982 = vmatprep.subr.mxu0 0.0
        %1983 = vmatpush1.msra.mxu0 0.0
        %1984 = vmatprep.subr.mxu0 0.0
        %1985 = vmatpush1.msra.mxu0 %v1935
        %1986 = vmatprep.subr.mxu0 0.0
        %1987 = vmatpush1.msra.mxu0 %v1933
        %1988 = vmatprep.subr.mxu0 0.0
        %1989 = vmatpush1.msra.mxu0 %v1931
        %1990 = vmatprep.subr.mxu0 0.0
        %1991 = vmatpush1.msra.mxu0 %v1929
        %1992 = vmatprep.subr.mxu0 0.0
        %1993 = vmatpush1.msra.mxu0 %v1927
        %1994 = vmatprep.subr.mxu0 0.0
        %1995 = vmatpush1.msra.mxu0 %v1925
        %1996 = vmatprep.subr.mxu0 0.0
        %1997 = vmatpush1.msra.mxu0 %v1923
        %1998 = vmatprep.subr.mxu0 0.0
        %1999 = vmatpush1.msra.mxu0 %v1921
        %2000 = vmatprep.subr.mxu0 0.0
        %2001 = vmatpush2.msra.mxu0 0.0
        %2002 = vmatprep.subr.mxu0 0.0
        %2003 = vmatpush2.msra.mxu0 0.0
        %2004 = vmatprep.subr.mxu0 0.0
        %2005 = vmatpush2.msra.mxu0 0.0
        %2006 = vmatprep.subr.mxu0 0.0
        %2007 = vmatpush2.msra.mxu0 0.0
        %2008 = vmatprep.subr.mxu0 0.0
        %2009 = vmatpush2.msra.mxu0 0.0
        %2010 = vmatprep.subr.mxu0 0.0
        %2011 = vmatpush2.msra.mxu0 0.0
        %2012 = vmatprep.subr.mxu0 0.0
        %2013 = vmatpush2.msra.mxu0 0.0
        %2014 = vmatprep.subr.mxu0 0.0
        %2015 = vmatpush2.msra.mxu0 0.0
        %2016 = vmatprep.subr.mxu0 0.0
        %2017 = vmatpush2.msra.mxu0 0.0
        %2018 = vmatprep.subr.mxu0 0.0
        %2019 = vmatpush2.msra.mxu0 0.0
        %2020 = vmatprep.subr.mxu0 0.0
        %2021 = vmatpush2.msra.mxu0 0.0
        %2022 = vmatprep.subr.mxu0 0.0
        %2023 = vmatpush2.msra.mxu0 0.0
        %2024 = vmatprep.subr.mxu0 0.0
        %2025 = vmatpush2.msra.mxu0 0.0
        %2026 = vmatprep.subr.mxu0 0.0
        %2027 = vmatpush2.msra.mxu0 0.0
        %2028 = vmatprep.subr.mxu0 0.0
        %2029 = vmatpush2.msra.mxu0 0.0
        %2030 = vmatprep.subr.mxu0 0.0
        %2031 = vmatpush2.msra.mxu0 0.0
        %2032 = vmatprep.mubr.f32.mxu0 0.0
        %2033 = vmatmul.mubr.f32.gmra.mxu0 %v1945
        %v2034 = vpop.f32.mrf.mxu0
        %v2035 = vadd.f32 0.0, %v2034
        %v2036 = vpop.f32.mrf.mxu0
        %2037 = vmatprep.mubr.f32.mxu0 0.0
        %2038 = vmatmul.mubr.f32.gmra.mxu0 %v1948
        %v2039 = vpop.f32.mrf.mxu0
        %v2040 = vadd.f32 0.0, %v2039
        %v2041 = vpop.f32.mrf.mxu0
        %2042 = vmatprep.mubr.f32.mxu0 0.0
        %2043 = vmatmul.mubr.f32.gmra.mxu0 %v1951
        %v2044 = vpop.f32.mrf.mxu0
        %v2045 = vadd.f32 0.0, %v2044
        %v2046 = vpop.f32.mrf.mxu0
        %2047 = vmatprep.mubr.f32.mxu0 0.0
        %2048 = vmatmul.mubr.f32.gmra.mxu0 %v1954
        %v2049 = vpop.f32.mrf.mxu0
        %v2050 = vadd.f32 0.0, %v2049
        %v2051 = vpop.f32.mrf.mxu0
        %2052 = vmatprep.mubr.f32.mxu0 0.0
        %2053 = vmatmul.mubr.f32.gmra.mxu0 %v1957
        %v2054 = vpop.f32.mrf.mxu0
        %v2055 = vadd.f32 0.0, %v2054
        %v2056 = vpop.f32.mrf.mxu0
        %2057 = vmatprep.mubr.f32.mxu0 0.0
        %2058 = vmatmul.mubr.f32.gmra.mxu0 %v1960
        %v2059 = vpop.f32.mrf.mxu0
        %v2060 = vadd.f32 0.0, %v2059
        %v2061 = vpop.f32.mrf.mxu0
        %2062 = vmatprep.mubr.f32.mxu0 0.0
        %2063 = vmatmul.mubr.f32.gmra.mxu0 %v1963
        %v2064 = vpop.f32.mrf.mxu0
        %v2065 = vadd.f32 0.0, %v2064
        %v2066 = vpop.f32.mrf.mxu0
        %2067 = vmatprep.mubr.f32.mxu0 0.0
        %2068 = vmatmul.mubr.f32.gmra.mxu0 %v1966
        %v2069 = vpop.f32.mrf.mxu0
        %v2070 = vadd.f32 0.0, %v2069
        %v2071 = vpop.f32.mrf.mxu0
        %2072 = vdwg.mxu0
        %v2073 = vrcp.pop %v1890
        %v2074 = vrcp.pop %v1893
        %v2075 = vrcp.pop %v1896
        %v2076 = vrcp.pop %v1899
        %v2077 = vrcp.pop %v1902
        %v2078 = vrcp.pop %v1905
        %v2079 = vrcp.pop %v1908
        %v2080 = vrcp.pop %v1911
        %v2081 = vmul.f32 %v2035, %v2073
        %v2082 = vmul.f32 %v2040, %v2074
        %v2083 = vmul.f32 %v2045, %v2075
        %v2084 = vmul.f32 %v2050, %v2076
        %v2085 = vmul.f32 %v2055, %v2077
        %v2086 = vmul.f32 %v2060, %v2078
        %v2087 = vmul.f32 %v2065, %v2079
        %v2088 = vmul.f32 %v2070, %v2080
        %v2090 = vsel %vm1356, %v876, 0
        %v2093 = vsel %vm1356, %v880, 0
        %v2096 = vsel %vm1356, %v884, 0
        %v2099 = vsel %vm1356, %v888, 0
        %v2102 = vsel %vm1356, %v892, 0
        %v2105 = vsel %vm1356, %v896, 0
        %v2108 = vsel %vm1356, %v900, 0
        %v2111 = vsel %vm1356, %v904, 0
        %2113 = vmatprep.subr.mxu0 0.0
        %2114 = vmatpush1.msra.mxu0 0.0
        %2115 = vmatprep.subr.mxu0 0.0
        %2116 = vmatpush1.msra.mxu0 0.0
        %2117 = vmatprep.subr.mxu0 0.0
        %2118 = vmatpush1.msra.mxu0 0.0
        %2119 = vmatprep.subr.mxu0 0.0
        %2120 = vmatpush1.msra.mxu0 0.0
        %2121 = vmatprep.subr.mxu0 0.0
        %2122 = vmatpush1.msra.mxu0 0.0
        %2123 = vmatprep.subr.mxu0 0.0
        %2124 = vmatpush1.msra.mxu0 0.0
        %2125 = vmatprep.subr.mxu0 0.0
        %2126 = vmatpush1.msra.mxu0 0.0
        %2127 = vmatprep.subr.mxu0 0.0
        %2128 = vmatpush1.msra.mxu0 0.0
        %2129 = vmatprep.subr.mxu0 0.0
        %2130 = vmatpush1.msra.mxu0 %v1153
        %2131 = vmatprep.subr.mxu0 0.0
        %2132 = vmatpush1.msra.mxu0 %v1148
        %2133 = vmatprep.subr.mxu0 0.0
        %2134 = vmatpush1.msra.mxu0 %v1143
        %2135 = vmatprep.subr.mxu0 0.0
        %2136 = vmatpush1.msra.mxu0 %v1138
        %2137 = vmatprep.subr.mxu0 0.0
        %2138 = vmatpush1.msra.mxu0 %v1133
        %2139 = vmatprep.subr.mxu0 0.0
        %2140 = vmatpush1.msra.mxu0 %v1128
        %2141 = vmatprep.subr.mxu0 0.0
        %2142 = vmatpush1.msra.mxu0 %v1123
        %2143 = vmatprep.subr.mxu0 0.0
        %2144 = vmatpush1.msra.mxu0 %v1118
        %2145 = vmatprep.subr.mxu0 0.0
        %2146 = vmatpush2.msra.mxu0 0.0
        %2147 = vmatprep.subr.mxu0 0.0
        %2148 = vmatpush2.msra.mxu0 0.0
        %2149 = vmatprep.subr.mxu0 0.0
        %2150 = vmatpush2.msra.mxu0 0.0
        %2151 = vmatprep.subr.mxu0 0.0
        %2152 = vmatpush2.msra.mxu0 0.0
        %2153 = vmatprep.subr.mxu0 0.0
        %2154 = vmatpush2.msra.mxu0 0.0
        %2155 = vmatprep.subr.mxu0 0.0
        %2156 = vmatpush2.msra.mxu0 0.0
        %2157 = vmatprep.subr.mxu0 0.0
        %2158 = vmatpush2.msra.mxu0 0.0
        %2159 = vmatprep.subr.mxu0 0.0
        %2160 = vmatpush2.msra.mxu0 0.0
        %2161 = vmatprep.subr.mxu0 0.0
        %2162 = vmatpush2.msra.mxu0 0.0
        %2163 = vmatprep.subr.mxu0 0.0
        %2164 = vmatpush2.msra.mxu0 0.0
        %2165 = vmatprep.subr.mxu0 0.0
        %2166 = vmatpush2.msra.mxu0 0.0
        %2167 = vmatprep.subr.mxu0 0.0
        %2168 = vmatpush2.msra.mxu0 0.0
        %2169 = vmatprep.subr.mxu0 0.0
        %2170 = vmatpush2.msra.mxu0 0.0
        %2171 = vmatprep.subr.mxu0 0.0
        %2172 = vmatpush2.msra.mxu0 0.0
        %2173 = vmatprep.subr.mxu0 0.0
        %2174 = vmatpush2.msra.mxu0 0.0
        %2175 = vmatprep.subr.mxu0 0.0
        %2176 = vmatpush2.msra.mxu0 0.0
        %2177 = vmatprep.mubr.f32.mxu0 0.0
        %2178 = vmatmul.mubr.f32.gmra.mxu0 %v2090
        %v2179 = vpop.f32.mrf.mxu0
        %v2180 = vadd.f32 0.0, %v2179
        %v2181 = vpop.f32.mrf.mxu0
        %2182 = vmatprep.mubr.f32.mxu0 0.0
        %2183 = vmatmul.mubr.f32.gmra.mxu0 %v2093
        %v2184 = vpop.f32.mrf.mxu0
        %v2185 = vadd.f32 0.0, %v2184
        %v2186 = vpop.f32.mrf.mxu0
        %2187 = vmatprep.mubr.f32.mxu0 0.0
        %2188 = vmatmul.mubr.f32.gmra.mxu0 %v2096
        %v2189 = vpop.f32.mrf.mxu0
        %v2190 = vadd.f32 0.0, %v2189
        %v2191 = vpop.f32.mrf.mxu0
        %2192 = vmatprep.mubr.f32.mxu0 0.0
        %2193 = vmatmul.mubr.f32.gmra.mxu0 %v2099
        %v2194 = vpop.f32.mrf.mxu0
        %v2195 = vadd.f32 0.0, %v2194
        %v2196 = vpop.f32.mrf.mxu0
        %2197 = vmatprep.mubr.f32.mxu0 0.0
        %2198 = vmatmul.mubr.f32.gmra.mxu0 %v2102
        %v2199 = vpop.f32.mrf.mxu0
        %v2200 = vadd.f32 0.0, %v2199
        %v2201 = vpop.f32.mrf.mxu0
        %2202 = vmatprep.mubr.f32.mxu0 0.0
        %2203 = vmatmul.mubr.f32.gmra.mxu0 %v2105
        %v2204 = vpop.f32.mrf.mxu0
        %v2205 = vadd.f32 0.0, %v2204
        %v2206 = vpop.f32.mrf.mxu0
        %2207 = vmatprep.mubr.f32.mxu0 0.0
        %2208 = vmatmul.mubr.f32.gmra.mxu0 %v2108
        %v2209 = vpop.f32.mrf.mxu0
        %v2210 = vadd.f32 0.0, %v2209
        %v2211 = vpop.f32.mrf.mxu0
        %2212 = vmatprep.mubr.f32.mxu0 0.0
        %2213 = vmatmul.mubr.f32.gmra.mxu0 %v2111
        %v2214 = vpop.f32.mrf.mxu0
        %v2215 = vadd.f32 0.0, %v2214
        %v2216 = vpop.f32.mrf.mxu0
        %2217 = vdwg.mxu0
        %v2218 = vsel %vm1356, %v2180, -inf
        %2219 = vmax.xlane.f32.xlu0 %v2218
        %v2220 = vpop.xlane.xlu0 %2219
        %v2221 = vsel %vm1356, %v2185, -inf
        %2222 = vmax.xlane.f32.xlu0 %v2221
        %v2223 = vpop.xlane.xlu0 %2222
        %v2224 = vsel %vm1356, %v2190, -inf
        %2225 = vmax.xlane.f32.xlu0 %v2224
        %v2226 = vpop.xlane.xlu0 %2225
        %v2227 = vsel %vm1356, %v2195, -inf
        %2228 = vmax.xlane.f32.xlu0 %v2227
        %v2229 = vpop.xlane.xlu0 %2228
        %v2230 = vsel %vm1356, %v2200, -inf
        %2231 = vmax.xlane.f32.xlu0 %v2230
        %v2232 = vpop.xlane.xlu0 %2231
        %v2233 = vsel %vm1356, %v2205, -inf
        %2234 = vmax.xlane.f32.xlu0 %v2233
        %v2235 = vpop.xlane.xlu0 %2234
        %v2236 = vsel %vm1356, %v2210, -inf
        %2237 = vmax.xlane.f32.xlu0 %v2236
        %v2238 = vpop.xlane.xlu0 %2237
        %v2239 = vsel %vm1356, %v2215, -inf
        %2240 = vmax.xlane.f32.xlu0 %v2239
        %v2241 = vpop.xlane.xlu0 %2240
        %v2242 = vsub.f32 %v2180, %v2220
        %v2243 = vsub.f32 %v2185, %v2223
        %v2244 = vsub.f32 %v2190, %v2226
        %v2245 = vsub.f32 %v2195, %v2229
        %v2246 = vsub.f32 %v2200, %v2232
        %v2247 = vsub.f32 %v2205, %v2235
        %v2248 = vsub.f32 %v2210, %v2238
        %v2249 = vsub.f32 %v2215, %v2241
        %v2250 = vmul.f32 %v2242, 1.442695
        %v2251 = vpow.pop %v2250
        %v2252 = vmul.f32 %v2243, 1.442695
        %v2253 = vpow.pop %v2252
        %v2254 = vmul.f32 %v2244, 1.442695
        %v2255 = vpow.pop %v2254
        %v2256 = vmul.f32 %v2245, 1.442695
        %v2257 = vpow.pop %v2256
        %v2258 = vmul.f32 %v2246, 1.442695
        %v2259 = vpow.pop %v2258
        %v2260 = vmul.f32 %v2247, 1.442695
        %v2261 = vpow.pop %v2260
        %v2262 = vmul.f32 %v2248, 1.442695
        %v2263 = vpow.pop %v2262
        %v2264 = vmul.f32 %v2249, 1.442695
        %v2265 = vpow.pop %v2264
        %v2266 = vsel %vm1356, %v2251, 0.0
        %2267 = vadd.xlane.f32.xlu0 %v2266
        %v2268 = vpop.xlane.xlu0 %2267
        %v2269 = vsel %vm1356, %v2253, 0.0
        %2270 = vadd.xlane.f32.xlu0 %v2269
        %v2271 = vpop.xlane.xlu0 %2270
        %v2272 = vsel %vm1356, %v2255, 0.0
        %2273 = vadd.xlane.f32.xlu0 %v2272
        %v2274 = vpop.xlane.xlu0 %2273
        %v2275 = vsel %vm1356, %v2257, 0.0
        %2276 = vadd.xlane.f32.xlu0 %v2275
        %v2277 = vpop.xlane.xlu0 %2276
        %v2278 = vsel %vm1356, %v2259, 0.0
        %2279 = vadd.xlane.f32.xlu0 %v2278
        %v2280 = vpop.xlane.xlu0 %2279
        %v2281 = vsel %vm1356, %v2261, 0.0
        %2282 = vadd.xlane.f32.xlu0 %v2281
        %v2283 = vpop.xlane.xlu0 %2282
        %v2284 = vsel %vm1356, %v2263, 0.0
        %2285 = vadd.xlane.f32.xlu0 %v2284
        %v2286 = vpop.xlane.xlu0 %2285
        %v2287 = vsel %vm1356, %v2265, 0.0
        %2288 = vadd.xlane.f32.xlu0 %v2287
        %v2289 = vpop.xlane.xlu0 %2288
        %v2291 = vsel %vm1356, %v2251, 0
        %v2294 = vsel %vm1356, %v2253, 0
        %v2297 = vsel %vm1356, %v2255, 0
        %v2300 = vsel %vm1356, %v2257, 0
        %v2303 = vsel %vm1356, %v2259, 0
        %v2306 = vsel %vm1356, %v2261, 0
        %v2309 = vsel %vm1356, %v2263, 0
        %v2312 = vsel %vm1356, %v2265, 0
        %2314 = vmatprep.subr.mxu0 0.0
        %2315 = vmatpush1.msra.mxu0 0.0
        %2316 = vmatprep.subr.mxu0 0.0
        %2317 = vmatpush1.msra.mxu0 0.0
        %2318 = vmatprep.subr.mxu0 0.0
        %2319 = vmatpush1.msra.mxu0 0.0
        %2320 = vmatprep.subr.mxu0 0.0
        %2321 = vmatpush1.msra.mxu0 0.0
        %2322 = vmatprep.subr.mxu0 0.0
        %2323 = vmatpush1.msra.mxu0 0.0
        %2324 = vmatprep.subr.mxu0 0.0
        %2325 = vmatpush1.msra.mxu0 0.0
        %2326 = vmatprep.subr.mxu0 0.0
        %2327 = vmatpush1.msra.mxu0 0.0
        %2328 = vmatprep.subr.mxu0 0.0
        %2329 = vmatpush1.msra.mxu0 0.0
        %2330 = vmatprep.subr.mxu0 0.0
        %2331 = vmatpush1.msra.mxu0 %v760
        %2332 = vmatprep.subr.mxu0 0.0
        %2333 = vmatpush1.msra.mxu0 %v754
        %2334 = vmatprep.subr.mxu0 0.0
        %2335 = vmatpush1.msra.mxu0 %v748
        %2336 = vmatprep.subr.mxu0 0.0
        %2337 = vmatpush1.msra.mxu0 %v742
        %2338 = vmatprep.subr.mxu0 0.0
        %2339 = vmatpush1.msra.mxu0 %v736
        %2340 = vmatprep.subr.mxu0 0.0
        %2341 = vmatpush1.msra.mxu0 %v730
        %2342 = vmatprep.subr.mxu0 0.0
        %2343 = vmatpush1.msra.mxu0 %v724
        %2344 = vmatprep.subr.mxu0 0.0
        %2345 = vmatpush1.msra.mxu0 %v718
        %2346 = vmatprep.subr.mxu0 0.0
        %2347 = vmatpush2.msra.mxu0 0.0
        %2348 = vmatprep.subr.mxu0 0.0
        %2349 = vmatpush2.msra.mxu0 0.0
        %2350 = vmatprep.subr.mxu0 0.0
        %2351 = vmatpush2.msra.mxu0 0.0
        %2352 = vmatprep.subr.mxu0 0.0
        %2353 = vmatpush2.msra.mxu0 0.0
        %2354 = vmatprep.subr.mxu0 0.0
        %2355 = vmatpush2.msra.mxu0 0.0
        %2356 = vmatprep.subr.mxu0 0.0
        %2357 = vmatpush2.msra.mxu0 0.0
        %2358 = vmatprep.subr.mxu0 0.0
        %2359 = vmatpush2.msra.mxu0 0.0
        %2360 = vmatprep.subr.mxu0 0.0
        %2361 = vmatpush2.msra.mxu0 0.0
        %2362 = vmatprep.subr.mxu0 0.0
        %2363 = vmatpush2.msra.mxu0 0.0
        %2364 = vmatprep.subr.mxu0 0.0
        %2365 = vmatpush2.msra.mxu0 0.0
        %2366 = vmatprep.subr.mxu0 0.0
        %2367 = vmatpush2.msra.mxu0 0.0
        %2368 = vmatprep.subr.mxu0 0.0
        %2369 = vmatpush2.msra.mxu0 0.0
        %2370 = vmatprep.subr.mxu0 0.0
        %2371 = vmatpush2.msra.mxu0 0.0
        %2372 = vmatprep.subr.mxu0 0.0
        %2373 = vmatpush2.msra.mxu0 0.0
        %2374 = vmatprep.subr.mxu0 0.0
        %2375 = vmatpush2.msra.mxu0 0.0
        %2376 = vmatprep.subr.mxu0 0.0
        %2377 = vmatpush2.msra.mxu0 0.0
        %2378 = vmatprep.mubr.f32.mxu0 0.0
        %2379 = vmatmul.mubr.f32.gmra.mxu0 %v2291
        %v2380 = vpop.f32.mrf.mxu0
        %v2381 = vadd.f32 0.0, %v2380
        %v2382 = vpop.f32.mrf.mxu0
        %2383 = vmatprep.mubr.f32.mxu0 0.0
        %2384 = vmatmul.mubr.f32.gmra.mxu0 %v2294
        %v2385 = vpop.f32.mrf.mxu0
        %v2386 = vadd.f32 0.0, %v2385
        %v2387 = vpop.f32.mrf.mxu0
        %2388 = vmatprep.mubr.f32.mxu0 0.0
        %2389 = vmatmul.mubr.f32.gmra.mxu0 %v2297
        %v2390 = vpop.f32.mrf.mxu0
        %v2391 = vadd.f32 0.0, %v2390
        %v2392 = vpop.f32.mrf.mxu0
        %2393 = vmatprep.mubr.f32.mxu0 0.0
        %2394 = vmatmul.mubr.f32.gmra.mxu0 %v2300
        %v2395 = vpop.f32.mrf.mxu0
        %v2396 = vadd.f32 0.0, %v2395
        %v2397 = vpop.f32.mrf.mxu0
        %2398 = vmatprep.mubr.f32.mxu0 0.0
        %2399 = vmatmul.mubr.f32.gmra.mxu0 %v2303
        %v2400 = vpop.f32.mrf.mxu0
        %v2401 = vadd.f32 0.0, %v2400
        %v2402 = vpop.f32.mrf.mxu0
        %2403 = vmatprep.mubr.f32.mxu0 0.0
        %2404 = vmatmul.mubr.f32.gmra.mxu0 %v2306
        %v2405 = vpop.f32.mrf.mxu0
        %v2406 = vadd.f32 0.0, %v2405
        %v2407 = vpop.f32.mrf.mxu0
        %2408 = vmatprep.mubr.f32.mxu0 0.0
        %2409 = vmatmul.mubr.f32.gmra.mxu0 %v2309
        %v2410 = vpop.f32.mrf.mxu0
        %v2411 = vadd.f32 0.0, %v2410
        %v2412 = vpop.f32.mrf.mxu0
        %2413 = vmatprep.mubr.f32.mxu0 0.0
        %2414 = vmatmul.mubr.f32.gmra.mxu0 %v2312
        %v2415 = vpop.f32.mrf.mxu0
        %v2416 = vadd.f32 0.0, %v2415
        %v2417 = vpop.f32.mrf.mxu0
        %2418 = vdwg.mxu0
        %v2419 = vrcp.pop %v2268
        %v2420 = vrcp.pop %v2271
        %v2421 = vrcp.pop %v2274
        %v2422 = vrcp.pop %v2277
        %v2423 = vrcp.pop %v2280
        %v2424 = vrcp.pop %v2283
        %v2425 = vrcp.pop %v2286
        %v2426 = vrcp.pop %v2289
        %v2427 = vmul.f32 %v2381, %v2419
        %v2428 = vmul.f32 %v2386, %v2420
        %v2429 = vmul.f32 %v2391, %v2421
        %v2430 = vmul.f32 %v2396, %v2422
        %v2431 = vmul.f32 %v2401, %v2423
        %v2432 = vmul.f32 %v2406, %v2424
        %v2433 = vmul.f32 %v2411, %v2425
        %v2434 = vmul.f32 %v2416, %v2426
        %2435 = vrot.lane.b32.xlu0 %v876, 64
        %v2436 = vpop.permute.xlu0 %2435
        %2437 = vrot.lane.b32.xlu0 %v880, 64
        %v2438 = vpop.permute.xlu0 %2437
        %2439 = vrot.lane.b32.xlu0 %v884, 64
        %v2440 = vpop.permute.xlu0 %2439
        %2441 = vrot.lane.b32.xlu0 %v888, 64
        %v2442 = vpop.permute.xlu0 %2441
        %2443 = vrot.lane.b32.xlu0 %v892, 64
        %v2444 = vpop.permute.xlu0 %2443
        %2445 = vrot.lane.b32.xlu0 %v896, 64
        %v2446 = vpop.permute.xlu0 %2445
        %2447 = vrot.lane.b32.xlu0 %v900, 64
        %v2448 = vpop.permute.xlu0 %2447
        %2449 = vrot.lane.b32.xlu0 %v904, 64
        %v2450 = vpop.permute.xlu0 %2449
        %v2451 = vsel %vm1356, %v2436, 0
        %v2453 = vsel %vm1356, %v2438, 0
        %v2455 = vsel %vm1356, %v2440, 0
        %v2457 = vsel %vm1356, %v2442, 0
        %v2459 = vsel %vm1356, %v2444, 0
        %v2461 = vsel %vm1356, %v2446, 0
        %v2463 = vsel %vm1356, %v2448, 0
        %v2465 = vsel %vm1356, %v2450, 0
        %2467 = vmatprep.subr.mxu0 0.0
        %2468 = vmatpush1.msra.mxu0 0.0
        %2469 = vmatprep.subr.mxu0 0.0
        %2470 = vmatpush1.msra.mxu0 0.0
        %2471 = vmatprep.subr.mxu0 0.0
        %2472 = vmatpush1.msra.mxu0 0.0
        %2473 = vmatprep.subr.mxu0 0.0
        %2474 = vmatpush1.msra.mxu0 0.0
        %2475 = vmatprep.subr.mxu0 0.0
        %2476 = vmatpush1.msra.mxu0 0.0
        %2477 = vmatprep.subr.mxu0 0.0
        %2478 = vmatpush1.msra.mxu0 0.0
        %2479 = vmatprep.subr.mxu0 0.0
        %2480 = vmatpush1.msra.mxu0 0.0
        %2481 = vmatprep.subr.mxu0 0.0
        %2482 = vmatpush1.msra.mxu0 0.0
        %2483 = vmatprep.subr.mxu0 0.0
        %2484 = vmatpush1.msra.mxu0 %v1193
        %2485 = vmatprep.subr.mxu0 0.0
        %2486 = vmatpush1.msra.mxu0 %v1188
        %2487 = vmatprep.subr.mxu0 0.0
        %2488 = vmatpush1.msra.mxu0 %v1183
        %2489 = vmatprep.subr.mxu0 0.0
        %2490 = vmatpush1.msra.mxu0 %v1178
        %2491 = vmatprep.subr.mxu0 0.0
        %2492 = vmatpush1.msra.mxu0 %v1173
        %2493 = vmatprep.subr.mxu0 0.0
        %2494 = vmatpush1.msra.mxu0 %v1168
        %2495 = vmatprep.subr.mxu0 0.0
        %2496 = vmatpush1.msra.mxu0 %v1163
        %2497 = vmatprep.subr.mxu0 0.0
        %2498 = vmatpush1.msra.mxu0 %v1158
        %2499 = vmatprep.subr.mxu0 0.0
        %2500 = vmatpush2.msra.mxu0 0.0
        %2501 = vmatprep.subr.mxu0 0.0
        %2502 = vmatpush2.msra.mxu0 0.0
        %2503 = vmatprep.subr.mxu0 0.0
        %2504 = vmatpush2.msra.mxu0 0.0
        %2505 = vmatprep.subr.mxu0 0.0
        %2506 = vmatpush2.msra.mxu0 0.0
        %2507 = vmatprep.subr.mxu0 0.0
        %2508 = vmatpush2.msra.mxu0 0.0
        %2509 = vmatprep.subr.mxu0 0.0
        %2510 = vmatpush2.msra.mxu0 0.0
        %2511 = vmatprep.subr.mxu0 0.0
        %2512 = vmatpush2.msra.mxu0 0.0
        %2513 = vmatprep.subr.mxu0 0.0
        %2514 = vmatpush2.msra.mxu0 0.0
        %2515 = vmatprep.subr.mxu0 0.0
        %2516 = vmatpush2.msra.mxu0 0.0
        %2517 = vmatprep.subr.mxu0 0.0
        %2518 = vmatpush2.msra.mxu0 0.0
        %2519 = vmatprep.subr.mxu0 0.0
        %2520 = vmatpush2.msra.mxu0 0.0
        %2521 = vmatprep.subr.mxu0 0.0
        %2522 = vmatpush2.msra.mxu0 0.0
        %2523 = vmatprep.subr.mxu0 0.0
        %2524 = vmatpush2.msra.mxu0 0.0
        %2525 = vmatprep.subr.mxu0 0.0
        %2526 = vmatpush2.msra.mxu0 0.0
        %2527 = vmatprep.subr.mxu0 0.0
        %2528 = vmatpush2.msra.mxu0 0.0
        %2529 = vmatprep.subr.mxu0 0.0
        %2530 = vmatpush2.msra.mxu0 0.0
        %2531 = vmatprep.mubr.f32.mxu0 0.0
        %2532 = vmatmul.mubr.f32.gmra.mxu0 %v2451
        %v2533 = vpop.f32.mrf.mxu0
        %v2534 = vadd.f32 0.0, %v2533
        %v2535 = vpop.f32.mrf.mxu0
        %2536 = vmatprep.mubr.f32.mxu0 0.0
        %2537 = vmatmul.mubr.f32.gmra.mxu0 %v2453
        %v2538 = vpop.f32.mrf.mxu0
        %v2539 = vadd.f32 0.0, %v2538
        %v2540 = vpop.f32.mrf.mxu0
        %2541 = vmatprep.mubr.f32.mxu0 0.0
        %2542 = vmatmul.mubr.f32.gmra.mxu0 %v2455
        %v2543 = vpop.f32.mrf.mxu0
        %v2544 = vadd.f32 0.0, %v2543
        %v2545 = vpop.f32.mrf.mxu0
        %2546 = vmatprep.mubr.f32.mxu0 0.0
        %2547 = vmatmul.mubr.f32.gmra.mxu0 %v2457
        %v2548 = vpop.f32.mrf.mxu0
        %v2549 = vadd.f32 0.0, %v2548
        %v2550 = vpop.f32.mrf.mxu0
        %2551 = vmatprep.mubr.f32.mxu0 0.0
        %2552 = vmatmul.mubr.f32.gmra.mxu0 %v2459
        %v2553 = vpop.f32.mrf.mxu0
        %v2554 = vadd.f32 0.0, %v2553
        %v2555 = vpop.f32.mrf.mxu0
        %2556 = vmatprep.mubr.f32.mxu0 0.0
        %2557 = vmatmul.mubr.f32.gmra.mxu0 %v2461
        %v2558 = vpop.f32.mrf.mxu0
        %v2559 = vadd.f32 0.0, %v2558
        %v2560 = vpop.f32.mrf.mxu0
        %2561 = vmatprep.mubr.f32.mxu0 0.0
        %2562 = vmatmul.mubr.f32.gmra.mxu0 %v2463
        %v2563 = vpop.f32.mrf.mxu0
        %v2564 = vadd.f32 0.0, %v2563
        %v2565 = vpop.f32.mrf.mxu0
        %2566 = vmatprep.mubr.f32.mxu0 0.0
        %2567 = vmatmul.mubr.f32.gmra.mxu0 %v2465
        %v2568 = vpop.f32.mrf.mxu0
        %v2569 = vadd.f32 0.0, %v2568
        %v2570 = vpop.f32.mrf.mxu0
        %2571 = vdwg.mxu0
        %v2572 = vsel %vm1356, %v2534, -inf
        %2573 = vmax.xlane.f32.xlu0 %v2572
        %v2574 = vpop.xlane.xlu0 %2573
        %v2575 = vsel %vm1356, %v2539, -inf
        %2576 = vmax.xlane.f32.xlu0 %v2575
        %v2577 = vpop.xlane.xlu0 %2576
        %v2578 = vsel %vm1356, %v2544, -inf
        %2579 = vmax.xlane.f32.xlu0 %v2578
        %v2580 = vpop.xlane.xlu0 %2579
        %v2581 = vsel %vm1356, %v2549, -inf
        %2582 = vmax.xlane.f32.xlu0 %v2581
        %v2583 = vpop.xlane.xlu0 %2582
        %v2584 = vsel %vm1356, %v2554, -inf
        %2585 = vmax.xlane.f32.xlu0 %v2584
        %v2586 = vpop.xlane.xlu0 %2585
        %v2587 = vsel %vm1356, %v2559, -inf
        %2588 = vmax.xlane.f32.xlu0 %v2587
        %v2589 = vpop.xlane.xlu0 %2588
        %v2590 = vsel %vm1356, %v2564, -inf
        %2591 = vmax.xlane.f32.xlu0 %v2590
        %v2592 = vpop.xlane.xlu0 %2591
        %v2593 = vsel %vm1356, %v2569, -inf
        %2594 = vmax.xlane.f32.xlu0 %v2593
        %v2595 = vpop.xlane.xlu0 %2594
        %v2596 = vsub.f32 %v2534, %v2574
        %v2597 = vsub.f32 %v2539, %v2577
        %v2598 = vsub.f32 %v2544, %v2580
        %v2599 = vsub.f32 %v2549, %v2583
        %v2600 = vsub.f32 %v2554, %v2586
        %v2601 = vsub.f32 %v2559, %v2589
        %v2602 = vsub.f32 %v2564, %v2592
        %v2603 = vsub.f32 %v2569, %v2595
        %v2604 = vmul.f32 %v2596, 1.442695
        %v2605 = vpow.pop %v2604
        %v2606 = vmul.f32 %v2597, 1.442695
        %v2607 = vpow.pop %v2606
        %v2608 = vmul.f32 %v2598, 1.442695
        %v2609 = vpow.pop %v2608
        %v2610 = vmul.f32 %v2599, 1.442695
        %v2611 = vpow.pop %v2610
        %v2612 = vmul.f32 %v2600, 1.442695
        %v2613 = vpow.pop %v2612
        %v2614 = vmul.f32 %v2601, 1.442695
        %v2615 = vpow.pop %v2614
        %v2616 = vmul.f32 %v2602, 1.442695
        %v2617 = vpow.pop %v2616
        %v2618 = vmul.f32 %v2603, 1.442695
        %v2619 = vpow.pop %v2618
        %v2620 = vsel %vm1356, %v2605, 0.0
        %2621 = vadd.xlane.f32.xlu0 %v2620
        %v2622 = vpop.xlane.xlu0 %2621
        %v2623 = vsel %vm1356, %v2607, 0.0
        %2624 = vadd.xlane.f32.xlu0 %v2623
        %v2625 = vpop.xlane.xlu0 %2624
        %v2626 = vsel %vm1356, %v2609, 0.0
        %2627 = vadd.xlane.f32.xlu0 %v2626
        %v2628 = vpop.xlane.xlu0 %2627
        %v2629 = vsel %vm1356, %v2611, 0.0
        %2630 = vadd.xlane.f32.xlu0 %v2629
        %v2631 = vpop.xlane.xlu0 %2630
        %v2632 = vsel %vm1356, %v2613, 0.0
        %2633 = vadd.xlane.f32.xlu0 %v2632
        %v2634 = vpop.xlane.xlu0 %2633
        %v2635 = vsel %vm1356, %v2615, 0.0
        %2636 = vadd.xlane.f32.xlu0 %v2635
        %v2637 = vpop.xlane.xlu0 %2636
        %v2638 = vsel %vm1356, %v2617, 0.0
        %2639 = vadd.xlane.f32.xlu0 %v2638
        %v2640 = vpop.xlane.xlu0 %2639
        %v2641 = vsel %vm1356, %v2619, 0.0
        %2642 = vadd.xlane.f32.xlu0 %v2641
        %v2643 = vpop.xlane.xlu0 %2642
        %2652 = vrot.lane.b32.xlu0 %v718, 64
        %v2653 = vpop.permute.xlu0 %2652
        %2654 = vrot.lane.b32.xlu0 %v724, 64
        %v2655 = vpop.permute.xlu0 %2654
        %2656 = vrot.lane.b32.xlu0 %v730, 64
        %v2657 = vpop.permute.xlu0 %2656
        %2658 = vrot.lane.b32.xlu0 %v736, 64
        %v2659 = vpop.permute.xlu0 %2658
        %2660 = vrot.lane.b32.xlu0 %v742, 64
        %v2661 = vpop.permute.xlu0 %2660
        %2662 = vrot.lane.b32.xlu0 %v748, 64
        %v2663 = vpop.permute.xlu0 %2662
        %2664 = vrot.lane.b32.xlu0 %v754, 64
        %v2665 = vpop.permute.xlu0 %2664
        %2666 = vrot.lane.b32.xlu0 %v760, 64
        %v2667 = vpop.permute.xlu0 %2666
        %v2677 = vsel %vm1356, %v2605, 0
        %v2680 = vsel %vm1356, %v2607, 0
        %v2683 = vsel %vm1356, %v2609, 0
        %v2686 = vsel %vm1356, %v2611, 0
        %v2689 = vsel %vm1356, %v2613, 0
        %v2692 = vsel %vm1356, %v2615, 0
        %v2695 = vsel %vm1356, %v2617, 0
        %v2698 = vsel %vm1356, %v2619, 0
        %2700 = vmatprep.subr.mxu0 0.0
        %2701 = vmatpush1.msra.mxu0 0.0
        %2702 = vmatprep.subr.mxu0 0.0
        %2703 = vmatpush1.msra.mxu0 0.0
        %2704 = vmatprep.subr.mxu0 0.0
        %2705 = vmatpush1.msra.mxu0 0.0
        %2706 = vmatprep.subr.mxu0 0.0
        %2707 = vmatpush1.msra.mxu0 0.0
        %2708 = vmatprep.subr.mxu0 0.0
        %2709 = vmatpush1.msra.mxu0 0.0
        %2710 = vmatprep.subr.mxu0 0.0
        %2711 = vmatpush1.msra.mxu0 0.0
        %2712 = vmatprep.subr.mxu0 0.0
        %2713 = vmatpush1.msra.mxu0 0.0
        %2714 = vmatprep.subr.mxu0 0.0
        %2715 = vmatpush1.msra.mxu0 0.0
        %2716 = vmatprep.subr.mxu0 0.0
        %2717 = vmatpush1.msra.mxu0 %v2667
        %2718 = vmatprep.subr.mxu0 0.0
        %2719 = vmatpush1.msra.mxu0 %v2665
        %2720 = vmatprep.subr.mxu0 0.0
        %2721 = vmatpush1.msra.mxu0 %v2663
        %2722 = vmatprep.subr.mxu0 0.0
        %2723 = vmatpush1.msra.mxu0 %v2661
        %2724 = vmatprep.subr.mxu0 0.0
        %2725 = vmatpush1.msra.mxu0 %v2659
        %2726 = vmatprep.subr.mxu0 0.0
        %2727 = vmatpush1.msra.mxu0 %v2657
        %2728 = vmatprep.subr.mxu0 0.0
        %2729 = vmatpush1.msra.mxu0 %v2655
        %2730 = vmatprep.subr.mxu0 0.0
        %2731 = vmatpush1.msra.mxu0 %v2653
        %2732 = vmatprep.subr.mxu0 0.0
        %2733 = vmatpush2.msra.mxu0 0.0
        %2734 = vmatprep.subr.mxu0 0.0
        %2735 = vmatpush2.msra.mxu0 0.0
        %2736 = vmatprep.subr.mxu0 0.0
        %2737 = vmatpush2.msra.mxu0 0.0
        %2738 = vmatprep.subr.mxu0 0.0
        %2739 = vmatpush2.msra.mxu0 0.0
        %2740 = vmatprep.subr.mxu0 0.0
        %2741 = vmatpush2.msra.mxu0 0.0
        %2742 = vmatprep.subr.mxu0 0.0
        %2743 = vmatpush2.msra.mxu0 0.0
        %2744 = vmatprep.subr.mxu0 0.0
        %2745 = vmatpush2.msra.mxu0 0.0
        %2746 = vmatprep.subr.mxu0 0.0
        %2747 = vmatpush2.msra.mxu0 0.0
        %2748 = vmatprep.subr.mxu0 0.0
        %2749 = vmatpush2.msra.mxu0 0.0
        %2750 = vmatprep.subr.mxu0 0.0
        %2751 = vmatpush2.msra.mxu0 0.0
        %2752 = vmatprep.subr.mxu0 0.0
        %2753 = vmatpush2.msra.mxu0 0.0
        %2754 = vmatprep.subr.mxu0 0.0
        %2755 = vmatpush2.msra.mxu0 0.0
        %2756 = vmatprep.subr.mxu0 0.0
        %2757 = vmatpush2.msra.mxu0 0.0
        %2758 = vmatprep.subr.mxu0 0.0
        %2759 = vmatpush2.msra.mxu0 0.0
        %2760 = vmatprep.subr.mxu0 0.0
        %2761 = vmatpush2.msra.mxu0 0.0
        %2762 = vmatprep.subr.mxu0 0.0
        %2763 = vmatpush2.msra.mxu0 0.0
        %2764 = vmatprep.mubr.f32.mxu0 0.0
        %2765 = vmatmul.mubr.f32.gmra.mxu0 %v2677
        %v2766 = vpop.f32.mrf.mxu0
        %v2767 = vadd.f32 0.0, %v2766
        %v2768 = vpop.f32.mrf.mxu0
        %2769 = vmatprep.mubr.f32.mxu0 0.0
        %2770 = vmatmul.mubr.f32.gmra.mxu0 %v2680
        %v2771 = vpop.f32.mrf.mxu0
        %v2772 = vadd.f32 0.0, %v2771
        %v2773 = vpop.f32.mrf.mxu0
        %2774 = vmatprep.mubr.f32.mxu0 0.0
        %2775 = vmatmul.mubr.f32.gmra.mxu0 %v2683
        %v2776 = vpop.f32.mrf.mxu0
        %v2777 = vadd.f32 0.0, %v2776
        %v2778 = vpop.f32.mrf.mxu0
        %2779 = vmatprep.mubr.f32.mxu0 0.0
        %2780 = vmatmul.mubr.f32.gmra.mxu0 %v2686
        %v2781 = vpop.f32.mrf.mxu0
        %v2782 = vadd.f32 0.0, %v2781
        %v2783 = vpop.f32.mrf.mxu0
        %2784 = vmatprep.mubr.f32.mxu0 0.0
        %2785 = vmatmul.mubr.f32.gmra.mxu0 %v2689
        %v2786 = vpop.f32.mrf.mxu0
        %v2787 = vadd.f32 0.0, %v2786
        %v2788 = vpop.f32.mrf.mxu0
        %2789 = vmatprep.mubr.f32.mxu0 0.0
        %2790 = vmatmul.mubr.f32.gmra.mxu0 %v2692
        %v2791 = vpop.f32.mrf.mxu0
        %v2792 = vadd.f32 0.0, %v2791
        %v2793 = vpop.f32.mrf.mxu0
        %2794 = vmatprep.mubr.f32.mxu0 0.0
        %2795 = vmatmul.mubr.f32.gmra.mxu0 %v2695
        %v2796 = vpop.f32.mrf.mxu0
        %v2797 = vadd.f32 0.0, %v2796
        %v2798 = vpop.f32.mrf.mxu0
        %2799 = vmatprep.mubr.f32.mxu0 0.0
        %2800 = vmatmul.mubr.f32.gmra.mxu0 %v2698
        %v2801 = vpop.f32.mrf.mxu0
        %v2802 = vadd.f32 0.0, %v2801
        %v2803 = vpop.f32.mrf.mxu0
        %2804 = vdwg.mxu0
        %v2805 = vrcp.pop %v2622
        %v2806 = vrcp.pop %v2625
        %v2807 = vrcp.pop %v2628
        %v2808 = vrcp.pop %v2631
        %v2809 = vrcp.pop %v2634
        %v2810 = vrcp.pop %v2637
        %v2811 = vrcp.pop %v2640
        %v2812 = vrcp.pop %v2643
        %v2813 = vmul.f32 %v2767, %v2805
        %v2814 = vmul.f32 %v2772, %v2806
        %v2815 = vmul.f32 %v2777, %v2807
        %v2816 = vmul.f32 %v2782, %v2808
        %v2817 = vmul.f32 %v2787, %v2809
        %v2818 = vmul.f32 %v2792, %v2810
        %v2819 = vmul.f32 %v2797, %v2811
        %v2820 = vmul.f32 %v2802, %v2812
        %v2822 = vsel %vm1356, %v877, 0
        %v2825 = vsel %vm1356, %v881, 0
        %v2828 = vsel %vm1356, %v885, 0
        %v2831 = vsel %vm1356, %v889, 0
        %v2834 = vsel %vm1356, %v893, 0
        %v2837 = vsel %vm1356, %v897, 0
        %v2840 = vsel %vm1356, %v901, 0
        %v2843 = vsel %vm1356, %v905, 0
        %2845 = vmatprep.subr.mxu0 0.0
        %2846 = vmatpush1.msra.mxu0 0.0
        %2847 = vmatprep.subr.mxu0 0.0
        %2848 = vmatpush1.msra.mxu0 0.0
        %2849 = vmatprep.subr.mxu0 0.0
        %2850 = vmatpush1.msra.mxu0 0.0
        %2851 = vmatprep.subr.mxu0 0.0
        %2852 = vmatpush1.msra.mxu0 0.0
        %2853 = vmatprep.subr.mxu0 0.0
        %2854 = vmatpush1.msra.mxu0 0.0
        %2855 = vmatprep.subr.mxu0 0.0
        %2856 = vmatpush1.msra.mxu0 0.0
        %2857 = vmatprep.subr.mxu0 0.0
        %2858 = vmatpush1.msra.mxu0 0.0
        %2859 = vmatprep.subr.mxu0 0.0
        %2860 = vmatpush1.msra.mxu0 0.0
        %2861 = vmatprep.subr.mxu0 0.0
        %2862 = vmatpush1.msra.mxu0 %v1233
        %2863 = vmatprep.subr.mxu0 0.0
        %2864 = vmatpush1.msra.mxu0 %v1228
        %2865 = vmatprep.subr.mxu0 0.0
        %2866 = vmatpush1.msra.mxu0 %v1223
        %2867 = vmatprep.subr.mxu0 0.0
        %2868 = vmatpush1.msra.mxu0 %v1218
        %2869 = vmatprep.subr.mxu0 0.0
        %2870 = vmatpush1.msra.mxu0 %v1213
        %2871 = vmatprep.subr.mxu0 0.0
        %2872 = vmatpush1.msra.mxu0 %v1208
        %2873 = vmatprep.subr.mxu0 0.0
        %2874 = vmatpush1.msra.mxu0 %v1203
        %2875 = vmatprep.subr.mxu0 0.0
        %2876 = vmatpush1.msra.mxu0 %v1198
        %2877 = vmatprep.subr.mxu0 0.0
        %2878 = vmatpush2.msra.mxu0 0.0
        %2879 = vmatprep.subr.mxu0 0.0
        %2880 = vmatpush2.msra.mxu0 0.0
        %2881 = vmatprep.subr.mxu0 0.0
        %2882 = vmatpush2.msra.mxu0 0.0
        %2883 = vmatprep.subr.mxu0 0.0
        %2884 = vmatpush2.msra.mxu0 0.0
        %2885 = vmatprep.subr.mxu0 0.0
        %2886 = vmatpush2.msra.mxu0 0.0
        %2887 = vmatprep.subr.mxu0 0.0
        %2888 = vmatpush2.msra.mxu0 0.0
        %2889 = vmatprep.subr.mxu0 0.0
        %2890 = vmatpush2.msra.mxu0 0.0
        %2891 = vmatprep.subr.mxu0 0.0
        %2892 = vmatpush2.msra.mxu0 0.0
        %2893 = vmatprep.subr.mxu0 0.0
        %2894 = vmatpush2.msra.mxu0 0.0
        %2895 = vmatprep.subr.mxu0 0.0
        %2896 = vmatpush2.msra.mxu0 0.0
        %2897 = vmatprep.subr.mxu0 0.0
        %2898 = vmatpush2.msra.mxu0 0.0
        %2899 = vmatprep.subr.mxu0 0.0
        %2900 = vmatpush2.msra.mxu0 0.0
        %2901 = vmatprep.subr.mxu0 0.0
        %2902 = vmatpush2.msra.mxu0 0.0
        %2903 = vmatprep.subr.mxu0 0.0
        %2904 = vmatpush2.msra.mxu0 0.0
        %2905 = vmatprep.subr.mxu0 0.0
        %2906 = vmatpush2.msra.mxu0 0.0
        %2907 = vmatprep.subr.mxu0 0.0
        %2908 = vmatpush2.msra.mxu0 0.0
        %2909 = vmatprep.mubr.f32.mxu0 0.0
        %2910 = vmatmul.mubr.f32.gmra.mxu0 %v2822
        %v2911 = vpop.f32.mrf.mxu0
        %v2912 = vadd.f32 0.0, %v2911
        %v2913 = vpop.f32.mrf.mxu0
        %2914 = vmatprep.mubr.f32.mxu0 0.0
        %2915 = vmatmul.mubr.f32.gmra.mxu0 %v2825
        %v2916 = vpop.f32.mrf.mxu0
        %v2917 = vadd.f32 0.0, %v2916
        %v2918 = vpop.f32.mrf.mxu0
        %2919 = vmatprep.mubr.f32.mxu0 0.0
        %2920 = vmatmul.mubr.f32.gmra.mxu0 %v2828
        %v2921 = vpop.f32.mrf.mxu0
        %v2922 = vadd.f32 0.0, %v2921
        %v2923 = vpop.f32.mrf.mxu0
        %2924 = vmatprep.mubr.f32.mxu0 0.0
        %2925 = vmatmul.mubr.f32.gmra.mxu0 %v2831
        %v2926 = vpop.f32.mrf.mxu0
        %v2927 = vadd.f32 0.0, %v2926
        %v2928 = vpop.f32.mrf.mxu0
        %2929 = vmatprep.mubr.f32.mxu0 0.0
        %2930 = vmatmul.mubr.f32.gmra.mxu0 %v2834
        %v2931 = vpop.f32.mrf.mxu0
        %v2932 = vadd.f32 0.0, %v2931
        %v2933 = vpop.f32.mrf.mxu0
        %2934 = vmatprep.mubr.f32.mxu0 0.0
        %2935 = vmatmul.mubr.f32.gmra.mxu0 %v2837
        %v2936 = vpop.f32.mrf.mxu0
        %v2937 = vadd.f32 0.0, %v2936
        %v2938 = vpop.f32.mrf.mxu0
        %2939 = vmatprep.mubr.f32.mxu0 0.0
        %2940 = vmatmul.mubr.f32.gmra.mxu0 %v2840
        %v2941 = vpop.f32.mrf.mxu0
        %v2942 = vadd.f32 0.0, %v2941
        %v2943 = vpop.f32.mrf.mxu0
        %2944 = vmatprep.mubr.f32.mxu0 0.0
        %2945 = vmatmul.mubr.f32.gmra.mxu0 %v2843
        %v2946 = vpop.f32.mrf.mxu0
        %v2947 = vadd.f32 0.0, %v2946
        %v2948 = vpop.f32.mrf.mxu0
        %2949 = vdwg.mxu0
        %v2950 = vsel %vm1356, %v2912, -inf
        %2951 = vmax.xlane.f32.xlu0 %v2950
        %v2952 = vpop.xlane.xlu0 %2951
        %v2953 = vsel %vm1356, %v2917, -inf
        %2954 = vmax.xlane.f32.xlu0 %v2953
        %v2955 = vpop.xlane.xlu0 %2954
        %v2956 = vsel %vm1356, %v2922, -inf
        %2957 = vmax.xlane.f32.xlu0 %v2956
        %v2958 = vpop.xlane.xlu0 %2957
        %v2959 = vsel %vm1356, %v2927, -inf
        %2960 = vmax.xlane.f32.xlu0 %v2959
        %v2961 = vpop.xlane.xlu0 %2960
        %v2962 = vsel %vm1356, %v2932, -inf
        %2963 = vmax.xlane.f32.xlu0 %v2962
        %v2964 = vpop.xlane.xlu0 %2963
        %v2965 = vsel %vm1356, %v2937, -inf
        %2966 = vmax.xlane.f32.xlu0 %v2965
        %v2967 = vpop.xlane.xlu0 %2966
        %v2968 = vsel %vm1356, %v2942, -inf
        %2969 = vmax.xlane.f32.xlu0 %v2968
        %v2970 = vpop.xlane.xlu0 %2969
        %v2971 = vsel %vm1356, %v2947, -inf
        %2972 = vmax.xlane.f32.xlu0 %v2971
        %v2973 = vpop.xlane.xlu0 %2972
        %v2974 = vsub.f32 %v2912, %v2952
        %v2975 = vsub.f32 %v2917, %v2955
        %v2976 = vsub.f32 %v2922, %v2958
        %v2977 = vsub.f32 %v2927, %v2961
        %v2978 = vsub.f32 %v2932, %v2964
        %v2979 = vsub.f32 %v2937, %v2967
        %v2980 = vsub.f32 %v2942, %v2970
        %v2981 = vsub.f32 %v2947, %v2973
        %v2982 = vmul.f32 %v2974, 1.442695
        %v2983 = vpow.pop %v2982
        %v2984 = vmul.f32 %v2975, 1.442695
        %v2985 = vpow.pop %v2984
        %v2986 = vmul.f32 %v2976, 1.442695
        %v2987 = vpow.pop %v2986
        %v2988 = vmul.f32 %v2977, 1.442695
        %v2989 = vpow.pop %v2988
        %v2990 = vmul.f32 %v2978, 1.442695
        %v2991 = vpow.pop %v2990
        %v2992 = vmul.f32 %v2979, 1.442695
        %v2993 = vpow.pop %v2992
        %v2994 = vmul.f32 %v2980, 1.442695
        %v2995 = vpow.pop %v2994
        %v2996 = vmul.f32 %v2981, 1.442695
        %v2997 = vpow.pop %v2996
        %v2998 = vsel %vm1356, %v2983, 0.0
        %2999 = vadd.xlane.f32.xlu0 %v2998
        %v3000 = vpop.xlane.xlu0 %2999
        %v3001 = vsel %vm1356, %v2985, 0.0
        %3002 = vadd.xlane.f32.xlu0 %v3001
        %v3003 = vpop.xlane.xlu0 %3002
        %v3004 = vsel %vm1356, %v2987, 0.0
        %3005 = vadd.xlane.f32.xlu0 %v3004
        %v3006 = vpop.xlane.xlu0 %3005
        %v3007 = vsel %vm1356, %v2989, 0.0
        %3008 = vadd.xlane.f32.xlu0 %v3007
        %v3009 = vpop.xlane.xlu0 %3008
        %v3010 = vsel %vm1356, %v2991, 0.0
        %3011 = vadd.xlane.f32.xlu0 %v3010
        %v3012 = vpop.xlane.xlu0 %3011
        %v3013 = vsel %vm1356, %v2993, 0.0
        %3014 = vadd.xlane.f32.xlu0 %v3013
        %v3015 = vpop.xlane.xlu0 %3014
        %v3016 = vsel %vm1356, %v2995, 0.0
        %3017 = vadd.xlane.f32.xlu0 %v3016
        %v3018 = vpop.xlane.xlu0 %3017
        %v3019 = vsel %vm1356, %v2997, 0.0
        %3020 = vadd.xlane.f32.xlu0 %v3019
        %v3021 = vpop.xlane.xlu0 %3020
        %v3023 = vsel %vm1356, %v2983, 0
        %v3026 = vsel %vm1356, %v2985, 0
        %v3029 = vsel %vm1356, %v2987, 0
        %v3032 = vsel %vm1356, %v2989, 0
        %v3035 = vsel %vm1356, %v2991, 0
        %v3038 = vsel %vm1356, %v2993, 0
        %v3041 = vsel %vm1356, %v2995, 0
        %v3044 = vsel %vm1356, %v2997, 0
        %3046 = vmatprep.subr.mxu0 0.0
        %3047 = vmatpush1.msra.mxu0 0.0
        %3048 = vmatprep.subr.mxu0 0.0
        %3049 = vmatpush1.msra.mxu0 0.0
        %3050 = vmatprep.subr.mxu0 0.0
        %3051 = vmatpush1.msra.mxu0 0.0
        %3052 = vmatprep.subr.mxu0 0.0
        %3053 = vmatpush1.msra.mxu0 0.0
        %3054 = vmatprep.subr.mxu0 0.0
        %3055 = vmatpush1.msra.mxu0 0.0
        %3056 = vmatprep.subr.mxu0 0.0
        %3057 = vmatpush1.msra.mxu0 0.0
        %3058 = vmatprep.subr.mxu0 0.0
        %3059 = vmatpush1.msra.mxu0 0.0
        %3060 = vmatprep.subr.mxu0 0.0
        %3061 = vmatpush1.msra.mxu0 0.0
        %3062 = vmatprep.subr.mxu0 0.0
        %3063 = vmatpush1.msra.mxu0 %v871
        %3064 = vmatprep.subr.mxu0 0.0
        %3065 = vmatpush1.msra.mxu0 %v865
        %3066 = vmatprep.subr.mxu0 0.0
        %3067 = vmatpush1.msra.mxu0 %v859
        %3068 = vmatprep.subr.mxu0 0.0
        %3069 = vmatpush1.msra.mxu0 %v853
        %3070 = vmatprep.subr.mxu0 0.0
        %3071 = vmatpush1.msra.mxu0 %v847
        %3072 = vmatprep.subr.mxu0 0.0
        %3073 = vmatpush1.msra.mxu0 %v841
        %3074 = vmatprep.subr.mxu0 0.0
        %3075 = vmatpush1.msra.mxu0 %v835
        %3076 = vmatprep.subr.mxu0 0.0
        %3077 = vmatpush1.msra.mxu0 %v829
        %3078 = vmatprep.subr.mxu0 0.0
        %3079 = vmatpush2.msra.mxu0 0.0
        %3080 = vmatprep.subr.mxu0 0.0
        %3081 = vmatpush2.msra.mxu0 0.0
        %3082 = vmatprep.subr.mxu0 0.0
        %3083 = vmatpush2.msra.mxu0 0.0
        %3084 = vmatprep.subr.mxu0 0.0
        %3085 = vmatpush2.msra.mxu0 0.0
        %3086 = vmatprep.subr.mxu0 0.0
        %3087 = vmatpush2.msra.mxu0 0.0
        %3088 = vmatprep.subr.mxu0 0.0
        %3089 = vmatpush2.msra.mxu0 0.0
        %3090 = vmatprep.subr.mxu0 0.0
        %3091 = vmatpush2.msra.mxu0 0.0
        %3092 = vmatprep.subr.mxu0 0.0
        %3093 = vmatpush2.msra.mxu0 0.0
        %3094 = vmatprep.subr.mxu0 0.0
        %3095 = vmatpush2.msra.mxu0 0.0
        %3096 = vmatprep.subr.mxu0 0.0
        %3097 = vmatpush2.msra.mxu0 0.0
        %3098 = vmatprep.subr.mxu0 0.0
        %3099 = vmatpush2.msra.mxu0 0.0
        %3100 = vmatprep.subr.mxu0 0.0
        %3101 = vmatpush2.msra.mxu0 0.0
        %3102 = vmatprep.subr.mxu0 0.0
        %3103 = vmatpush2.msra.mxu0 0.0
        %3104 = vmatprep.subr.mxu0 0.0
        %3105 = vmatpush2.msra.mxu0 0.0
        %3106 = vmatprep.subr.mxu0 0.0
        %3107 = vmatpush2.msra.mxu0 0.0
        %3108 = vmatprep.subr.mxu0 0.0
        %3109 = vmatpush2.msra.mxu0 0.0
        %3110 = vmatprep.mubr.f32.mxu0 0.0
        %3111 = vmatmul.mubr.f32.gmra.mxu0 %v3023
        %v3112 = vpop.f32.mrf.mxu0
        %v3113 = vadd.f32 0.0, %v3112
        %v3114 = vpop.f32.mrf.mxu0
        %3115 = vmatprep.mubr.f32.mxu0 0.0
        %3116 = vmatmul.mubr.f32.gmra.mxu0 %v3026
        %v3117 = vpop.f32.mrf.mxu0
        %v3118 = vadd.f32 0.0, %v3117
        %v3119 = vpop.f32.mrf.mxu0
        %3120 = vmatprep.mubr.f32.mxu0 0.0
        %3121 = vmatmul.mubr.f32.gmra.mxu0 %v3029
        %v3122 = vpop.f32.mrf.mxu0
        %v3123 = vadd.f32 0.0, %v3122
        %v3124 = vpop.f32.mrf.mxu0
        %3125 = vmatprep.mubr.f32.mxu0 0.0
        %3126 = vmatmul.mubr.f32.gmra.mxu0 %v3032
        %v3127 = vpop.f32.mrf.mxu0
        %v3128 = vadd.f32 0.0, %v3127
        %v3129 = vpop.f32.mrf.mxu0
        %3130 = vmatprep.mubr.f32.mxu0 0.0
        %3131 = vmatmul.mubr.f32.gmra.mxu0 %v3035
        %v3132 = vpop.f32.mrf.mxu0
        %v3133 = vadd.f32 0.0, %v3132
        %v3134 = vpop.f32.mrf.mxu0
        %3135 = vmatprep.mubr.f32.mxu0 0.0
        %3136 = vmatmul.mubr.f32.gmra.mxu0 %v3038
        %v3137 = vpop.f32.mrf.mxu0
        %v3138 = vadd.f32 0.0, %v3137
        %v3139 = vpop.f32.mrf.mxu0
        %3140 = vmatprep.mubr.f32.mxu0 0.0
        %3141 = vmatmul.mubr.f32.gmra.mxu0 %v3041
        %v3142 = vpop.f32.mrf.mxu0
        %v3143 = vadd.f32 0.0, %v3142
        %v3144 = vpop.f32.mrf.mxu0
        %3145 = vmatprep.mubr.f32.mxu0 0.0
        %3146 = vmatmul.mubr.f32.gmra.mxu0 %v3044
        %v3147 = vpop.f32.mrf.mxu0
        %v3148 = vadd.f32 0.0, %v3147
        %v3149 = vpop.f32.mrf.mxu0
        %3150 = vdwg.mxu0
        %v3151 = vrcp.pop %v3000
        %v3152 = vrcp.pop %v3003
        %v3153 = vrcp.pop %v3006
        %v3154 = vrcp.pop %v3009
        %v3155 = vrcp.pop %v3012
        %v3156 = vrcp.pop %v3015
        %v3157 = vrcp.pop %v3018
        %v3158 = vrcp.pop %v3021
        %v3159 = vmul.f32 %v3113, %v3151
        %v3160 = vmul.f32 %v3118, %v3152
        %v3161 = vmul.f32 %v3123, %v3153
        %v3162 = vmul.f32 %v3128, %v3154
        %v3163 = vmul.f32 %v3133, %v3155
        %v3164 = vmul.f32 %v3138, %v3156
        %v3165 = vmul.f32 %v3143, %v3157
        %v3166 = vmul.f32 %v3148, %v3158
        %3167 = vrot.lane.b32.xlu0 %v877, 64
        %v3168 = vpop.permute.xlu0 %3167
        %3169 = vrot.lane.b32.xlu0 %v881, 64
        %v3170 = vpop.permute.xlu0 %3169
        %3171 = vrot.lane.b32.xlu0 %v885, 64
        %v3172 = vpop.permute.xlu0 %3171
        %3173 = vrot.lane.b32.xlu0 %v889, 64
        %v3174 = vpop.permute.xlu0 %3173
        %3175 = vrot.lane.b32.xlu0 %v893, 64
        %v3176 = vpop.permute.xlu0 %3175
        %3177 = vrot.lane.b32.xlu0 %v897, 64
        %v3178 = vpop.permute.xlu0 %3177
        %3179 = vrot.lane.b32.xlu0 %v901, 64
        %v3180 = vpop.permute.xlu0 %3179
        %3181 = vrot.lane.b32.xlu0 %v905, 64
        %v3182 = vpop.permute.xlu0 %3181
        %v3183 = vsel %vm1356, %v3168, 0
        %v3185 = vsel %vm1356, %v3170, 0
        %v3187 = vsel %vm1356, %v3172, 0
        %v3189 = vsel %vm1356, %v3174, 0
        %v3191 = vsel %vm1356, %v3176, 0
        %v3193 = vsel %vm1356, %v3178, 0
        %v3195 = vsel %vm1356, %v3180, 0
        %v3197 = vsel %vm1356, %v3182, 0
        %3199 = vmatprep.subr.mxu0 0.0
        %3200 = vmatpush1.msra.mxu0 0.0
        %3201 = vmatprep.subr.mxu0 0.0
        %3202 = vmatpush1.msra.mxu0 0.0
        %3203 = vmatprep.subr.mxu0 0.0
        %3204 = vmatpush1.msra.mxu0 0.0
        %3205 = vmatprep.subr.mxu0 0.0
        %3206 = vmatpush1.msra.mxu0 0.0
        %3207 = vmatprep.subr.mxu0 0.0
        %3208 = vmatpush1.msra.mxu0 0.0
        %3209 = vmatprep.subr.mxu0 0.0
        %3210 = vmatpush1.msra.mxu0 0.0
        %3211 = vmatprep.subr.mxu0 0.0
        %3212 = vmatpush1.msra.mxu0 0.0
        %3213 = vmatprep.subr.mxu0 0.0
        %3214 = vmatpush1.msra.mxu0 0.0
        %3215 = vmatprep.subr.mxu0 0.0
        %3216 = vmatpush1.msra.mxu0 %v1273
        %3217 = vmatprep.subr.mxu0 0.0
        %3218 = vmatpush1.msra.mxu0 %v1268
        %3219 = vmatprep.subr.mxu0 0.0
        %3220 = vmatpush1.msra.mxu0 %v1263
        %3221 = vmatprep.subr.mxu0 0.0
        %3222 = vmatpush1.msra.mxu0 %v1258
        %3223 = vmatprep.subr.mxu0 0.0
        %3224 = vmatpush1.msra.mxu0 %v1253
        %3225 = vmatprep.subr.mxu0 0.0
        %3226 = vmatpush1.msra.mxu0 %v1248
        %3227 = vmatprep.subr.mxu0 0.0
        %3228 = vmatpush1.msra.mxu0 %v1243
        %3229 = vmatprep.subr.mxu0 0.0
        %3230 = vmatpush1.msra.mxu0 %v1238
        %3231 = vmatprep.subr.mxu0 0.0
        %3232 = vmatpush2.msra.mxu0 0.0
        %3233 = vmatprep.subr.mxu0 0.0
        %3234 = vmatpush2.msra.mxu0 0.0
        %3235 = vmatprep.subr.mxu0 0.0
        %3236 = vmatpush2.msra.mxu0 0.0
        %3237 = vmatprep.subr.mxu0 0.0
        %3238 = vmatpush2.msra.mxu0 0.0
        %3239 = vmatprep.subr.mxu0 0.0
        %3240 = vmatpush2.msra.mxu0 0.0
        %3241 = vmatprep.subr.mxu0 0.0
        %3242 = vmatpush2.msra.mxu0 0.0
        %3243 = vmatprep.subr.mxu0 0.0
        %3244 = vmatpush2.msra.mxu0 0.0
        %3245 = vmatprep.subr.mxu0 0.0
        %3246 = vmatpush2.msra.mxu0 0.0
        %3247 = vmatprep.subr.mxu0 0.0
        %3248 = vmatpush2.msra.mxu0 0.0
        %3249 = vmatprep.subr.mxu0 0.0
        %3250 = vmatpush2.msra.mxu0 0.0
        %3251 = vmatprep.subr.mxu0 0.0
        %3252 = vmatpush2.msra.mxu0 0.0
        %3253 = vmatprep.subr.mxu0 0.0
        %3254 = vmatpush2.msra.mxu0 0.0
        %3255 = vmatprep.subr.mxu0 0.0
        %3256 = vmatpush2.msra.mxu0 0.0
        %3257 = vmatprep.subr.mxu0 0.0
        %3258 = vmatpush2.msra.mxu0 0.0
        %3259 = vmatprep.subr.mxu0 0.0
        %3260 = vmatpush2.msra.mxu0 0.0
        %3261 = vmatprep.subr.mxu0 0.0
        %3262 = vmatpush2.msra.mxu0 0.0
        %3263 = vmatprep.mubr.f32.mxu0 0.0
        %3264 = vmatmul.mubr.f32.gmra.mxu0 %v3183
        %v3265 = vpop.f32.mrf.mxu0
        %v3266 = vadd.f32 0.0, %v3265
        %v3267 = vpop.f32.mrf.mxu0
        %3268 = vmatprep.mubr.f32.mxu0 0.0
        %3269 = vmatmul.mubr.f32.gmra.mxu0 %v3185
        %v3270 = vpop.f32.mrf.mxu0
        %v3271 = vadd.f32 0.0, %v3270
        %v3272 = vpop.f32.mrf.mxu0
        %3273 = vmatprep.mubr.f32.mxu0 0.0
        %3274 = vmatmul.mubr.f32.gmra.mxu0 %v3187
        %v3275 = vpop.f32.mrf.mxu0
        %v3276 = vadd.f32 0.0, %v3275
        %v3277 = vpop.f32.mrf.mxu0
        %3278 = vmatprep.mubr.f32.mxu0 0.0
        %3279 = vmatmul.mubr.f32.gmra.mxu0 %v3189
        %v3280 = vpop.f32.mrf.mxu0
        %v3281 = vadd.f32 0.0, %v3280
        %v3282 = vpop.f32.mrf.mxu0
        %3283 = vmatprep.mubr.f32.mxu0 0.0
        %3284 = vmatmul.mubr.f32.gmra.mxu0 %v3191
        %v3285 = vpop.f32.mrf.mxu0
        %v3286 = vadd.f32 0.0, %v3285
        %v3287 = vpop.f32.mrf.mxu0
        %3288 = vmatprep.mubr.f32.mxu0 0.0
        %3289 = vmatmul.mubr.f32.gmra.mxu0 %v3193
        %v3290 = vpop.f32.mrf.mxu0
        %v3291 = vadd.f32 0.0, %v3290
        %v3292 = vpop.f32.mrf.mxu0
        %3293 = vmatprep.mubr.f32.mxu0 0.0
        %3294 = vmatmul.mubr.f32.gmra.mxu0 %v3195
        %v3295 = vpop.f32.mrf.mxu0
        %v3296 = vadd.f32 0.0, %v3295
        %v3297 = vpop.f32.mrf.mxu0
        %3298 = vmatprep.mubr.f32.mxu0 0.0
        %3299 = vmatmul.mubr.f32.gmra.mxu0 %v3197
        %v3300 = vpop.f32.mrf.mxu0
        %v3301 = vadd.f32 0.0, %v3300
        %v3302 = vpop.f32.mrf.mxu0
        %3303 = vdwg.mxu0
        %v3304 = vsel %vm1356, %v3266, -inf
        %3305 = vmax.xlane.f32.xlu0 %v3304
        %v3306 = vpop.xlane.xlu0 %3305
        %v3307 = vsel %vm1356, %v3271, -inf
        %3308 = vmax.xlane.f32.xlu0 %v3307
        %v3309 = vpop.xlane.xlu0 %3308
        %v3310 = vsel %vm1356, %v3276, -inf
        %3311 = vmax.xlane.f32.xlu0 %v3310
        %v3312 = vpop.xlane.xlu0 %3311
        %v3313 = vsel %vm1356, %v3281, -inf
        %3314 = vmax.xlane.f32.xlu0 %v3313
        %v3315 = vpop.xlane.xlu0 %3314
        %v3316 = vsel %vm1356, %v3286, -inf
        %3317 = vmax.xlane.f32.xlu0 %v3316
        %v3318 = vpop.xlane.xlu0 %3317
        %v3319 = vsel %vm1356, %v3291, -inf
        %3320 = vmax.xlane.f32.xlu0 %v3319
        %v3321 = vpop.xlane.xlu0 %3320
        %v3322 = vsel %vm1356, %v3296, -inf
        %3323 = vmax.xlane.f32.xlu0 %v3322
        %v3324 = vpop.xlane.xlu0 %3323
        %v3325 = vsel %vm1356, %v3301, -inf
        %3326 = vmax.xlane.f32.xlu0 %v3325
        %v3327 = vpop.xlane.xlu0 %3326
        %v3328 = vsub.f32 %v3266, %v3306
        %v3329 = vsub.f32 %v3271, %v3309
        %v3330 = vsub.f32 %v3276, %v3312
        %v3331 = vsub.f32 %v3281, %v3315
        %v3332 = vsub.f32 %v3286, %v3318
        %v3333 = vsub.f32 %v3291, %v3321
        %v3334 = vsub.f32 %v3296, %v3324
        %v3335 = vsub.f32 %v3301, %v3327
        %v3336 = vmul.f32 %v3328, 1.442695
        %v3337 = vpow.pop %v3336
        %v3338 = vmul.f32 %v3329, 1.442695
        %v3339 = vpow.pop %v3338
        %v3340 = vmul.f32 %v3330, 1.442695
        %v3341 = vpow.pop %v3340
        %v3342 = vmul.f32 %v3331, 1.442695
        %v3343 = vpow.pop %v3342
        %v3344 = vmul.f32 %v3332, 1.442695
        %v3345 = vpow.pop %v3344
        %v3346 = vmul.f32 %v3333, 1.442695
        %v3347 = vpow.pop %v3346
        %v3348 = vmul.f32 %v3334, 1.442695
        %v3349 = vpow.pop %v3348
        %v3350 = vmul.f32 %v3335, 1.442695
        %v3351 = vpow.pop %v3350
        %v3352 = vsel %vm1356, %v3337, 0.0
        %3353 = vadd.xlane.f32.xlu0 %v3352
        %v3354 = vpop.xlane.xlu0 %3353
        %v3355 = vsel %vm1356, %v3339, 0.0
        %3356 = vadd.xlane.f32.xlu0 %v3355
        %v3357 = vpop.xlane.xlu0 %3356
        %v3358 = vsel %vm1356, %v3341, 0.0
        %3359 = vadd.xlane.f32.xlu0 %v3358
        %v3360 = vpop.xlane.xlu0 %3359
        %v3361 = vsel %vm1356, %v3343, 0.0
        %3362 = vadd.xlane.f32.xlu0 %v3361
        %v3363 = vpop.xlane.xlu0 %3362
        %v3364 = vsel %vm1356, %v3345, 0.0
        %3365 = vadd.xlane.f32.xlu0 %v3364
        %v3366 = vpop.xlane.xlu0 %3365
        %v3367 = vsel %vm1356, %v3347, 0.0
        %3368 = vadd.xlane.f32.xlu0 %v3367
        %v3369 = vpop.xlane.xlu0 %3368
        %v3370 = vsel %vm1356, %v3349, 0.0
        %3371 = vadd.xlane.f32.xlu0 %v3370
        %v3372 = vpop.xlane.xlu0 %3371
        %v3373 = vsel %vm1356, %v3351, 0.0
        %3374 = vadd.xlane.f32.xlu0 %v3373
        %v3375 = vpop.xlane.xlu0 %3374
        %3384 = vrot.lane.b32.xlu0 %v829, 64
        %v3385 = vpop.permute.xlu0 %3384
        %3386 = vrot.lane.b32.xlu0 %v835, 64
        %v3387 = vpop.permute.xlu0 %3386
        %3388 = vrot.lane.b32.xlu0 %v841, 64
        %v3389 = vpop.permute.xlu0 %3388
        %3390 = vrot.lane.b32.xlu0 %v847, 64
        %v3391 = vpop.permute.xlu0 %3390
        %3392 = vrot.lane.b32.xlu0 %v853, 64
        %v3393 = vpop.permute.xlu0 %3392
        %3394 = vrot.lane.b32.xlu0 %v859, 64
        %v3395 = vpop.permute.xlu0 %3394
        %3396 = vrot.lane.b32.xlu0 %v865, 64
        %v3397 = vpop.permute.xlu0 %3396
        %3398 = vrot.lane.b32.xlu0 %v871, 64
        %v3399 = vpop.permute.xlu0 %3398
        %v3409 = vsel %vm1356, %v3337, 0
        %v3412 = vsel %vm1356, %v3339, 0
        %v3415 = vsel %vm1356, %v3341, 0
        %v3418 = vsel %vm1356, %v3343, 0
        %v3421 = vsel %vm1356, %v3345, 0
        %v3424 = vsel %vm1356, %v3347, 0
        %v3427 = vsel %vm1356, %v3349, 0
        %v3430 = vsel %vm1356, %v3351, 0
        %3432 = vmatprep.subr.mxu0 0.0
        %3433 = vmatpush1.msra.mxu0 0.0
        %3434 = vmatprep.subr.mxu0 0.0
        %3435 = vmatpush1.msra.mxu0 0.0
        %3436 = vmatprep.subr.mxu0 0.0
        %3437 = vmatpush1.msra.mxu0 0.0
        %3438 = vmatprep.subr.mxu0 0.0
        %3439 = vmatpush1.msra.mxu0 0.0
        %3440 = vmatprep.subr.mxu0 0.0
        %3441 = vmatpush1.msra.mxu0 0.0
        %3442 = vmatprep.subr.mxu0 0.0
        %3443 = vmatpush1.msra.mxu0 0.0
        %3444 = vmatprep.subr.mxu0 0.0
        %3445 = vmatpush1.msra.mxu0 0.0
        %3446 = vmatprep.subr.mxu0 0.0
        %3447 = vmatpush1.msra.mxu0 0.0
        %3448 = vmatprep.subr.mxu0 0.0
        %3449 = vmatpush1.msra.mxu0 %v3399
        %3450 = vmatprep.subr.mxu0 0.0
        %3451 = vmatpush1.msra.mxu0 %v3397
        %3452 = vmatprep.subr.mxu0 0.0
        %3453 = vmatpush1.msra.mxu0 %v3395
        %3454 = vmatprep.subr.mxu0 0.0
        %3455 = vmatpush1.msra.mxu0 %v3393
        %3456 = vmatprep.subr.mxu0 0.0
        %3457 = vmatpush1.msra.mxu0 %v3391
        %3458 = vmatprep.subr.mxu0 0.0
        %3459 = vmatpush1.msra.mxu0 %v3389
        %3460 = vmatprep.subr.mxu0 0.0
        %3461 = vmatpush1.msra.mxu0 %v3387
        %3462 = vmatprep.subr.mxu0 0.0
        %3463 = vmatpush1.msra.mxu0 %v3385
        %3464 = vmatprep.subr.mxu0 0.0
        %3465 = vmatpush2.msra.mxu0 0.0
        %3466 = vmatprep.subr.mxu0 0.0
        %3467 = vmatpush2.msra.mxu0 0.0
        %3468 = vmatprep.subr.mxu0 0.0
        %3469 = vmatpush2.msra.mxu0 0.0
        %3470 = vmatprep.subr.mxu0 0.0
        %3471 = vmatpush2.msra.mxu0 0.0
        %3472 = vmatprep.subr.mxu0 0.0
        %3473 = vmatpush2.msra.mxu0 0.0
        %3474 = vmatprep.subr.mxu0 0.0
        %3475 = vmatpush2.msra.mxu0 0.0
        %3476 = vmatprep.subr.mxu0 0.0
        %3477 = vmatpush2.msra.mxu0 0.0
        %3478 = vmatprep.subr.mxu0 0.0
        %3479 = vmatpush2.msra.mxu0 0.0
        %3480 = vmatprep.subr.mxu0 0.0
        %3481 = vmatpush2.msra.mxu0 0.0
        %3482 = vmatprep.subr.mxu0 0.0
        %3483 = vmatpush2.msra.mxu0 0.0
        %3484 = vmatprep.subr.mxu0 0.0
        %3485 = vmatpush2.msra.mxu0 0.0
        %3486 = vmatprep.subr.mxu0 0.0
        %3487 = vmatpush2.msra.mxu0 0.0
        %3488 = vmatprep.subr.mxu0 0.0
        %3489 = vmatpush2.msra.mxu0 0.0
        %3490 = vmatprep.subr.mxu0 0.0
        %3491 = vmatpush2.msra.mxu0 0.0
        %3492 = vmatprep.subr.mxu0 0.0
        %3493 = vmatpush2.msra.mxu0 0.0
        %3494 = vmatprep.subr.mxu0 0.0
        %3495 = vmatpush2.msra.mxu0 0.0
        %3496 = vmatprep.mubr.f32.mxu0 0.0
        %3497 = vmatmul.mubr.f32.gmra.mxu0 %v3409
        %v3498 = vpop.f32.mrf.mxu0
        %v3499 = vadd.f32 0.0, %v3498
        %v3500 = vpop.f32.mrf.mxu0
        %3501 = vmatprep.mubr.f32.mxu0 0.0
        %3502 = vmatmul.mubr.f32.gmra.mxu0 %v3412
        %v3503 = vpop.f32.mrf.mxu0
        %v3504 = vadd.f32 0.0, %v3503
        %v3505 = vpop.f32.mrf.mxu0
        %3506 = vmatprep.mubr.f32.mxu0 0.0
        %3507 = vmatmul.mubr.f32.gmra.mxu0 %v3415
        %v3508 = vpop.f32.mrf.mxu0
        %v3509 = vadd.f32 0.0, %v3508
        %v3510 = vpop.f32.mrf.mxu0
        %3511 = vmatprep.mubr.f32.mxu0 0.0
        %3512 = vmatmul.mubr.f32.gmra.mxu0 %v3418
        %v3513 = vpop.f32.mrf.mxu0
        %v3514 = vadd.f32 0.0, %v3513
        %v3515 = vpop.f32.mrf.mxu0
        %3516 = vmatprep.mubr.f32.mxu0 0.0
        %3517 = vmatmul.mubr.f32.gmra.mxu0 %v3421
        %v3518 = vpop.f32.mrf.mxu0
        %v3519 = vadd.f32 0.0, %v3518
        %v3520 = vpop.f32.mrf.mxu0
        %3521 = vmatprep.mubr.f32.mxu0 0.0
        %3522 = vmatmul.mubr.f32.gmra.mxu0 %v3424
        %v3523 = vpop.f32.mrf.mxu0
        %v3524 = vadd.f32 0.0, %v3523
        %v3525 = vpop.f32.mrf.mxu0
        %3526 = vmatprep.mubr.f32.mxu0 0.0
        %3527 = vmatmul.mubr.f32.gmra.mxu0 %v3427
        %v3528 = vpop.f32.mrf.mxu0
        %v3529 = vadd.f32 0.0, %v3528
        %v3530 = vpop.f32.mrf.mxu0
        %3531 = vmatprep.mubr.f32.mxu0 0.0
        %3532 = vmatmul.mubr.f32.gmra.mxu0 %v3430
        %v3533 = vpop.f32.mrf.mxu0
        %v3534 = vadd.f32 0.0, %v3533
        %v3535 = vpop.f32.mrf.mxu0
        %3536 = vdwg.mxu0
        %v3537 = vrcp.pop %v3354
        %v3538 = vrcp.pop %v3357
        %v3539 = vrcp.pop %v3360
        %v3540 = vrcp.pop %v3363
        %v3541 = vrcp.pop %v3366
        %v3542 = vrcp.pop %v3369
        %v3543 = vrcp.pop %v3372
        %v3544 = vrcp.pop %v3375
        %v3545 = vmul.f32 %v3499, %v3537
        %v3546 = vmul.f32 %v3504, %v3538
        %v3547 = vmul.f32 %v3509, %v3539
        %v3548 = vmul.f32 %v3514, %v3540
        %v3549 = vmul.f32 %v3519, %v3541
        %v3550 = vmul.f32 %v3524, %v3542
        %v3551 = vmul.f32 %v3529, %v3543
        %v3552 = vmul.f32 %v3534, %v3544
        %v3554 = vsel %vm1356, %v878, 0
        %v3557 = vsel %vm1356, %v882, 0
        %v3560 = vsel %vm1356, %v886, 0
        %v3563 = vsel %vm1356, %v890, 0
        %v3566 = vsel %vm1356, %v894, 0
        %v3569 = vsel %vm1356, %v898, 0
        %v3572 = vsel %vm1356, %v902, 0
        %v3575 = vsel %vm1356, %v906, 0
        %3577 = vmatprep.subr.mxu0 0.0
        %3578 = vmatpush1.msra.mxu0 0.0
        %3579 = vmatprep.subr.mxu0 0.0
        %3580 = vmatpush1.msra.mxu0 0.0
        %3581 = vmatprep.subr.mxu0 0.0
        %3582 = vmatpush1.msra.mxu0 0.0
        %3583 = vmatprep.subr.mxu0 0.0
        %3584 = vmatpush1.msra.mxu0 0.0
        %3585 = vmatprep.subr.mxu0 0.0
        %3586 = vmatpush1.msra.mxu0 0.0
        %3587 = vmatprep.subr.mxu0 0.0
        %3588 = vmatpush1.msra.mxu0 0.0
        %3589 = vmatprep.subr.mxu0 0.0
        %3590 = vmatpush1.msra.mxu0 0.0
        %3591 = vmatprep.subr.mxu0 0.0
        %3592 = vmatpush1.msra.mxu0 0.0
        %3593 = vmatprep.subr.mxu0 0.0
        %3594 = vmatpush1.msra.mxu0 %v1313
        %3595 = vmatprep.subr.mxu0 0.0
        %3596 = vmatpush1.msra.mxu0 %v1308
        %3597 = vmatprep.subr.mxu0 0.0
        %3598 = vmatpush1.msra.mxu0 %v1303
        %3599 = vmatprep.subr.mxu0 0.0
        %3600 = vmatpush1.msra.mxu0 %v1298
        %3601 = vmatprep.subr.mxu0 0.0
        %3602 = vmatpush1.msra.mxu0 %v1293
        %3603 = vmatprep.subr.mxu0 0.0
        %3604 = vmatpush1.msra.mxu0 %v1288
        %3605 = vmatprep.subr.mxu0 0.0
        %3606 = vmatpush1.msra.mxu0 %v1283
        %3607 = vmatprep.subr.mxu0 0.0
        %3608 = vmatpush1.msra.mxu0 %v1278
        %3609 = vmatprep.subr.mxu0 0.0
        %3610 = vmatpush2.msra.mxu0 0.0
        %3611 = vmatprep.subr.mxu0 0.0
        %3612 = vmatpush2.msra.mxu0 0.0
        %3613 = vmatprep.subr.mxu0 0.0
        %3614 = vmatpush2.msra.mxu0 0.0
        %3615 = vmatprep.subr.mxu0 0.0
        %3616 = vmatpush2.msra.mxu0 0.0
        %3617 = vmatprep.subr.mxu0 0.0
        %3618 = vmatpush2.msra.mxu0 0.0
        %3619 = vmatprep.subr.mxu0 0.0
        %3620 = vmatpush2.msra.mxu0 0.0
        %3621 = vmatprep.subr.mxu0 0.0
        %3622 = vmatpush2.msra.mxu0 0.0
        %3623 = vmatprep.subr.mxu0 0.0
        %3624 = vmatpush2.msra.mxu0 0.0
        %3625 = vmatprep.subr.mxu0 0.0
        %3626 = vmatpush2.msra.mxu0 0.0
        %3627 = vmatprep.subr.mxu0 0.0
        %3628 = vmatpush2.msra.mxu0 0.0
        %3629 = vmatprep.subr.mxu0 0.0
        %3630 = vmatpush2.msra.mxu0 0.0
        %3631 = vmatprep.subr.mxu0 0.0
        %3632 = vmatpush2.msra.mxu0 0.0
        %3633 = vmatprep.subr.mxu0 0.0
        %3634 = vmatpush2.msra.mxu0 0.0
        %3635 = vmatprep.subr.mxu0 0.0
        %3636 = vmatpush2.msra.mxu0 0.0
        %3637 = vmatprep.subr.mxu0 0.0
        %3638 = vmatpush2.msra.mxu0 0.0
        %3639 = vmatprep.subr.mxu0 0.0
        %3640 = vmatpush2.msra.mxu0 0.0
        %3641 = vmatprep.mubr.f32.mxu0 0.0
        %3642 = vmatmul.mubr.f32.gmra.mxu0 %v3554
        %v3643 = vpop.f32.mrf.mxu0
        %v3644 = vadd.f32 0.0, %v3643
        %v3645 = vpop.f32.mrf.mxu0
        %3646 = vmatprep.mubr.f32.mxu0 0.0
        %3647 = vmatmul.mubr.f32.gmra.mxu0 %v3557
        %v3648 = vpop.f32.mrf.mxu0
        %v3649 = vadd.f32 0.0, %v3648
        %v3650 = vpop.f32.mrf.mxu0
        %3651 = vmatprep.mubr.f32.mxu0 0.0
        %3652 = vmatmul.mubr.f32.gmra.mxu0 %v3560
        %v3653 = vpop.f32.mrf.mxu0
        %v3654 = vadd.f32 0.0, %v3653
        %v3655 = vpop.f32.mrf.mxu0
        %3656 = vmatprep.mubr.f32.mxu0 0.0
        %3657 = vmatmul.mubr.f32.gmra.mxu0 %v3563
        %v3658 = vpop.f32.mrf.mxu0
        %v3659 = vadd.f32 0.0, %v3658
        %v3660 = vpop.f32.mrf.mxu0
        %3661 = vmatprep.mubr.f32.mxu0 0.0
        %3662 = vmatmul.mubr.f32.gmra.mxu0 %v3566
        %v3663 = vpop.f32.mrf.mxu0
        %v3664 = vadd.f32 0.0, %v3663
        %v3665 = vpop.f32.mrf.mxu0
        %3666 = vmatprep.mubr.f32.mxu0 0.0
        %3667 = vmatmul.mubr.f32.gmra.mxu0 %v3569
        %v3668 = vpop.f32.mrf.mxu0
        %v3669 = vadd.f32 0.0, %v3668
        %v3670 = vpop.f32.mrf.mxu0
        %3671 = vmatprep.mubr.f32.mxu0 0.0
        %3672 = vmatmul.mubr.f32.gmra.mxu0 %v3572
        %v3673 = vpop.f32.mrf.mxu0
        %v3674 = vadd.f32 0.0, %v3673
        %v3675 = vpop.f32.mrf.mxu0
        %3676 = vmatprep.mubr.f32.mxu0 0.0
        %3677 = vmatmul.mubr.f32.gmra.mxu0 %v3575
        %v3678 = vpop.f32.mrf.mxu0
        %v3679 = vadd.f32 0.0, %v3678
        %v3680 = vpop.f32.mrf.mxu0
        %3681 = vdwg.mxu0
        %v3682 = vsel %vm1356, %v3644, -inf
        %3683 = vmax.xlane.f32.xlu0 %v3682
        %v3684 = vpop.xlane.xlu0 %3683
        %v3685 = vsel %vm1356, %v3649, -inf
        %3686 = vmax.xlane.f32.xlu0 %v3685
        %v3687 = vpop.xlane.xlu0 %3686
        %v3688 = vsel %vm1356, %v3654, -inf
        %3689 = vmax.xlane.f32.xlu0 %v3688
        %v3690 = vpop.xlane.xlu0 %3689
        %v3691 = vsel %vm1356, %v3659, -inf
        %3692 = vmax.xlane.f32.xlu0 %v3691
        %v3693 = vpop.xlane.xlu0 %3692
        %v3694 = vsel %vm1356, %v3664, -inf
        %3695 = vmax.xlane.f32.xlu0 %v3694
        %v3696 = vpop.xlane.xlu0 %3695
        %v3697 = vsel %vm1356, %v3669, -inf
        %3698 = vmax.xlane.f32.xlu0 %v3697
        %v3699 = vpop.xlane.xlu0 %3698
        %v3700 = vsel %vm1356, %v3674, -inf
        %3701 = vmax.xlane.f32.xlu0 %v3700
        %v3702 = vpop.xlane.xlu0 %3701
        %v3703 = vsel %vm1356, %v3679, -inf
        %3704 = vmax.xlane.f32.xlu0 %v3703
        %v3705 = vpop.xlane.xlu0 %3704
        %v3706 = vsub.f32 %v3644, %v3684
        %v3707 = vsub.f32 %v3649, %v3687
        %v3708 = vsub.f32 %v3654, %v3690
        %v3709 = vsub.f32 %v3659, %v3693
        %v3710 = vsub.f32 %v3664, %v3696
        %v3711 = vsub.f32 %v3669, %v3699
        %v3712 = vsub.f32 %v3674, %v3702
        %v3713 = vsub.f32 %v3679, %v3705
        %v3714 = vmul.f32 %v3706, 1.442695
        %v3715 = vpow.pop %v3714
        %v3716 = vmul.f32 %v3707, 1.442695
        %v3717 = vpow.pop %v3716
        %v3718 = vmul.f32 %v3708, 1.442695
        %v3719 = vpow.pop %v3718
        %v3720 = vmul.f32 %v3709, 1.442695
        %v3721 = vpow.pop %v3720
        %v3722 = vmul.f32 %v3710, 1.442695
        %v3723 = vpow.pop %v3722
        %v3724 = vmul.f32 %v3711, 1.442695
        %v3725 = vpow.pop %v3724
        %v3726 = vmul.f32 %v3712, 1.442695
        %v3727 = vpow.pop %v3726
        %v3728 = vmul.f32 %v3713, 1.442695
        %v3729 = vpow.pop %v3728
        %v3730 = vsel %vm1356, %v3715, 0.0
        %3731 = vadd.xlane.f32.xlu0 %v3730
        %v3732 = vpop.xlane.xlu0 %3731
        %v3733 = vsel %vm1356, %v3717, 0.0
        %3734 = vadd.xlane.f32.xlu0 %v3733
        %v3735 = vpop.xlane.xlu0 %3734
        %v3736 = vsel %vm1356, %v3719, 0.0
        %3737 = vadd.xlane.f32.xlu0 %v3736
        %v3738 = vpop.xlane.xlu0 %3737
        %v3739 = vsel %vm1356, %v3721, 0.0
        %3740 = vadd.xlane.f32.xlu0 %v3739
        %v3741 = vpop.xlane.xlu0 %3740
        %v3742 = vsel %vm1356, %v3723, 0.0
        %3743 = vadd.xlane.f32.xlu0 %v3742
        %v3744 = vpop.xlane.xlu0 %3743
        %v3745 = vsel %vm1356, %v3725, 0.0
        %3746 = vadd.xlane.f32.xlu0 %v3745
        %v3747 = vpop.xlane.xlu0 %3746
        %v3748 = vsel %vm1356, %v3727, 0.0
        %3749 = vadd.xlane.f32.xlu0 %v3748
        %v3750 = vpop.xlane.xlu0 %3749
        %v3751 = vsel %vm1356, %v3729, 0.0
        %3752 = vadd.xlane.f32.xlu0 %v3751
        %v3753 = vpop.xlane.xlu0 %3752
        %v3755 = vsel %vm1356, %v3715, 0
        %v3758 = vsel %vm1356, %v3717, 0
        %v3761 = vsel %vm1356, %v3719, 0
        %v3764 = vsel %vm1356, %v3721, 0
        %v3767 = vsel %vm1356, %v3723, 0
        %v3770 = vsel %vm1356, %v3725, 0
        %v3773 = vsel %vm1356, %v3727, 0
        %v3776 = vsel %vm1356, %v3729, 0
        %3778 = vmatprep.subr.mxu0 0.0
        %3779 = vmatpush1.msra.mxu0 0.0
        %3780 = vmatprep.subr.mxu0 0.0
        %3781 = vmatpush1.msra.mxu0 0.0
        %3782 = vmatprep.subr.mxu0 0.0
        %3783 = vmatpush1.msra.mxu0 0.0
        %3784 = vmatprep.subr.mxu0 0.0
        %3785 = vmatpush1.msra.mxu0 0.0
        %3786 = vmatprep.subr.mxu0 0.0
        %3787 = vmatpush1.msra.mxu0 0.0
        %3788 = vmatprep.subr.mxu0 0.0
        %3789 = vmatpush1.msra.mxu0 0.0
        %3790 = vmatprep.subr.mxu0 0.0
        %3791 = vmatpush1.msra.mxu0 0.0
        %3792 = vmatprep.subr.mxu0 0.0
        %3793 = vmatpush1.msra.mxu0 0.0
        %3794 = vmatprep.subr.mxu0 0.0
        %3795 = vmatpush1.msra.mxu0 %v873
        %3796 = vmatprep.subr.mxu0 0.0
        %3797 = vmatpush1.msra.mxu0 %v867
        %3798 = vmatprep.subr.mxu0 0.0
        %3799 = vmatpush1.msra.mxu0 %v861
        %3800 = vmatprep.subr.mxu0 0.0
        %3801 = vmatpush1.msra.mxu0 %v855
        %3802 = vmatprep.subr.mxu0 0.0
        %3803 = vmatpush1.msra.mxu0 %v849
        %3804 = vmatprep.subr.mxu0 0.0
        %3805 = vmatpush1.msra.mxu0 %v843
        %3806 = vmatprep.subr.mxu0 0.0
        %3807 = vmatpush1.msra.mxu0 %v837
        %3808 = vmatprep.subr.mxu0 0.0
        %3809 = vmatpush1.msra.mxu0 %v831
        %3810 = vmatprep.subr.mxu0 0.0
        %3811 = vmatpush2.msra.mxu0 0.0
        %3812 = vmatprep.subr.mxu0 0.0
        %3813 = vmatpush2.msra.mxu0 0.0
        %3814 = vmatprep.subr.mxu0 0.0
        %3815 = vmatpush2.msra.mxu0 0.0
        %3816 = vmatprep.subr.mxu0 0.0
        %3817 = vmatpush2.msra.mxu0 0.0
        %3818 = vmatprep.subr.mxu0 0.0
        %3819 = vmatpush2.msra.mxu0 0.0
        %3820 = vmatprep.subr.mxu0 0.0
        %3821 = vmatpush2.msra.mxu0 0.0
        %3822 = vmatprep.subr.mxu0 0.0
        %3823 = vmatpush2.msra.mxu0 0.0
        %3824 = vmatprep.subr.mxu0 0.0
        %3825 = vmatpush2.msra.mxu0 0.0
        %3826 = vmatprep.subr.mxu0 0.0
        %3827 = vmatpush2.msra.mxu0 0.0
        %3828 = vmatprep.subr.mxu0 0.0
        %3829 = vmatpush2.msra.mxu0 0.0
        %3830 = vmatprep.subr.mxu0 0.0
        %3831 = vmatpush2.msra.mxu0 0.0
        %3832 = vmatprep.subr.mxu0 0.0
        %3833 = vmatpush2.msra.mxu0 0.0
        %3834 = vmatprep.subr.mxu0 0.0
        %3835 = vmatpush2.msra.mxu0 0.0
        %3836 = vmatprep.subr.mxu0 0.0
        %3837 = vmatpush2.msra.mxu0 0.0
        %3838 = vmatprep.subr.mxu0 0.0
        %3839 = vmatpush2.msra.mxu0 0.0
        %3840 = vmatprep.subr.mxu0 0.0
        %3841 = vmatpush2.msra.mxu0 0.0
        %3842 = vmatprep.mubr.f32.mxu0 0.0
        %3843 = vmatmul.mubr.f32.gmra.mxu0 %v3755
        %v3844 = vpop.f32.mrf.mxu0
        %v3845 = vadd.f32 0.0, %v3844
        %v3846 = vpop.f32.mrf.mxu0
        %3847 = vmatprep.mubr.f32.mxu0 0.0
        %3848 = vmatmul.mubr.f32.gmra.mxu0 %v3758
        %v3849 = vpop.f32.mrf.mxu0
        %v3850 = vadd.f32 0.0, %v3849
        %v3851 = vpop.f32.mrf.mxu0
        %3852 = vmatprep.mubr.f32.mxu0 0.0
        %3853 = vmatmul.mubr.f32.gmra.mxu0 %v3761
        %v3854 = vpop.f32.mrf.mxu0
        %v3855 = vadd.f32 0.0, %v3854
        %v3856 = vpop.f32.mrf.mxu0
        %3857 = vmatprep.mubr.f32.mxu0 0.0
        %3858 = vmatmul.mubr.f32.gmra.mxu0 %v3764
        %v3859 = vpop.f32.mrf.mxu0
        %v3860 = vadd.f32 0.0, %v3859
        %v3861 = vpop.f32.mrf.mxu0
        %3862 = vmatprep.mubr.f32.mxu0 0.0
        %3863 = vmatmul.mubr.f32.gmra.mxu0 %v3767
        %v3864 = vpop.f32.mrf.mxu0
        %v3865 = vadd.f32 0.0, %v3864
        %v3866 = vpop.f32.mrf.mxu0
        %3867 = vmatprep.mubr.f32.mxu0 0.0
        %3868 = vmatmul.mubr.f32.gmra.mxu0 %v3770
        %v3869 = vpop.f32.mrf.mxu0
        %v3870 = vadd.f32 0.0, %v3869
        %v3871 = vpop.f32.mrf.mxu0
        %3872 = vmatprep.mubr.f32.mxu0 0.0
        %3873 = vmatmul.mubr.f32.gmra.mxu0 %v3773
        %v3874 = vpop.f32.mrf.mxu0
        %v3875 = vadd.f32 0.0, %v3874
        %v3876 = vpop.f32.mrf.mxu0
        %3877 = vmatprep.mubr.f32.mxu0 0.0
        %3878 = vmatmul.mubr.f32.gmra.mxu0 %v3776
        %v3879 = vpop.f32.mrf.mxu0
        %v3880 = vadd.f32 0.0, %v3879
        %v3881 = vpop.f32.mrf.mxu0
        %3882 = vdwg.mxu0
        %v3883 = vrcp.pop %v3732
        %v3884 = vrcp.pop %v3735
        %v3885 = vrcp.pop %v3738
        %v3886 = vrcp.pop %v3741
        %v3887 = vrcp.pop %v3744
        %v3888 = vrcp.pop %v3747
        %v3889 = vrcp.pop %v3750
        %v3890 = vrcp.pop %v3753
        %v3891 = vmul.f32 %v3845, %v3883
        %v3892 = vmul.f32 %v3850, %v3884
        %v3893 = vmul.f32 %v3855, %v3885
        %v3894 = vmul.f32 %v3860, %v3886
        %v3895 = vmul.f32 %v3865, %v3887
        %v3896 = vmul.f32 %v3870, %v3888
        %v3897 = vmul.f32 %v3875, %v3889
        %v3898 = vmul.f32 %v3880, %v3890
        %3899 = vrot.lane.b32.xlu0 %v878, 64
        %v3900 = vpop.permute.xlu0 %3899
        %3901 = vrot.lane.b32.xlu0 %v882, 64
        %v3902 = vpop.permute.xlu0 %3901
        %3903 = vrot.lane.b32.xlu0 %v886, 64
        %v3904 = vpop.permute.xlu0 %3903
        %3905 = vrot.lane.b32.xlu0 %v890, 64
        %v3906 = vpop.permute.xlu0 %3905
        %3907 = vrot.lane.b32.xlu0 %v894, 64
        %v3908 = vpop.permute.xlu0 %3907
        %3909 = vrot.lane.b32.xlu0 %v898, 64
        %v3910 = vpop.permute.xlu0 %3909
        %3911 = vrot.lane.b32.xlu0 %v902, 64
        %v3912 = vpop.permute.xlu0 %3911
        %3913 = vrot.lane.b32.xlu0 %v906, 64
        %v3914 = vpop.permute.xlu0 %3913
        %v3915 = vsel %vm1356, %v3900, 0
        %v3917 = vsel %vm1356, %v3902, 0
        %v3919 = vsel %vm1356, %v3904, 0
        %v3921 = vsel %vm1356, %v3906, 0
        %v3923 = vsel %vm1356, %v3908, 0
        %v3925 = vsel %vm1356, %v3910, 0
        %v3927 = vsel %vm1356, %v3912, 0
        %v3929 = vsel %vm1356, %v3914, 0
        %3931 = vmatprep.subr.mxu0 0.0
        %3932 = vmatpush1.msra.mxu0 0.0
        %3933 = vmatprep.subr.mxu0 0.0
        %3934 = vmatpush1.msra.mxu0 0.0
        %3935 = vmatprep.subr.mxu0 0.0
        %3936 = vmatpush1.msra.mxu0 0.0
        %3937 = vmatprep.subr.mxu0 0.0
        %3938 = vmatpush1.msra.mxu0 0.0
        %3939 = vmatprep.subr.mxu0 0.0
        %3940 = vmatpush1.msra.mxu0 0.0
        %3941 = vmatprep.subr.mxu0 0.0
        %3942 = vmatpush1.msra.mxu0 0.0
        %3943 = vmatprep.subr.mxu0 0.0
        %3944 = vmatpush1.msra.mxu0 0.0
        %3945 = vmatprep.subr.mxu0 0.0
        %3946 = vmatpush1.msra.mxu0 0.0
        %3947 = vmatprep.subr.mxu0 0.0
        %3948 = vmatpush1.msra.mxu0 %v1353
        %3949 = vmatprep.subr.mxu0 0.0
        %3950 = vmatpush1.msra.mxu0 %v1348
        %3951 = vmatprep.subr.mxu0 0.0
        %3952 = vmatpush1.msra.mxu0 %v1343
        %3953 = vmatprep.subr.mxu0 0.0
        %3954 = vmatpush1.msra.mxu0 %v1338
        %3955 = vmatprep.subr.mxu0 0.0
        %3956 = vmatpush1.msra.mxu0 %v1333
        %3957 = vmatprep.subr.mxu0 0.0
        %3958 = vmatpush1.msra.mxu0 %v1328
        %3959 = vmatprep.subr.mxu0 0.0
        %3960 = vmatpush1.msra.mxu0 %v1323
        %3961 = vmatprep.subr.mxu0 0.0
        %3962 = vmatpush1.msra.mxu0 %v1318
        %3963 = vmatprep.subr.mxu0 0.0
        %3964 = vmatpush2.msra.mxu0 0.0
        %3965 = vmatprep.subr.mxu0 0.0
        %3966 = vmatpush2.msra.mxu0 0.0
        %3967 = vmatprep.subr.mxu0 0.0
        %3968 = vmatpush2.msra.mxu0 0.0
        %3969 = vmatprep.subr.mxu0 0.0
        %3970 = vmatpush2.msra.mxu0 0.0
        %3971 = vmatprep.subr.mxu0 0.0
        %3972 = vmatpush2.msra.mxu0 0.0
        %3973 = vmatprep.subr.mxu0 0.0
        %3974 = vmatpush2.msra.mxu0 0.0
        %3975 = vmatprep.subr.mxu0 0.0
        %3976 = vmatpush2.msra.mxu0 0.0
        %3977 = vmatprep.subr.mxu0 0.0
        %3978 = vmatpush2.msra.mxu0 0.0
        %3979 = vmatprep.subr.mxu0 0.0
        %3980 = vmatpush2.msra.mxu0 0.0
        %3981 = vmatprep.subr.mxu0 0.0
        %3982 = vmatpush2.msra.mxu0 0.0
        %3983 = vmatprep.subr.mxu0 0.0
        %3984 = vmatpush2.msra.mxu0 0.0
        %3985 = vmatprep.subr.mxu0 0.0
        %3986 = vmatpush2.msra.mxu0 0.0
        %3987 = vmatprep.subr.mxu0 0.0
        %3988 = vmatpush2.msra.mxu0 0.0
        %3989 = vmatprep.subr.mxu0 0.0
        %3990 = vmatpush2.msra.mxu0 0.0
        %3991 = vmatprep.subr.mxu0 0.0
        %3992 = vmatpush2.msra.mxu0 0.0
        %3993 = vmatprep.subr.mxu0 0.0
        %3994 = vmatpush2.msra.mxu0 0.0
        %3995 = vmatprep.mubr.f32.mxu0 0.0
        %3996 = vmatmul.mubr.f32.gmra.mxu0 %v3915
        %v3997 = vpop.f32.mrf.mxu0
        %v3998 = vadd.f32 0.0, %v3997
        %v3999 = vpop.f32.mrf.mxu0
        %4000 = vmatprep.mubr.f32.mxu0 0.0
        %4001 = vmatmul.mubr.f32.gmra.mxu0 %v3917
        %v4002 = vpop.f32.mrf.mxu0
        %v4003 = vadd.f32 0.0, %v4002
        %v4004 = vpop.f32.mrf.mxu0
        %4005 = vmatprep.mubr.f32.mxu0 0.0
        %4006 = vmatmul.mubr.f32.gmra.mxu0 %v3919
        %v4007 = vpop.f32.mrf.mxu0
        %v4008 = vadd.f32 0.0, %v4007
        %v4009 = vpop.f32.mrf.mxu0
        %4010 = vmatprep.mubr.f32.mxu0 0.0
        %4011 = vmatmul.mubr.f32.gmra.mxu0 %v3921
        %v4012 = vpop.f32.mrf.mxu0
        %v4013 = vadd.f32 0.0, %v4012
        %v4014 = vpop.f32.mrf.mxu0
        %4015 = vmatprep.mubr.f32.mxu0 0.0
        %4016 = vmatmul.mubr.f32.gmra.mxu0 %v3923
        %v4017 = vpop.f32.mrf.mxu0
        %v4018 = vadd.f32 0.0, %v4017
        %v4019 = vpop.f32.mrf.mxu0
        %4020 = vmatprep.mubr.f32.mxu0 0.0
        %4021 = vmatmul.mubr.f32.gmra.mxu0 %v3925
        %v4022 = vpop.f32.mrf.mxu0
        %v4023 = vadd.f32 0.0, %v4022
        %v4024 = vpop.f32.mrf.mxu0
        %4025 = vmatprep.mubr.f32.mxu0 0.0
        %4026 = vmatmul.mubr.f32.gmra.mxu0 %v3927
        %v4027 = vpop.f32.mrf.mxu0
        %v4028 = vadd.f32 0.0, %v4027
        %v4029 = vpop.f32.mrf.mxu0
        %4030 = vmatprep.mubr.f32.mxu0 0.0
        %4031 = vmatmul.mubr.f32.gmra.mxu0 %v3929
        %v4032 = vpop.f32.mrf.mxu0
        %v4033 = vadd.f32 0.0, %v4032
        %v4034 = vpop.f32.mrf.mxu0
        %4035 = vdwg.mxu0
        %v4036 = vsel %vm1356, %v3998, -inf
        %4037 = vmax.xlane.f32.xlu0 %v4036
        %v4038 = vpop.xlane.xlu0 %4037
        %v4039 = vsel %vm1356, %v4003, -inf
        %4040 = vmax.xlane.f32.xlu0 %v4039
        %v4041 = vpop.xlane.xlu0 %4040
        %v4042 = vsel %vm1356, %v4008, -inf
        %4043 = vmax.xlane.f32.xlu0 %v4042
        %v4044 = vpop.xlane.xlu0 %4043
        %v4045 = vsel %vm1356, %v4013, -inf
        %4046 = vmax.xlane.f32.xlu0 %v4045
        %v4047 = vpop.xlane.xlu0 %4046
        %v4048 = vsel %vm1356, %v4018, -inf
        %4049 = vmax.xlane.f32.xlu0 %v4048
        %v4050 = vpop.xlane.xlu0 %4049
        %v4051 = vsel %vm1356, %v4023, -inf
        %4052 = vmax.xlane.f32.xlu0 %v4051
        %v4053 = vpop.xlane.xlu0 %4052
        %v4054 = vsel %vm1356, %v4028, -inf
        %4055 = vmax.xlane.f32.xlu0 %v4054
        %v4056 = vpop.xlane.xlu0 %4055
        %v4057 = vsel %vm1356, %v4033, -inf
        %4058 = vmax.xlane.f32.xlu0 %v4057
        %v4059 = vpop.xlane.xlu0 %4058
        %v4060 = vsub.f32 %v3998, %v4038
        %v4061 = vsub.f32 %v4003, %v4041
        %v4062 = vsub.f32 %v4008, %v4044
        %v4063 = vsub.f32 %v4013, %v4047
        %v4064 = vsub.f32 %v4018, %v4050
        %v4065 = vsub.f32 %v4023, %v4053
        %v4066 = vsub.f32 %v4028, %v4056
        %v4067 = vsub.f32 %v4033, %v4059
        %v4068 = vmul.f32 %v4060, 1.442695
        %v4069 = vpow.pop %v4068
        %v4070 = vmul.f32 %v4061, 1.442695
        %v4071 = vpow.pop %v4070
        %v4072 = vmul.f32 %v4062, 1.442695
        %v4073 = vpow.pop %v4072
        %v4074 = vmul.f32 %v4063, 1.442695
        %v4075 = vpow.pop %v4074
        %v4076 = vmul.f32 %v4064, 1.442695
        %v4077 = vpow.pop %v4076
        %v4078 = vmul.f32 %v4065, 1.442695
        %v4079 = vpow.pop %v4078
        %v4080 = vmul.f32 %v4066, 1.442695
        %v4081 = vpow.pop %v4080
        %v4082 = vmul.f32 %v4067, 1.442695
        %v4083 = vpow.pop %v4082
        %v4084 = vsel %vm1356, %v4069, 0.0
        %4085 = vadd.xlane.f32.xlu0 %v4084
        %v4086 = vpop.xlane.xlu0 %4085
        %v4087 = vsel %vm1356, %v4071, 0.0
        %4088 = vadd.xlane.f32.xlu0 %v4087
        %v4089 = vpop.xlane.xlu0 %4088
        %v4090 = vsel %vm1356, %v4073, 0.0
        %4091 = vadd.xlane.f32.xlu0 %v4090
        %v4092 = vpop.xlane.xlu0 %4091
        %v4093 = vsel %vm1356, %v4075, 0.0
        %4094 = vadd.xlane.f32.xlu0 %v4093
        %v4095 = vpop.xlane.xlu0 %4094
        %v4096 = vsel %vm1356, %v4077, 0.0
        %4097 = vadd.xlane.f32.xlu0 %v4096
        %v4098 = vpop.xlane.xlu0 %4097
        %v4099 = vsel %vm1356, %v4079, 0.0
        %4100 = vadd.xlane.f32.xlu0 %v4099
        %v4101 = vpop.xlane.xlu0 %4100
        %v4102 = vsel %vm1356, %v4081, 0.0
        %4103 = vadd.xlane.f32.xlu0 %v4102
        %v4104 = vpop.xlane.xlu0 %4103
        %v4105 = vsel %vm1356, %v4083, 0.0
        %4106 = vadd.xlane.f32.xlu0 %v4105
        %v4107 = vpop.xlane.xlu0 %4106
        %4116 = vrot.lane.b32.xlu0 %v831, 64
        %v4117 = vpop.permute.xlu0 %4116
        %4118 = vrot.lane.b32.xlu0 %v837, 64
        %v4119 = vpop.permute.xlu0 %4118
        %4120 = vrot.lane.b32.xlu0 %v843, 64
        %v4121 = vpop.permute.xlu0 %4120
        %4122 = vrot.lane.b32.xlu0 %v849, 64
        %v4123 = vpop.permute.xlu0 %4122
        %4124 = vrot.lane.b32.xlu0 %v855, 64
        %v4125 = vpop.permute.xlu0 %4124
        %4126 = vrot.lane.b32.xlu0 %v861, 64
        %v4127 = vpop.permute.xlu0 %4126
        %4128 = vrot.lane.b32.xlu0 %v867, 64
        %v4129 = vpop.permute.xlu0 %4128
        %4130 = vrot.lane.b32.xlu0 %v873, 64
        %v4131 = vpop.permute.xlu0 %4130
        %v4141 = vsel %vm1356, %v4069, 0
        %v4144 = vsel %vm1356, %v4071, 0
        %v4147 = vsel %vm1356, %v4073, 0
        %v4150 = vsel %vm1356, %v4075, 0
        %v4153 = vsel %vm1356, %v4077, 0
        %v4156 = vsel %vm1356, %v4079, 0
        %v4159 = vsel %vm1356, %v4081, 0
        %v4162 = vsel %vm1356, %v4083, 0
        %4164 = vmatprep.subr.mxu0 0.0
        %4165 = vmatpush1.msra.mxu0 0.0
        %4166 = vmatprep.subr.mxu0 0.0
        %4167 = vmatpush1.msra.mxu0 0.0
        %4168 = vmatprep.subr.mxu0 0.0
        %4169 = vmatpush1.msra.mxu0 0.0
        %4170 = vmatprep.subr.mxu0 0.0
        %4171 = vmatpush1.msra.mxu0 0.0
        %4172 = vmatprep.subr.mxu0 0.0
        %4173 = vmatpush1.msra.mxu0 0.0
        %4174 = vmatprep.subr.mxu0 0.0
        %4175 = vmatpush1.msra.mxu0 0.0
        %4176 = vmatprep.subr.mxu0 0.0
        %4177 = vmatpush1.msra.mxu0 0.0
        %4178 = vmatprep.subr.mxu0 0.0
        %4179 = vmatpush1.msra.mxu0 0.0
        %4180 = vmatprep.subr.mxu0 0.0
        %4181 = vmatpush1.msra.mxu0 %v4131
        %4182 = vmatprep.subr.mxu0 0.0
        %4183 = vmatpush1.msra.mxu0 %v4129
        %4184 = vmatprep.subr.mxu0 0.0
        %4185 = vmatpush1.msra.mxu0 %v4127
        %4186 = vmatprep.subr.mxu0 0.0
        %4187 = vmatpush1.msra.mxu0 %v4125
        %4188 = vmatprep.subr.mxu0 0.0
        %4189 = vmatpush1.msra.mxu0 %v4123
        %4190 = vmatprep.subr.mxu0 0.0
        %4191 = vmatpush1.msra.mxu0 %v4121
        %4192 = vmatprep.subr.mxu0 0.0
        %4193 = vmatpush1.msra.mxu0 %v4119
        %4194 = vmatprep.subr.mxu0 0.0
        %4195 = vmatpush1.msra.mxu0 %v4117
        %4196 = vmatprep.subr.mxu0 0.0
        %4197 = vmatpush2.msra.mxu0 0.0
        %4198 = vmatprep.subr.mxu0 0.0
        %4199 = vmatpush2.msra.mxu0 0.0
        %4200 = vmatprep.subr.mxu0 0.0
        %4201 = vmatpush2.msra.mxu0 0.0
        %4202 = vmatprep.subr.mxu0 0.0
        %4203 = vmatpush2.msra.mxu0 0.0
        %4204 = vmatprep.subr.mxu0 0.0
        %4205 = vmatpush2.msra.mxu0 0.0
        %4206 = vmatprep.subr.mxu0 0.0
        %4207 = vmatpush2.msra.mxu0 0.0
        %4208 = vmatprep.subr.mxu0 0.0
        %4209 = vmatpush2.msra.mxu0 0.0
        %4210 = vmatprep.subr.mxu0 0.0
        %4211 = vmatpush2.msra.mxu0 0.0
        %4212 = vmatprep.subr.mxu0 0.0
        %4213 = vmatpush2.msra.mxu0 0.0
        %4214 = vmatprep.subr.mxu0 0.0
        %4215 = vmatpush2.msra.mxu0 0.0
        %4216 = vmatprep.subr.mxu0 0.0
        %4217 = vmatpush2.msra.mxu0 0.0
        %4218 = vmatprep.subr.mxu0 0.0
        %4219 = vmatpush2.msra.mxu0 0.0
        %4220 = vmatprep.subr.mxu0 0.0
        %4221 = vmatpush2.msra.mxu0 0.0
        %4222 = vmatprep.subr.mxu0 0.0
        %4223 = vmatpush2.msra.mxu0 0.0
        %4224 = vmatprep.subr.mxu0 0.0
        %4225 = vmatpush2.msra.mxu0 0.0
        %4226 = vmatprep.subr.mxu0 0.0
        %4227 = vmatpush2.msra.mxu0 0.0
        %4228 = vmatprep.mubr.f32.mxu0 0.0
        %4229 = vmatmul.mubr.f32.gmra.mxu0 %v4141
        %v4230 = vpop.f32.mrf.mxu0
        %v4231 = vadd.f32 0.0, %v4230
        %v4232 = vpop.f32.mrf.mxu0
        %4233 = vmatprep.mubr.f32.mxu0 0.0
        %4234 = vmatmul.mubr.f32.gmra.mxu0 %v4144
        %v4235 = vpop.f32.mrf.mxu0
        %v4236 = vadd.f32 0.0, %v4235
        %v4237 = vpop.f32.mrf.mxu0
        %4238 = vmatprep.mubr.f32.mxu0 0.0
        %4239 = vmatmul.mubr.f32.gmra.mxu0 %v4147
        %v4240 = vpop.f32.mrf.mxu0
        %v4241 = vadd.f32 0.0, %v4240
        %v4242 = vpop.f32.mrf.mxu0
        %4243 = vmatprep.mubr.f32.mxu0 0.0
        %4244 = vmatmul.mubr.f32.gmra.mxu0 %v4150
        %v4245 = vpop.f32.mrf.mxu0
        %v4246 = vadd.f32 0.0, %v4245
        %v4247 = vpop.f32.mrf.mxu0
        %4248 = vmatprep.mubr.f32.mxu0 0.0
        %4249 = vmatmul.mubr.f32.gmra.mxu0 %v4153
        %v4250 = vpop.f32.mrf.mxu0
        %v4251 = vadd.f32 0.0, %v4250
        %v4252 = vpop.f32.mrf.mxu0
        %4253 = vmatprep.mubr.f32.mxu0 0.0
        %4254 = vmatmul.mubr.f32.gmra.mxu0 %v4156
        %v4255 = vpop.f32.mrf.mxu0
        %v4256 = vadd.f32 0.0, %v4255
        %v4257 = vpop.f32.mrf.mxu0
        %4258 = vmatprep.mubr.f32.mxu0 0.0
        %4259 = vmatmul.mubr.f32.gmra.mxu0 %v4159
        %v4260 = vpop.f32.mrf.mxu0
        %v4261 = vadd.f32 0.0, %v4260
        %v4262 = vpop.f32.mrf.mxu0
        %4263 = vmatprep.mubr.f32.mxu0 0.0
        %4264 = vmatmul.mubr.f32.gmra.mxu0 %v4162
        %v4265 = vpop.f32.mrf.mxu0
        %v4266 = vadd.f32 0.0, %v4265
        %v4267 = vpop.f32.mrf.mxu0
        %4268 = vdwg.mxu0
        %v4269 = vrcp.pop %v4086
        %v4270 = vrcp.pop %v4089
        %v4271 = vrcp.pop %v4092
        %v4272 = vrcp.pop %v4095
        %v4273 = vrcp.pop %v4098
        %v4274 = vrcp.pop %v4101
        %v4275 = vrcp.pop %v4104
        %v4276 = vrcp.pop %v4107
        %v4277 = vmul.f32 %v4231, %v4269
        %v4278 = vmul.f32 %v4236, %v4270
        %v4279 = vmul.f32 %v4241, %v4271
        %v4280 = vmul.f32 %v4246, %v4272
        %v4281 = vmul.f32 %v4251, %v4273
        %v4282 = vmul.f32 %v4256, %v4274
        %v4283 = vmul.f32 %v4261, %v4275
        %v4284 = vmul.f32 %v4266, %v4276
        %4293 = vrot.lane.b32.xlu0 %v2081, 64
        %v4294 = vpop.permute.xlu0 %4293
        %4295 = vrot.lane.b32.xlu0 %v2082, 64
        %v4296 = vpop.permute.xlu0 %4295
        %4297 = vrot.lane.b32.xlu0 %v2083, 64
        %v4298 = vpop.permute.xlu0 %4297
        %4299 = vrot.lane.b32.xlu0 %v2084, 64
        %v4300 = vpop.permute.xlu0 %4299
        %4301 = vrot.lane.b32.xlu0 %v2085, 64
        %v4302 = vpop.permute.xlu0 %4301
        %4303 = vrot.lane.b32.xlu0 %v2086, 64
        %v4304 = vpop.permute.xlu0 %4303
        %4305 = vrot.lane.b32.xlu0 %v2087, 64
        %v4306 = vpop.permute.xlu0 %4305
        %4307 = vrot.lane.b32.xlu0 %v2088, 64
        %v4308 = vpop.permute.xlu0 %4307
        %4325 = vrot.lane.b32.xlu0 %v2813, 64
        %v4326 = vpop.permute.xlu0 %4325
        %4327 = vrot.lane.b32.xlu0 %v2814, 64
        %v4328 = vpop.permute.xlu0 %4327
        %4329 = vrot.lane.b32.xlu0 %v2815, 64
        %v4330 = vpop.permute.xlu0 %4329
        %4331 = vrot.lane.b32.xlu0 %v2816, 64
        %v4332 = vpop.permute.xlu0 %4331
        %4333 = vrot.lane.b32.xlu0 %v2817, 64
        %v4334 = vpop.permute.xlu0 %4333
        %4335 = vrot.lane.b32.xlu0 %v2818, 64
        %v4336 = vpop.permute.xlu0 %4335
        %4337 = vrot.lane.b32.xlu0 %v2819, 64
        %v4338 = vpop.permute.xlu0 %4337
        %4339 = vrot.lane.b32.xlu0 %v2820, 64
        %v4340 = vpop.permute.xlu0 %4339
        %4357 = vrot.lane.b32.xlu0 %v3545, 64
        %v4358 = vpop.permute.xlu0 %4357
        %4359 = vrot.lane.b32.xlu0 %v3546, 64
        %v4360 = vpop.permute.xlu0 %4359
        %4361 = vrot.lane.b32.xlu0 %v3547, 64
        %v4362 = vpop.permute.xlu0 %4361
        %4363 = vrot.lane.b32.xlu0 %v3548, 64
        %v4364 = vpop.permute.xlu0 %4363
        %4365 = vrot.lane.b32.xlu0 %v3549, 64
        %v4366 = vpop.permute.xlu0 %4365
        %4367 = vrot.lane.b32.xlu0 %v3550, 64
        %v4368 = vpop.permute.xlu0 %4367
        %4369 = vrot.lane.b32.xlu0 %v3551, 64
        %v4370 = vpop.permute.xlu0 %4369
        %4371 = vrot.lane.b32.xlu0 %v3552, 64
        %v4372 = vpop.permute.xlu0 %4371
        %4389 = vrot.lane.b32.xlu0 %v4277, 64
        %v4390 = vpop.permute.xlu0 %4389
        %4391 = vrot.lane.b32.xlu0 %v4278, 64
        %v4392 = vpop.permute.xlu0 %4391
        %4393 = vrot.lane.b32.xlu0 %v4279, 64
        %v4394 = vpop.permute.xlu0 %4393
        %4395 = vrot.lane.b32.xlu0 %v4280, 64
        %v4396 = vpop.permute.xlu0 %4395
        %4397 = vrot.lane.b32.xlu0 %v4281, 64
        %v4398 = vpop.permute.xlu0 %4397
        %4399 = vrot.lane.b32.xlu0 %v4282, 64
        %v4400 = vpop.permute.xlu0 %4399
        %4401 = vrot.lane.b32.xlu0 %v4283, 64
        %v4402 = vpop.permute.xlu0 %4401
        %4403 = vrot.lane.b32.xlu0 %v4284, 64
        %v4404 = vpop.permute.xlu0 %4403
        %v4413 = vsel %vm1356, %v1695, %v4294
        %v4414 = vsel %vm1356, %v1696, %v4296
        %v4415 = vsel %vm1356, %v1697, %v4298
        %v4416 = vsel %vm1356, %v1698, %v4300
        %v4417 = vsel %vm1356, %v1699, %v4302
        %v4418 = vsel %vm1356, %v1700, %v4304
        %v4419 = vsel %vm1356, %v1701, %v4306
        %v4420 = vsel %vm1356, %v1702, %v4308
        %v4421 = vsel %vm1356, %v2427, %v4326
        %v4422 = vsel %vm1356, %v2428, %v4328
        %v4423 = vsel %vm1356, %v2429, %v4330
        %v4424 = vsel %vm1356, %v2430, %v4332
        %v4425 = vsel %vm1356, %v2431, %v4334
        %v4426 = vsel %vm1356, %v2432, %v4336
        %v4427 = vsel %vm1356, %v2433, %v4338
        %v4428 = vsel %vm1356, %v2434, %v4340
        %v4429 = vsel %vm1356, %v3159, %v4358
        %v4430 = vsel %vm1356, %v3160, %v4360
        %v4431 = vsel %vm1356, %v3161, %v4362
        %v4432 = vsel %vm1356, %v3162, %v4364
        %v4433 = vsel %vm1356, %v3163, %v4366
        %v4434 = vsel %vm1356, %v3164, %v4368
        %v4435 = vsel %vm1356, %v3165, %v4370
        %v4436 = vsel %vm1356, %v3166, %v4372
        %v4437 = vsel %vm1356, %v3891, %v4390
        %v4438 = vsel %vm1356, %v3892, %v4392
        %v4439 = vsel %vm1356, %v3893, %v4394
        %v4440 = vsel %vm1356, %v3894, %v4396
        %v4441 = vsel %vm1356, %v3895, %v4398
        %v4442 = vsel %vm1356, %v3896, %v4400
        %v4443 = vsel %vm1356, %v3897, %v4402
        %v4444 = vsel %vm1356, %v3898, %v4404
        %v4445 = vld [vmem:[#allocation8] sm:$0xff]
        %v4446 = vld [vmem:[#allocation8 + $0x8] sm:$0xff]
        %v4447 = vld [vmem:[#allocation8 + $0x10] sm:$0xff]
        %v4448 = vld [vmem:[#allocation8 + $0x18] sm:$0xff]
        %v4449 = vld [vmem:[#allocation8 + $0x20] sm:$0xff]
        %v4450 = vld [vmem:[#allocation8 + $0x28] sm:$0xff]
        %v4451 = vld [vmem:[#allocation8 + $0x30] sm:$0xff]
        %v4452 = vld [vmem:[#allocation8 + $0x38] sm:$0xff]
        %v4453 = vld [vmem:[#allocation8 + $0x40] sm:$0xff]
        %v4454 = vld [vmem:[#allocation8 + $0x48] sm:$0xff]
        %v4455 = vld [vmem:[#allocation8 + $0x50] sm:$0xff]
        %v4456 = vld [vmem:[#allocation8 + $0x58] sm:$0xff]
        %v4457 = vld [vmem:[#allocation8 + $0x60] sm:$0xff]
        %v4458 = vld [vmem:[#allocation8 + $0x68] sm:$0xff]
        %v4459 = vld [vmem:[#allocation8 + $0x70] sm:$0xff]
        %v4460 = vld [vmem:[#allocation8 + $0x78] sm:$0xff]
        %v4461 = vld [vmem:[#allocation8 + $0x80] sm:$0xff]
        %v4462 = vld [vmem:[#allocation8 + $0x88] sm:$0xff]
        %v4463 = vld [vmem:[#allocation8 + $0x90] sm:$0xff]
        %v4464 = vld [vmem:[#allocation8 + $0x98] sm:$0xff]
        %v4465 = vld [vmem:[#allocation8 + $0xa0] sm:$0xff]
        %v4466 = vld [vmem:[#allocation8 + $0xa8] sm:$0xff]
        %v4467 = vld [vmem:[#allocation8 + $0xb0] sm:$0xff]
        %v4468 = vld [vmem:[#allocation8 + $0xb8] sm:$0xff]
        %v4469 = vld [vmem:[#allocation8 + $0xc0] sm:$0xff]
        %v4470 = vld [vmem:[#allocation8 + $0xc8] sm:$0xff]
        %v4471 = vld [vmem:[#allocation8 + $0xd0] sm:$0xff]
        %v4472 = vld [vmem:[#allocation8 + $0xd8] sm:$0xff]
        %v4473 = vld [vmem:[#allocation8 + $0xe0] sm:$0xff]
        %v4474 = vld [vmem:[#allocation8 + $0xe8] sm:$0xff]
        %v4475 = vld [vmem:[#allocation8 + $0xf0] sm:$0xff]
        %v4476 = vld [vmem:[#allocation8 + $0xf8] sm:$0xff]
        %v4477 = vld [vmem:[#allocation8 + $0x100] sm:$0xff]
        %v4478 = vld [vmem:[#allocation8 + $0x108] sm:$0xff]
        %v4479 = vld [vmem:[#allocation8 + $0x110] sm:$0xff]
        %v4480 = vld [vmem:[#allocation8 + $0x118] sm:$0xff]
        %v4481 = vld [vmem:[#allocation8 + $0x120] sm:$0xff]
        %v4482 = vld [vmem:[#allocation8 + $0x128] sm:$0xff]
        %v4483 = vld [vmem:[#allocation8 + $0x130] sm:$0xff]
        %v4484 = vld [vmem:[#allocation8 + $0x138] sm:$0xff]
        %v4485 = vld [vmem:[#allocation8 + $0x140] sm:$0xff]
        %v4486 = vld [vmem:[#allocation8 + $0x148] sm:$0xff]
        %v4487 = vld [vmem:[#allocation8 + $0x150] sm:$0xff]
        %v4488 = vld [vmem:[#allocation8 + $0x158] sm:$0xff]
        %v4489 = vld [vmem:[#allocation8 + $0x160] sm:$0xff]
        %v4490 = vld [vmem:[#allocation8 + $0x168] sm:$0xff]
        %v4491 = vld [vmem:[#allocation8 + $0x170] sm:$0xff]
        %v4492 = vld [vmem:[#allocation8 + $0x178] sm:$0xff]
        %v4493 = vld [vmem:[#allocation8 + $0x180] sm:$0xff]
        %v4494 = vld [vmem:[#allocation8 + $0x188] sm:$0xff]
        %v4495 = vld [vmem:[#allocation8 + $0x190] sm:$0xff]
        %v4496 = vld [vmem:[#allocation8 + $0x198] sm:$0xff]
        %v4497 = vld [vmem:[#allocation8 + $0x1a0] sm:$0xff]
        %v4498 = vld [vmem:[#allocation8 + $0x1a8] sm:$0xff]
        %v4499 = vld [vmem:[#allocation8 + $0x1b0] sm:$0xff]
        %v4500 = vld [vmem:[#allocation8 + $0x1b8] sm:$0xff]
        %v4501 = vld [vmem:[#allocation8 + $0x1c0] sm:$0xff]
        %v4502 = vld [vmem:[#allocation8 + $0x1c8] sm:$0xff]
        %v4503 = vld [vmem:[#allocation8 + $0x1d0] sm:$0xff]
        %v4504 = vld [vmem:[#allocation8 + $0x1d8] sm:$0xff]
        %v4505 = vld [vmem:[#allocation8 + $0x1e0] sm:$0xff]
        %v4506 = vld [vmem:[#allocation8 + $0x1e8] sm:$0xff]
        %v4507 = vld [vmem:[#allocation8 + $0x1f0] sm:$0xff]
        %v4508 = vld [vmem:[#allocation8 + $0x1f8] sm:$0xff]
        %v4509 = vld [vmem:[%s4] sm:$0x1]
        %v4511 = vlaneseq
        %v4512 = vshrl.u32 %v4511, 7
        %v4513 = vsub.s32 0, %v4512
        %v4514 = vrot.slane %v4509, %v4513
        %4516 = vmatprep.subr.mxu0 0.0
        %4517 = vmatpush1.msra.mxu0 %v4460
        %4518 = vmatprep.subr.mxu0 0.0
        %4519 = vmatpush1.msra.mxu0 %v4459
        %4520 = vmatprep.subr.mxu0 0.0
        %4521 = vmatpush1.msra.mxu0 %v4458
        %4522 = vmatprep.subr.mxu0 0.0
        %4523 = vmatpush1.msra.mxu0 %v4457
        %4524 = vmatprep.subr.mxu0 0.0
        %4525 = vmatpush1.msra.mxu0 %v4456
        %4526 = vmatprep.subr.mxu0 0.0
        %4527 = vmatpush1.msra.mxu0 %v4455
        %4528 = vmatprep.subr.mxu0 0.0
        %4529 = vmatpush1.msra.mxu0 %v4454
        %4530 = vmatprep.subr.mxu0 0.0
        %4531 = vmatpush1.msra.mxu0 %v4453
        %4532 = vmatprep.subr.mxu0 0.0
        %4533 = vmatpush1.msra.mxu0 %v4452
        %4534 = vmatprep.subr.mxu0 0.0
        %4535 = vmatpush1.msra.mxu0 %v4451
        %4536 = vmatprep.subr.mxu0 0.0
        %4537 = vmatpush1.msra.mxu0 %v4450
        %4538 = vmatprep.subr.mxu0 0.0
        %4539 = vmatpush1.msra.mxu0 %v4449
        %4540 = vmatprep.subr.mxu0 0.0
        %4541 = vmatpush1.msra.mxu0 %v4448
        %4542 = vmatprep.subr.mxu0 0.0
        %4543 = vmatpush1.msra.mxu0 %v4447
        %4544 = vmatprep.subr.mxu0 0.0
        %4545 = vmatpush1.msra.mxu0 %v4446
        %4546 = vmatprep.subr.mxu0 0.0
        %4547 = vmatpush1.msra.mxu0 %v4445
        %4548 = vmatprep.subr.mxu0 0.0
        %4549 = vmatpush2.msra.mxu0 %v4476
        %4550 = vmatprep.subr.mxu0 0.0
        %4551 = vmatpush2.msra.mxu0 %v4475
        %4552 = vmatprep.subr.mxu0 0.0
        %4553 = vmatpush2.msra.mxu0 %v4474
        %4554 = vmatprep.subr.mxu0 0.0
        %4555 = vmatpush2.msra.mxu0 %v4473
        %4556 = vmatprep.subr.mxu0 0.0
        %4557 = vmatpush2.msra.mxu0 %v4472
        %4558 = vmatprep.subr.mxu0 0.0
        %4559 = vmatpush2.msra.mxu0 %v4471
        %4560 = vmatprep.subr.mxu0 0.0
        %4561 = vmatpush2.msra.mxu0 %v4470
        %4562 = vmatprep.subr.mxu0 0.0
        %4563 = vmatpush2.msra.mxu0 %v4469
        %4564 = vmatprep.subr.mxu0 0.0
        %4565 = vmatpush2.msra.mxu0 %v4468
        %4566 = vmatprep.subr.mxu0 0.0
        %4567 = vmatpush2.msra.mxu0 %v4467
        %4568 = vmatprep.subr.mxu0 0.0
        %4569 = vmatpush2.msra.mxu0 %v4466
        %4570 = vmatprep.subr.mxu0 0.0
        %4571 = vmatpush2.msra.mxu0 %v4465
        %4572 = vmatprep.subr.mxu0 0.0
        %4573 = vmatpush2.msra.mxu0 %v4464
        %4574 = vmatprep.subr.mxu0 0.0
        %4575 = vmatpush2.msra.mxu0 %v4463
        %4576 = vmatprep.subr.mxu0 0.0
        %4577 = vmatpush2.msra.mxu0 %v4462
        %4578 = vmatprep.subr.mxu0 0.0
        %4579 = vmatpush2.msra.mxu0 %v4461
        %4580 = vmatprep.mubr.f32.mxu0 %v4421
        %4581 = vmatmul.mubr.f32.gmra.mxu0 %v4413
        %v4582 = vpop.f32.mrf.mxu0
        %v4583 = vadd.f32 %v4514, %v4582
        %v4584 = vpop.f32.mrf.mxu0
        %4585 = vmatprep.mubr.f32.mxu0 %v4422
        %4586 = vmatmul.mubr.f32.gmra.mxu0 %v4414
        %v4587 = vpop.f32.mrf.mxu0
        %v4588 = vadd.f32 %v4514, %v4587
        %v4589 = vpop.f32.mrf.mxu0
        %4590 = vmatprep.mubr.f32.mxu0 %v4423
        %4591 = vmatmul.mubr.f32.gmra.mxu0 %v4415
        %v4592 = vpop.f32.mrf.mxu0
        %v4593 = vadd.f32 %v4514, %v4592
        %v4594 = vpop.f32.mrf.mxu0
        %4595 = vmatprep.mubr.f32.mxu0 %v4424
        %4596 = vmatmul.mubr.f32.gmra.mxu0 %v4416
        %v4597 = vpop.f32.mrf.mxu0
        %v4598 = vadd.f32 %v4514, %v4597
        %v4599 = vpop.f32.mrf.mxu0
        %4600 = vmatprep.mubr.f32.mxu0 %v4425
        %4601 = vmatmul.mubr.f32.gmra.mxu0 %v4417
        %v4602 = vpop.f32.mrf.mxu0
        %v4603 = vadd.f32 %v4514, %v4602
        %v4604 = vpop.f32.mrf.mxu0
        %4605 = vmatprep.mubr.f32.mxu0 %v4426
        %4606 = vmatmul.mubr.f32.gmra.mxu0 %v4418
        %v4607 = vpop.f32.mrf.mxu0
        %v4608 = vadd.f32 %v4514, %v4607
        %v4609 = vpop.f32.mrf.mxu0
        %4610 = vmatprep.mubr.f32.mxu0 %v4427
        %4611 = vmatmul.mubr.f32.gmra.mxu0 %v4419
        %v4612 = vpop.f32.mrf.mxu0
        %v4613 = vadd.f32 %v4514, %v4612
        %v4614 = vpop.f32.mrf.mxu0
        %4615 = vmatprep.mubr.f32.mxu0 %v4428
        %4616 = vmatmul.mubr.f32.gmra.mxu0 %v4420
        %v4617 = vpop.f32.mrf.mxu0
        %v4618 = vadd.f32 %v4514, %v4617
        %v4619 = vpop.f32.mrf.mxu0
        %4620 = vdwg.mxu0
        %4621 = vmatprep.subr.mxu0 0.0
        %4622 = vmatpush1.msra.mxu0 %v4492
        %4623 = vmatprep.subr.mxu0 0.0
        %4624 = vmatpush1.msra.mxu0 %v4491
        %4625 = vmatprep.subr.mxu0 0.0
        %4626 = vmatpush1.msra.mxu0 %v4490
        %4627 = vmatprep.subr.mxu0 0.0
        %4628 = vmatpush1.msra.mxu0 %v4489
        %4629 = vmatprep.subr.mxu0 0.0
        %4630 = vmatpush1.msra.mxu0 %v4488
        %4631 = vmatprep.subr.mxu0 0.0
        %4632 = vmatpush1.msra.mxu0 %v4487
        %4633 = vmatprep.subr.mxu0 0.0
        %4634 = vmatpush1.msra.mxu0 %v4486
        %4635 = vmatprep.subr.mxu0 0.0
        %4636 = vmatpush1.msra.mxu0 %v4485
        %4637 = vmatprep.subr.mxu0 0.0
        %4638 = vmatpush1.msra.mxu0 %v4484
        %4639 = vmatprep.subr.mxu0 0.0
        %4640 = vmatpush1.msra.mxu0 %v4483
        %4641 = vmatprep.subr.mxu0 0.0
        %4642 = vmatpush1.msra.mxu0 %v4482
        %4643 = vmatprep.subr.mxu0 0.0
        %4644 = vmatpush1.msra.mxu0 %v4481
        %4645 = vmatprep.subr.mxu0 0.0
        %4646 = vmatpush1.msra.mxu0 %v4480
        %4647 = vmatprep.subr.mxu0 0.0
        %4648 = vmatpush1.msra.mxu0 %v4479
        %4649 = vmatprep.subr.mxu0 0.0
        %4650 = vmatpush1.msra.mxu0 %v4478
        %4651 = vmatprep.subr.mxu0 0.0
        %4652 = vmatpush1.msra.mxu0 %v4477
        %4653 = vmatprep.subr.mxu0 0.0
        %4654 = vmatpush2.msra.mxu0 %v4508
        %4655 = vmatprep.subr.mxu0 0.0
        %4656 = vmatpush2.msra.mxu0 %v4507
        %4657 = vmatprep.subr.mxu0 0.0
        %4658 = vmatpush2.msra.mxu0 %v4506
        %4659 = vmatprep.subr.mxu0 0.0
        %4660 = vmatpush2.msra.mxu0 %v4505
        %4661 = vmatprep.subr.mxu0 0.0
        %4662 = vmatpush2.msra.mxu0 %v4504
        %4663 = vmatprep.subr.mxu0 0.0
        %4664 = vmatpush2.msra.mxu0 %v4503
        %4665 = vmatprep.subr.mxu0 0.0
        %4666 = vmatpush2.msra.mxu0 %v4502
        %4667 = vmatprep.subr.mxu0 0.0
        %4668 = vmatpush2.msra.mxu0 %v4501
        %4669 = vmatprep.subr.mxu0 0.0
        %4670 = vmatpush2.msra.mxu0 %v4500
        %4671 = vmatprep.subr.mxu0 0.0
        %4672 = vmatpush2.msra.mxu0 %v4499
        %4673 = vmatprep.subr.mxu0 0.0
        %4674 = vmatpush2.msra.mxu0 %v4498
        %4675 = vmatprep.subr.mxu0 0.0
        %4676 = vmatpush2.msra.mxu0 %v4497
        %4677 = vmatprep.subr.mxu0 0.0
        %4678 = vmatpush2.msra.mxu0 %v4496
        %4679 = vmatprep.subr.mxu0 0.0
        %4680 = vmatpush2.msra.mxu0 %v4495
        %4681 = vmatprep.subr.mxu0 0.0
        %4682 = vmatpush2.msra.mxu0 %v4494
        %4683 = vmatprep.subr.mxu0 0.0
        %4684 = vmatpush2.msra.mxu0 %v4493
        %4685 = vmatprep.mubr.f32.mxu0 %v4437
        %4686 = vmatmul.mubr.f32.gmra.mxu0 %v4429
        %v4687 = vpop.f32.mrf.mxu0
        %v4688 = vadd.f32 %v4583, %v4687
        %v4689 = vpop.f32.mrf.mxu0
        %4690 = vmatprep.mubr.f32.mxu0 %v4438
        %4691 = vmatmul.mubr.f32.gmra.mxu0 %v4430
        %v4692 = vpop.f32.mrf.mxu0
        %v4693 = vadd.f32 %v4588, %v4692
        %v4694 = vpop.f32.mrf.mxu0
        %4695 = vmatprep.mubr.f32.mxu0 %v4439
        %4696 = vmatmul.mubr.f32.gmra.mxu0 %v4431
        %v4697 = vpop.f32.mrf.mxu0
        %v4698 = vadd.f32 %v4593, %v4697
        %v4699 = vpop.f32.mrf.mxu0
        %4700 = vmatprep.mubr.f32.mxu0 %v4440
        %4701 = vmatmul.mubr.f32.gmra.mxu0 %v4432
        %v4702 = vpop.f32.mrf.mxu0
        %v4703 = vadd.f32 %v4598, %v4702
        %v4704 = vpop.f32.mrf.mxu0
        %4705 = vmatprep.mubr.f32.mxu0 %v4441
        %4706 = vmatmul.mubr.f32.gmra.mxu0 %v4433
        %v4707 = vpop.f32.mrf.mxu0
        %v4708 = vadd.f32 %v4603, %v4707
        %v4709 = vpop.f32.mrf.mxu0
        %4710 = vmatprep.mubr.f32.mxu0 %v4442
        %4711 = vmatmul.mubr.f32.gmra.mxu0 %v4434
        %v4712 = vpop.f32.mrf.mxu0
        %v4713 = vadd.f32 %v4608, %v4712
        %v4714 = vpop.f32.mrf.mxu0
        %4715 = vmatprep.mubr.f32.mxu0 %v4443
        %4716 = vmatmul.mubr.f32.gmra.mxu0 %v4435
        %v4717 = vpop.f32.mrf.mxu0
        %v4718 = vadd.f32 %v4613, %v4717
        %v4719 = vpop.f32.mrf.mxu0
        %4720 = vmatprep.mubr.f32.mxu0 %v4444
        %4721 = vmatmul.mubr.f32.gmra.mxu0 %v4436
        %v4722 = vpop.f32.mrf.mxu0
        %v4723 = vadd.f32 %v4618, %v4722
        %v4724 = vpop.f32.mrf.mxu0
        %4725 = vdwg.mxu0
        %4726 = vst [vmem:[%s286] sm:$0xff] %v4688
        %4727 = vst [vmem:[%s286 + $0x8] sm:$0xff] %v4693
        %4728 = vst [vmem:[%s286 + $0x10] sm:$0xff] %v4698
        %4729 = vst [vmem:[%s286 + $0x18] sm:$0xff] %v4703
        %4730 = vst [vmem:[%s286 + $0x20] sm:$0xff] %v4708
        %4731 = vst [vmem:[%s286 + $0x28] sm:$0xff] %v4713
        %4732 = vst [vmem:[%s286 + $0x30] sm:$0xff] %v4718
        %4733 = vst [vmem:[%s286 + $0x38] sm:$0xff] %v4723
        %s4734 = sand.u32 %s142, 1
        %s4735 = scalar_lea.sflag [#allocation4], %s4734
        %s4736 = sand.u32 %s142, 1
        %s4737 = smul.addr %s4736, 64
        %s4738 = scalar_lea.vmem [#allocation10], %s4737
        // Predicated region
        $region57: #{tpu_custom_call.1} parent=39 // pred_check
          %p4739 = pneg %p152
        $region58: #{tpu_custom_call.1} parent=39 // pred_check_branch
          %4741 = sbr.rel (%p4739) target = $region60
        $region59: #{tpu_custom_call.1} parent=39 // pred_region
          %s4743 = ssub.s32 1024, 1024
          %4744 = vsyncadd %s4735, %s4743
          %s4745 = smul.addr %s24, 8
          %s4746 = smul.addr %s4745, 128
          %s4747 = scalar_lea.hbm %s5, %s4746
          %s4748 = sshll.u32 %s4738, 4
          %s4749 = int_to_ptr.vmem [resolvable:$true] %s4748
          %4754 = dma.vmem_to_hbm [thread:$0]  %s4749, 1024, %s4747, %s4735, 128, 128, 8
        $region60: #{tpu_custom_call.1} parent=39 // pred_fallthru
          _
      $region40: #{tpu_custom_call.1} parent=5 // pred_fallthru
        _
      %p4755 = scmp.le.s32.totalorder 2, %s19
      // Predicated region
      $region61: #{tpu_custom_call.1} parent=5 // pred_check
        %p4756 = pneg %p4755
      $region62: #{tpu_custom_call.1} parent=5 // pred_check_branch
        %4758 = sbr.rel (%p4756) target = $region64
      $region63: #{tpu_custom_call.1} parent=5 // pred_region
        %s4759 = ssub.s32 %s19, 2
        // Predicated region
        $region65: #{tpu_custom_call.1} parent=63 // pred_check
          %p4760 = pneg %p158
        $region66: #{tpu_custom_call.1} parent=63 // pred_check_branch
          %4762 = sbr.rel (%p4760) target = $region68
        $region67: #{tpu_custom_call.1} parent=63 // pred_region
          %s4763 = sand.u32 %s143, 1
          %s4764 = scalar_lea.sflag [#allocation4], %s4763
          %s4765 = sand.u32 %s143, 1
          %s4766 = smul.addr %s4765, 64
          %s4767 = scalar_lea.vmem [#allocation10], %s4766
          %4768 = dma.done %s4764, 1024
        $region68: #{tpu_custom_call.1} parent=63 // pred_fallthru
          _
      $region64: #{tpu_custom_call.1} parent=5 // pred_fallthru
        _
    $region6: #{tpu_custom_call.1} parent=1 // loop_footer
      %s23 = sadd.s32 1, %s19
    $region7: #{tpu_custom_call.1} parent=1 // loop_footer_branch
      %18 = sbr.rel target = $region3
    $region8: #{tpu_custom_call.1} parent=1 // loop_exit
      _
    %4769 = vsyncpa [#allocation3], 1
    %s4770 = scalar_lea.sflag [#allocation3], 1
    %4771 = vsyncpa %s4770, 1
    %4772 = vsyncpa [#allocation6], 1
    %4773 = vsyncpa [#allocation9], 1
    %4774 = vsyncpa [#allocation4], 1
    %s4775 = scalar_lea.sflag [#allocation4], 1
    %4776 = vsyncpa %s4775, 1

</llo_original>
